<compile_context>
chip_gen: v5e
topology: v5e:2x2
jax: 0.10.0
libtpu: 0.0.40
codegen_flags: <defaults>
</compile_context>

<pallas_src>
import functools

import jax
import jax.numpy as jnp
from jax.experimental import pallas as pl
from jax.experimental.pallas import tpu as pltpu

LEAKY_SLOPE = 0.2
BN_EPS = 1e-5


def _round_up(x, m):
    return (x + m - 1) // m * m


# ----------------------------------------------------------------------------
# Fused kernel: conv1(6->64) + conv2(64->128) + max_k + conv3(128->1024)
#               + running max over points + per-batch epilogue.
#
#   x_ref : (1, K, tn, 6)  bf16   (k-major, channels-last point tile)
#   o_ref : (1, 1, 1024)   f32    resident accumulator per batch
# ----------------------------------------------------------------------------
def _edge_global_kernel(x_ref, w1_ref, b1_ref, w2_ref, b2_ref, w3_ref, b3_ref,
                        o_ref, *, n_valid, has_pad):
    nq = pl.program_id(1)
    is_last = nq == pl.num_programs(1) - 1

    @pl.when(nq == 0)
    def _():
        o_ref[...] = jnp.full(o_ref.shape, -jnp.inf, dtype=o_ref.dtype)

    _, kk, tn_, cin = x_ref.shape

    # conv1 + conv2 as two big-M matmuls over all (neighbor, point) rows.
    x = x_ref[...].reshape(kk * tn_, cin)                        # (K*tn, 6) bf16
    h = jnp.dot(x, w1_ref[...], preferred_element_type=jnp.float32)
    h = h + b1_ref[...]
    h = jnp.where(h > 0, h, LEAKY_SLOPE * h)                     # (K*tn, 64) f32
    h = jnp.dot(h.astype(jnp.bfloat16), w2_ref[...],
                preferred_element_type=jnp.float32)              # (K*tn, 128) raw

    # max over k on the RAW conv2 output; bias + LeakyReLU hoisted past the
    # max (per-channel bias + monotone pointwise op commute with max: exact).
    # k-major layout -> K-1 aligned static row slices + elementwise max.
    m = h[0:tn_, :]
    for j in range(1, kk):
        m = jnp.maximum(m, h[j * tn_:(j + 1) * tn_, :])
    m = m + b2_ref[...]
    m = jnp.where(m > 0, m, LEAKY_SLOPE * m)                     # (tn, 128) f32

    # conv3 raw matmul; its bias + LeakyReLU are applied once per batch after
    # the full N reduction (same exactness argument).
    y = jnp.dot(m.astype(jnp.bfloat16), w3_ref[...],
                preferred_element_type=jnp.float32)              # (tn, 1024) raw

    def _finalize(g):
        g = g + b3_ref[...]
        return jnp.where(g > 0, g, LEAKY_SLOPE * g)

    if has_pad:
        # Padded point rows exist only in the last N tile: mask them there.
        @pl.when(jnp.logical_not(is_last))
        def _():
            o_ref[0] = jnp.maximum(o_ref[0],
                                   jnp.max(y, axis=0, keepdims=True))

        @pl.when(is_last)
        def _():
            row = nq * tn_ + jax.lax.broadcasted_iota(jnp.int32, (tn_, 1), 0)
            ym = jnp.where(row < n_valid, y, -jnp.inf)
            o_ref[0] = _finalize(
                jnp.maximum(o_ref[0], jnp.max(ym, axis=0, keepdims=True)))
    else:
        gmax = jnp.maximum(o_ref[0], jnp.max(y, axis=0, keepdims=True))

        @pl.when(jnp.logical_not(is_last))
        def _():
            o_ref[0] = gmax

        @pl.when(is_last)
        def _():
            o_ref[0] = _finalize(gmax)


def edge_global_feature(x_bknc, conv1, conv2, conv3, *, tn=512):
    """x_bknc: (B, K, N, 6) -> (B, 1024) f32 global feature (post BN+LReLU)."""
    w1, b1 = conv1
    w2, b2 = conv2
    w3, b3 = conv3
    B, K, N, Cin = x_bknc.shape
    C1, C2, C3 = w1.shape[1], w2.shape[1], w3.shape[1]

    # Tile over the point axis; multiple of 8, never the whole huge N.
    # Sweep tn per generation: ~512 is safe everywhere; v6e/v7x can amortize
    # step overhead with 1024-2048 (raise vmem_limit_bytes if needed);
    # v5e prefers <= 512.  For B == 1 on v7x the N range could additionally
    # be split in two partial-max outputs to use both TensorCores.
    tn = max(8, min(tn, _round_up(N, 8)))
    Np = _round_up(N, tn)
    has_pad = Np != N
    xp = x_bknc.astype(jnp.bfloat16)
    if has_pad:
        xp = jnp.pad(xp, ((0, 0), (0, 0), (0, Np - N), (0, 0)))

    out = pl.pallas_call(
        functools.partial(_edge_global_kernel, n_valid=N, has_pad=has_pad),
        out_shape=jax.ShapeDtypeStruct((B, 1, C3), jnp.float32),
        grid=(B, Np // tn),
        in_specs=[
            pl.BlockSpec((1, K, tn, Cin), lambda bq, nq: (bq, 0, nq, 0)),
            pl.BlockSpec((Cin, C1), lambda bq, nq: (0, 0)),
            pl.BlockSpec((1, C1), lambda bq, nq: (0, 0)),
            pl.BlockSpec((C1, C2), lambda bq, nq: (0, 0)),
            pl.BlockSpec((1, C2), lambda bq, nq: (0, 0)),
            pl.BlockSpec((C2, C3), lambda bq, nq: (0, 0)),
            pl.BlockSpec((1, C3), lambda bq, nq: (0, 0)),
        ],
        out_specs=pl.BlockSpec((1, 1, C3), lambda bq, nq: (bq, 0, 0)),
        compiler_params=pltpu.CompilerParams(
            dimension_semantics=("parallel", "arbitrary")),
    )(xp,
      w1.astype(jnp.bfloat16), b1.reshape(1, -1).astype(jnp.float32),
      w2.astype(jnp.bfloat16), b2.reshape(1, -1).astype(jnp.float32),
      w3.astype(jnp.bfloat16), b3.reshape(1, -1).astype(jnp.float32))
    return out.reshape(B, C3)


# ----------------------------------------------------------------------------
# Head kernel: linear1+BN+LReLU -> linear2+BN+LReLU -> transform.
#   9-wide transform output padded to 128 lanes for a dense store; sliced
#   back to 9 in JAX.
# ----------------------------------------------------------------------------
def _head_kernel(x_ref, w1_ref, b1_ref, w2_ref, b2_ref, wt_ref, bt_ref, o_ref):
    h = jnp.dot(x_ref[...], w1_ref[...], preferred_element_type=jnp.float32)
    h = h + b1_ref[...]
    h = jnp.where(h > 0, h, LEAKY_SLOPE * h)
    h = jnp.dot(h.astype(jnp.bfloat16), w2_ref[...],
                preferred_element_type=jnp.float32)
    h = h + b2_ref[...]
    h = jnp.where(h > 0, h, LEAKY_SLOPE * h)
    y = jnp.dot(h.astype(jnp.bfloat16), wt_ref[...],
                preferred_element_type=jnp.float32)
    o_ref[...] = y + bt_ref[...]


def head(x_bf16, linear1, linear2, transform, *, lane=128):
    w1, b1 = linear1
    w2, b2 = linear2
    wt, bt = transform
    B, Cin = x_bf16.shape
    n_out = wt.shape[1]                                   # 9
    Cpad = _round_up(n_out, lane)                         # 128-lane-dense store
    wt_p = jnp.pad(wt, ((0, 0), (0, Cpad - n_out)))
    bt_p = jnp.pad(bt, ((0, Cpad - n_out),))

    # For large-batch serving, tile B (blocks of 128-256 rows, "parallel") so
    # the v7x second core shares the head matmuls; negligible for small B.
    out = pl.pallas_call(
        _head_kernel,
        out_shape=jax.ShapeDtypeStruct((B, Cpad), jnp.float32),
        grid=(1,),
        in_specs=[
            pl.BlockSpec((B, Cin), lambda i: (0, 0)),
            pl.BlockSpec(w1.shape, lambda i: (0, 0)),
            pl.BlockSpec((1, w1.shape[1]), lambda i: (0, 0)),
            pl.BlockSpec(w2.shape, lambda i: (0, 0)),
            pl.BlockSpec((1, w2.shape[1]), lambda i: (0, 0)),
            pl.BlockSpec((wt.shape[0], Cpad), lambda i: (0, 0)),
            pl.BlockSpec((1, Cpad), lambda i: (0, 0)),
        ],
        out_specs=pl.BlockSpec((B, Cpad), lambda i: (0, 0)),
        compiler_params=pltpu.CompilerParams(
            dimension_semantics=("arbitrary",)),
    )(x_bf16.astype(jnp.bfloat16),
      w1.astype(jnp.bfloat16), b1.reshape(1, -1).astype(jnp.float32),
      w2.astype(jnp.bfloat16), b2.reshape(1, -1).astype(jnp.float32),
      wt_p.astype(jnp.bfloat16), bt_p.reshape(1, -1).astype(jnp.float32))
    return out[:, :n_out]


# ----------------------------------------------------------------------------
# Parameters (synthetic; BN in eval mode folded: scale into weight, bias kept)
# ----------------------------------------------------------------------------
def init_params(key):
    def conv_bn(k_, cin, cout):
        kw, kg, kb, km, kv = jax.random.split(k_, 5)
        w = jax.random.normal(kw, (cin, cout), jnp.float32) * (2.0 / cin) ** 0.5
        gamma = jax.random.uniform(kg, (cout,), jnp.float32, 0.5, 1.5)
        beta = jax.random.normal(kb, (cout,), jnp.float32) * 0.1
        mean = jax.random.normal(km, (cout,), jnp.float32) * 0.1
        var = jax.random.uniform(kv, (cout,), jnp.float32, 0.5, 1.5)
        scale = gamma / jnp.sqrt(var + BN_EPS)
        return w * scale[None, :], beta - mean * scale     # folded (w', b')

    keys = jax.random.split(key, 5)
    params = {
        'conv1': conv_bn(keys[0], 6, 64),        # Conv2d 6->64    + BN2d(64)
        'conv2': conv_bn(keys[1], 64, 128),      # Conv2d 64->128  + BN2d(128)
        'conv3': conv_bn(keys[2], 128, 1024),    # Conv1d 128->1024+ BN1d(1024)
        'linear1': conv_bn(keys[3], 1024, 512),  # Linear 1024->512+ BN1d(512)
        'linear2': conv_bn(keys[4], 512, 256),   # Linear 512->256 + BN1d(256)
        # transform: Linear(256, 9); init.constant_(w, 0), init.eye_(b.view(3,3))
        'transform': (jnp.zeros((256, 9), jnp.float32),
                      jnp.eye(3, dtype=jnp.float32).reshape(9)),
    }
    return params


# ----------------------------------------------------------------------------
# Forward pass (Transform_Net, eval mode)
# ----------------------------------------------------------------------------
def transform_net_forward(params, x, *, tn=512):
    # x: (B, 6, N, k)  -- PyTorch layout at the API boundary.
    B = x.shape[0]
    # channels-last & k-major so the edge convs become lane-dense big-M matmuls
    xt = jnp.transpose(x, (0, 3, 2, 1))                          # (B, K, N, 6)
    gfeat = edge_global_feature(xt, params['conv1'], params['conv2'],
                                params['conv3'], tn=tn)          # (B, 1024) f32
    t = head(gfeat.astype(jnp.bfloat16), params['linear1'],
             params['linear2'], params['transform'])             # (B, 9) f32
    return t.reshape(B, 3, 3)


# ----------------------------------------------------------------------------
# Pure-JAX reference mirroring the kernels' bf16-compute / f32-accumulate path
# ----------------------------------------------------------------------------
def reference_forward(params, x):
    def mm(a, w):
        return jnp.dot(a.astype(jnp.bfloat16), w.astype(jnp.bfloat16),
                       preferred_element_type=jnp.float32)

    def lrelu(v):
        return jnp.where(v > 0, v, LEAKY_SLOPE * v)

    B, C, N, K = x.shape
    h = jnp.transpose(x, (0, 2, 3, 1)).reshape(B * N * K, C)
    w, b = params['conv1']; h = lrelu(mm(h, w) + b)
    w, b = params['conv2']; h = lrelu(mm(h, w) + b)
    h = jnp.max(h.reshape(B * N, K, -1), axis=1)              # max over k
    w, b = params['conv3']; h = lrelu(mm(h, w) + b)
    h = jnp.max(h.reshape(B, N, -1), axis=1)                  # max over points
    w, b = params['linear1']; h = lrelu(mm(h, w) + b)
    w, b = params['linear2']; h = lrelu(mm(h, w) + b)
    w, b = params['transform']
    return (mm(h, w) + b).reshape(B, 3, 3)


# ----------------------------------------------------------------------------
if __name__ == "__main__":
    key = jax.random.PRNGKey(0)
    kx, kx2, kp, kw, kb = jax.random.split(key, 5)

    B, N, K = 2, 32, 8                       # small demo shapes
    x = jax.random.normal(kx, (B, 6, N, K), jnp.float32)
    params = init_params(kp)

    fwd = jax.jit(transform_net_forward)

    # 1) faithful init (transform weight = 0, bias = I) => output is identity.
    out = fwd(params, x)
    jax.block_until_ready(out)
    assert out.shape == (B, 3, 3), out.shape
    eye = jnp.broadcast_to(jnp.eye(3, dtype=jnp.float32), (B, 3, 3))
    assert jnp.allclose(out, eye, atol=1e-5)

    # 2) nontrivial transform weights: Pallas path vs pure-JAX reference.
    params_chk = dict(params)
    params_chk['transform'] = (
        0.05 * jax.random.normal(kw, (256, 9), jnp.float32),
        0.05 * jax.random.normal(kb, (9,), jnp.float32),
    )
    out_chk = fwd(params_chk, x)
    ref_chk = reference_forward(params_chk, x)
    jax.block_until_ready((out_chk, ref_chk))
    assert jnp.allclose(out_chk, ref_chk, atol=5e-2, rtol=5e-2), (
        float(jnp.max(jnp.abs(out_chk - ref_chk))))

    # 3) uneven N + small tile: exercises multi-tile running max, last-tile
    #    -inf padding mask, and the per-batch epilogue under pl.when.
    N2 = 36
    x2 = jax.random.normal(kx2, (B, 6, N2, K), jnp.float32)
    fwd_small_tile = jax.jit(functools.partial(transform_net_forward, tn=16))
    out2 = fwd_small_tile(params_chk, x2)
    ref2 = reference_forward(params_chk, x2)
    jax.block_until_ready((out2, ref2))
    assert jnp.allclose(out2, ref2, atol=5e-2, rtol=5e-2), (
        float(jnp.max(jnp.abs(out2 - ref2))))

    print("KERNEL_OK")
</pallas_src>

<mosaic_0001>
module attributes {stable_mosaic.version = 11 : i64} {
  func.func @_edge_global_kernel(%arg0: i32, %arg1: i32, %arg2: memref<1x8x32x6xbf16, #tpu.memory_space<vmem>>, %arg3: memref<6x64xbf16, #tpu.memory_space<vmem>>, %arg4: memref<1x64xf32, #tpu.memory_space<vmem>>, %arg5: memref<64x128xbf16, #tpu.memory_space<vmem>>, %arg6: memref<1x128xf32, #tpu.memory_space<vmem>>, %arg7: memref<128x1024xbf16, #tpu.memory_space<vmem>>, %arg8: memref<1x1024xf32, #tpu.memory_space<vmem>>, %arg9: memref<1x1x1024xf32, #tpu.memory_space<vmem>>) attributes {dimension_semantics = [#tpu.dimension_semantics<parallel>, #tpu.dimension_semantics<arbitrary>], iteration_bounds = array<i64: 2, 1>, scalar_prefetch = 0 : i64, scratch_operands = 0 : i64, tpu.core_type = #tpu.core_type<tc>, window_params = [{transform_indices = @transform_0, window_bounds = array<i64: 1, 8, 32, 6>}, {pipeline_mode = #tpu.pipeline_mode<synchronous>, transform_indices = @transform_1, window_bounds = array<i64: 6, 64>}, {pipeline_mode = #tpu.pipeline_mode<synchronous>, transform_indices = @transform_2, window_bounds = array<i64: 1, 64>}, {pipeline_mode = #tpu.pipeline_mode<synchronous>, transform_indices = @transform_3, window_bounds = array<i64: 64, 128>}, {pipeline_mode = #tpu.pipeline_mode<synchronous>, transform_indices = @transform_4, window_bounds = array<i64: 1, 128>}, {pipeline_mode = #tpu.pipeline_mode<synchronous>, transform_indices = @transform_5, window_bounds = array<i64: 128, 1024>}, {pipeline_mode = #tpu.pipeline_mode<synchronous>, transform_indices = @transform_6, window_bounds = array<i64: 1, 1024>}, {transform_indices = @transform_7, window_bounds = array<i64: 1, 1, 1024>}]} {
    %c0_i32 = arith.constant 0 : i32
    %0 = arith.cmpi eq, %arg1, %c0_i32 : i32
    %c0_i32_0 = arith.constant 0 : i32
    %1 = arith.cmpi eq, %arg1, %c0_i32_0 : i32
    %2 = arith.extui %1 : i1 to i32
    %c0_i32_1 = arith.constant 0 : i32
    %3 = arith.cmpi ne, %2, %c0_i32_1 : i32
    scf.if %3 {
      %cst_27 = arith.constant 0xFF800000 : f32
      %55 = vector.broadcast %cst_27 : f32 to vector<1x1x1024xf32>
      %c0_28 = arith.constant 0 : index
      %c0_29 = arith.constant 0 : index
      %c0_30 = arith.constant 0 : index
      %56 = vector.load %arg9[%c0_28, %c0_29, %c0_30] : memref<1x1x1024xf32, #tpu.memory_space<vmem>>, vector<1x1x1024xf32>
      tpu.vector_store %arg9[%c0_28, %c0_29, %c0_30], %55 {strides = array<i32>} : memref<1x1x1024xf32, #tpu.memory_space<vmem>>, vector<1x1x1024xf32>,
    } else {
    }
    %c0 = arith.constant 0 : index
    %c0_2 = arith.constant 0 : index
    %c0_3 = arith.constant 0 : index
    %c0_4 = arith.constant 0 : index
    %4 = vector.load %arg2[%c0, %c0_2, %c0_3, %c0_4] : memref<1x8x32x6xbf16, #tpu.memory_space<vmem>>, vector<1x8x32x6xbf16>
    %5 = vector.shape_cast %4 : vector<1x8x32x6xbf16> to vector<256x6xbf16>
    %c0_5 = arith.constant 0 : index
    %c0_6 = arith.constant 0 : index
    %6 = vector.load %arg3[%c0_5, %c0_6] : memref<6x64xbf16, #tpu.memory_space<vmem>>, vector<6x64xbf16>
    %cst = arith.constant dense<0.000000e+00> : vector<256x64xf32>
    %7 = tpu.matmul %5, %6, %cst {dimension_numbers = #tpu.dot_dimension_numbers<[1], [0], [0], [1], [0, 0, 1, 1], [], []>} : vector<256x6xbf16>, vector<6x64xbf16>, vector<256x64xf32> -> vector<256x64xf32>
    %c0_7 = arith.constant 0 : index
    %c0_8 = arith.constant 0 : index
    %8 = vector.load %arg4[%c0_7, %c0_8] : memref<1x64xf32, #tpu.memory_space<vmem>>, vector<1x64xf32>
    %9 = vector.broadcast %8 : vector<1x64xf32> to vector<256x64xf32>
    %10 = arith.addf %7, %9 : vector<256x64xf32>
    %cst_9 = arith.constant 0.000000e+00 : f32
    %11 = vector.broadcast %cst_9 : f32 to vector<256x64xf32>
    %12 = arith.cmpf ogt, %10, %11 : vector<256x64xf32>
    %cst_10 = arith.constant 2.000000e-01 : f32
    %13 = vector.broadcast %cst_10 : f32 to vector<256x64xf32>
    %14 = arith.mulf %13, %10 : vector<256x64xf32>
    %15 = arith.select %12, %10, %14 : vector<256x64xi1>, vector<256x64xf32>
    %16 = arith.truncf %15 : vector<256x64xf32> to vector<256x64xbf16>
    %c0_11 = arith.constant 0 : index
    %c0_12 = arith.constant 0 : index
    %17 = vector.load %arg5[%c0_11, %c0_12] : memref<64x128xbf16, #tpu.memory_space<vmem>>, vector<64x128xbf16>
    %cst_13 = arith.constant dense<0.000000e+00> : vector<256x128xf32>
    %18 = tpu.matmul %16, %17, %cst_13 {dimension_numbers = #tpu.dot_dimension_numbers<[1], [0], [0], [1], [0, 0, 1, 1], [], []>} : vector<256x64xbf16>, vector<64x128xbf16>, vector<256x128xf32> -> vector<256x128xf32>
    %19 = vector.extract_strided_slice %18 {offsets = [0, 0], sizes = [32, 128], strides = [1, 1]} : vector<256x128xf32> to vector<32x128xf32>
    %20 = vector.extract_strided_slice %18 {offsets = [32, 0], sizes = [32, 128], strides = [1, 1]} : vector<256x128xf32> to vector<32x128xf32>
    %21 = arith.maximumf %19, %20 : vector<32x128xf32>
    %22 = vector.extract_strided_slice %18 {offsets = [64, 0], sizes = [32, 128], strides = [1, 1]} : vector<256x128xf32> to vector<32x128xf32>
    %23 = arith.maximumf %21, %22 : vector<32x128xf32>
    %24 = vector.extract_strided_slice %18 {offsets = [96, 0], sizes = [32, 128], strides = [1, 1]} : vector<256x128xf32> to vector<32x128xf32>
    %25 = arith.maximumf %23, %24 : vector<32x128xf32>
    %26 = vector.extract_strided_slice %18 {offsets = [128, 0], sizes = [32, 128], strides = [1, 1]} : vector<256x128xf32> to vector<32x128xf32>
    %27 = arith.maximumf %25, %26 : vector<32x128xf32>
    %28 = vector.extract_strided_slice %18 {offsets = [160, 0], sizes = [32, 128], strides = [1, 1]} : vector<256x128xf32> to vector<32x128xf32>
    %29 = arith.maximumf %27, %28 : vector<32x128xf32>
    %30 = vector.extract_strided_slice %18 {offsets = [192, 0], sizes = [32, 128], strides = [1, 1]} : vector<256x128xf32> to vector<32x128xf32>
    %31 = arith.maximumf %29, %30 : vector<32x128xf32>
    %32 = vector.extract_strided_slice %18 {offsets = [224, 0], sizes = [32, 128], strides = [1, 1]} : vector<256x128xf32> to vector<32x128xf32>
    %33 = arith.maximumf %31, %32 : vector<32x128xf32>
    %c0_14 = arith.constant 0 : index
    %c0_15 = arith.constant 0 : index
    %34 = vector.load %arg6[%c0_14, %c0_15] : memref<1x128xf32, #tpu.memory_space<vmem>>, vector<1x128xf32>
    %35 = vector.broadcast %34 : vector<1x128xf32> to vector<32x128xf32>
    %36 = arith.addf %33, %35 : vector<32x128xf32>
    %cst_16 = arith.constant 0.000000e+00 : f32
    %37 = vector.broadcast %cst_16 : f32 to vector<32x128xf32>
    %38 = arith.cmpf ogt, %36, %37 : vector<32x128xf32>
    %cst_17 = arith.constant 2.000000e-01 : f32
    %39 = vector.broadcast %cst_17 : f32 to vector<32x128xf32>
    %40 = arith.mulf %39, %36 : vector<32x128xf32>
    %41 = arith.select %38, %36, %40 : vector<32x128xi1>, vector<32x128xf32>
    %42 = arith.truncf %41 : vector<32x128xf32> to vector<32x128xbf16>
    %c0_18 = arith.constant 0 : index
    %c0_19 = arith.constant 0 : index
    %43 = vector.load %arg7[%c0_18, %c0_19] : memref<128x1024xbf16, #tpu.memory_space<vmem>>, vector<128x1024xbf16>
    %cst_20 = arith.constant dense<0.000000e+00> : vector<32x1024xf32>
    %44 = tpu.matmul %42, %43, %cst_20 {dimension_numbers = #tpu.dot_dimension_numbers<[1], [0], [0], [1], [0, 0, 1, 1], [], []>} : vector<32x128xbf16>, vector<128x1024xbf16>, vector<32x1024xf32> -> vector<32x1024xf32>
    %c0_21 = arith.constant 0 : index
    %c0_22 = arith.constant 0 : index
    %c0_23 = arith.constant 0 : index
    %45 = vector.load %arg9[%c0_21, %c0_22, %c0_23] : memref<1x1x1024xf32, #tpu.memory_space<vmem>>, vector<1x1x1024xf32>
    %46 = vector.shape_cast %45 : vector<1x1x1024xf32> to vector<1x1024xf32>
    %cst_24 = arith.constant dense<0xFF800000> : vector<1024xf32>
    %47 = vector.multi_reduction <maximumf>, %44, %cst_24 [0] : vector<32x1024xf32> to vector<1024xf32>
    %48 = vector.shape_cast %47 : vector<1024xf32> to vector<1x1024xf32>
    %49 = arith.maximumf %46, %48 : vector<1x1024xf32>
    %true = arith.constant true
    %50 = arith.xori %0, %true : i1
    %51 = arith.extui %50 : i1 to i32
    %c0_i32_25 = arith.constant 0 : i32
    %52 = arith.cmpi ne, %51, %c0_i32_25 : i32
    scf.if %52 {
      %c0_27 = arith.constant 0 : index
      %c0_28 = arith.constant 0 : index
      %c0_29 = arith.constant 0 : index
      %55 = vector.load %arg9[%c0_27, %c0_28, %c0_29] : memref<1x1x1024xf32, #tpu.memory_space<vmem>>, vector<1x1x1024xf32>
      %56 = vector.shape_cast %55 : vector<1x1x1024xf32> to vector<1x1024xf32>
      %57 = vector.shape_cast %49 : vector<1x1024xf32> to vector<1x1x1024xf32>
      tpu.vector_store %arg9[%c0_27, %c0_28, %c0_29], %57 {strides = array<i32>} : memref<1x1x1024xf32, #tpu.memory_space<vmem>>, vector<1x1x1024xf32>,
    } else {
    }
    %53 = arith.extui %0 : i1 to i32
    %c0_i32_26 = arith.constant 0 : i32
    %54 = arith.cmpi ne, %53, %c0_i32_26 : i32
    scf.if %54 {
      %c0_27 = arith.constant 0 : index
      %c0_28 = arith.constant 0 : index
      %55 = vector.load %arg8[%c0_27, %c0_28] : memref<1x1024xf32, #tpu.memory_space<vmem>>, vector<1x1024xf32>
      %56 = arith.addf %49, %55 : vector<1x1024xf32>
      %cst_29 = arith.constant 0.000000e+00 : f32
      %57 = vector.broadcast %cst_29 : f32 to vector<1x1024xf32>
      %58 = arith.cmpf ogt, %56, %57 : vector<1x1024xf32>
      %cst_30 = arith.constant 2.000000e-01 : f32
      %59 = vector.broadcast %cst_30 : f32 to vector<1x1024xf32>
      %60 = arith.mulf %59, %56 : vector<1x1024xf32>
      %61 = arith.select %58, %56, %60 : vector<1x1024xi1>, vector<1x1024xf32>
      %c0_31 = arith.constant 0 : index
      %c0_32 = arith.constant 0 : index
      %c0_33 = arith.constant 0 : index
      %62 = vector.load %arg9[%c0_31, %c0_32, %c0_33] : memref<1x1x1024xf32, #tpu.memory_space<vmem>>, vector<1x1x1024xf32>
      %63 = vector.shape_cast %62 : vector<1x1x1024xf32> to vector<1x1024xf32>
      %64 = vector.shape_cast %61 : vector<1x1024xf32> to vector<1x1x1024xf32>
      tpu.vector_store %arg9[%c0_31, %c0_32, %c0_33], %64 {strides = array<i32>} : memref<1x1x1024xf32, #tpu.memory_space<vmem>>, vector<1x1x1024xf32>,
    } else {
    }
    return
  }
  func.func @transform_0(%arg0: i32, %arg1: i32) -> (i32, i32, i32, i32) {
    %c0_i32 = arith.constant 0 : i32
    %c0_i32_0 = arith.constant 0 : i32
    %c0_i32_1 = arith.constant 0 : i32
    return %arg0, %c0_i32, %arg1, %c0_i32_0 : i32, i32, i32, i32
  }
  func.func @transform_1(%arg0: i32, %arg1: i32) -> (i32, i32) {
    %c0_i32 = arith.constant 0 : i32
    %c0_i32_0 = arith.constant 0 : i32
    %c0_i32_1 = arith.constant 0 : i32
    return %c0_i32, %c0_i32_0 : i32, i32
  }
  func.func @transform_2(%arg0: i32, %arg1: i32) -> (i32, i32) {
    %c0_i32 = arith.constant 0 : i32
    %c0_i32_0 = arith.constant 0 : i32
    %c0_i32_1 = arith.constant 0 : i32
    return %c0_i32, %c0_i32_0 : i32, i32
  }
  func.func @transform_3(%arg0: i32, %arg1: i32) -> (i32, i32) {
    %c0_i32 = arith.constant 0 : i32
    %c0_i32_0 = arith.constant 0 : i32
    %c0_i32_1 = arith.constant 0 : i32
    return %c0_i32, %c0_i32_0 : i32, i32
  }
  func.func @transform_4(%arg0: i32, %arg1: i32) -> (i32, i32) {
    %c0_i32 = arith.constant 0 : i32
    %c0_i32_0 = arith.constant 0 : i32
    %c0_i32_1 = arith.constant 0 : i32
    return %c0_i32, %c0_i32_0 : i32, i32
  }
  func.func @transform_5(%arg0: i32, %arg1: i32) -> (i32, i32) {
    %c0_i32 = arith.constant 0 : i32
    %c0_i32_0 = arith.constant 0 : i32
    %c0_i32_1 = arith.constant 0 : i32
    return %c0_i32, %c0_i32_0 : i32, i32
  }
  func.func @transform_6(%arg0: i32, %arg1: i32) -> (i32, i32) {
    %c0_i32 = arith.constant 0 : i32
    %c0_i32_0 = arith.constant 0 : i32
    %c0_i32_1 = arith.constant 0 : i32
    return %c0_i32, %c0_i32_0 : i32, i32
  }
  func.func @transform_7(%arg0: i32, %arg1: i32) -> (i32, i32, i32) {
    %c0_i32 = arith.constant 0 : i32
    %c0_i32_0 = arith.constant 0 : i32
    %c0_i32_1 = arith.constant 0 : i32
    return %arg0, %c0_i32, %c0_i32_0 : i32, i32, i32
  }
}

module attributes {stable_mosaic.version = 11 : i64} {
  func.func @_head_kernel(%arg0: i32, %arg1: memref<2x1024xbf16, #tpu.memory_space<vmem>>, %arg2: memref<1024x512xbf16, #tpu.memory_space<vmem>>, %arg3: memref<1x512xf32, #tpu.memory_space<vmem>>, %arg4: memref<512x256xbf16, #tpu.memory_space<vmem>>, %arg5: memref<1x256xf32, #tpu.memory_space<vmem>>, %arg6: memref<256x128xbf16, #tpu.memory_space<vmem>>, %arg7: memref<1x128xf32, #tpu.memory_space<vmem>>, %arg8: memref<2x128xf32, #tpu.memory_space<vmem>>) attributes {dimension_semantics = [#tpu.dimension_semantics<arbitrary>], iteration_bounds = array<i64: 1>, scalar_prefetch = 0 : i64, scratch_operands = 0 : i64, tpu.core_type = #tpu.core_type<tc>, window_params = [{pipeline_mode = #tpu.pipeline_mode<synchronous>, transform_indices = @transform_0, window_bounds = array<i64: 2, 1024>}, {pipeline_mode = #tpu.pipeline_mode<synchronous>, transform_indices = @transform_1, window_bounds = array<i64: 1024, 512>}, {pipeline_mode = #tpu.pipeline_mode<synchronous>, transform_indices = @transform_2, window_bounds = array<i64: 1, 512>}, {pipeline_mode = #tpu.pipeline_mode<synchronous>, transform_indices = @transform_3, window_bounds = array<i64: 512, 256>}, {pipeline_mode = #tpu.pipeline_mode<synchronous>, transform_indices = @transform_4, window_bounds = array<i64: 1, 256>}, {pipeline_mode = #tpu.pipeline_mode<synchronous>, transform_indices = @transform_5, window_bounds = array<i64: 256, 128>}, {pipeline_mode = #tpu.pipeline_mode<synchronous>, transform_indices = @transform_6, window_bounds = array<i64: 1, 128>}, {pipeline_mode = #tpu.pipeline_mode<synchronous>, transform_indices = @transform_7, window_bounds = array<i64: 2, 128>}]} {
    %c0 = arith.constant 0 : index
    %c0_0 = arith.constant 0 : index
    %0 = vector.load %arg1[%c0, %c0_0] : memref<2x1024xbf16, #tpu.memory_space<vmem>>, vector<2x1024xbf16>
    %c0_1 = arith.constant 0 : index
    %c0_2 = arith.constant 0 : index
    %1 = vector.load %arg2[%c0_1, %c0_2] : memref<1024x512xbf16, #tpu.memory_space<vmem>>, vector<1024x512xbf16>
    %cst = arith.constant dense<0.000000e+00> : vector<2x512xf32>
    %2 = tpu.matmul %0, %1, %cst {dimension_numbers = #tpu.dot_dimension_numbers<[1], [0], [0], [1], [0, 0, 1, 1], [], []>} : vector<2x1024xbf16>, vector<1024x512xbf16>, vector<2x512xf32> -> vector<2x512xf32>
    %c0_3 = arith.constant 0 : index
    %c0_4 = arith.constant 0 : index
    %3 = vector.load %arg3[%c0_3, %c0_4] : memref<1x512xf32, #tpu.memory_space<vmem>>, vector<1x512xf32>
    %4 = vector.broadcast %3 : vector<1x512xf32> to vector<2x512xf32>
    %5 = arith.addf %2, %4 : vector<2x512xf32>
    %cst_5 = arith.constant 0.000000e+00 : f32
    %6 = vector.broadcast %cst_5 : f32 to vector<2x512xf32>
    %7 = arith.cmpf ogt, %5, %6 : vector<2x512xf32>
    %cst_6 = arith.constant 2.000000e-01 : f32
    %8 = vector.broadcast %cst_6 : f32 to vector<2x512xf32>
    %9 = arith.mulf %8, %5 : vector<2x512xf32>
    %10 = arith.select %7, %5, %9 : vector<2x512xi1>, vector<2x512xf32>
    %11 = arith.truncf %10 : vector<2x512xf32> to vector<2x512xbf16>
    %c0_7 = arith.constant 0 : index
    %c0_8 = arith.constant 0 : index
    %12 = vector.load %arg4[%c0_7, %c0_8] : memref<512x256xbf16, #tpu.memory_space<vmem>>, vector<512x256xbf16>
    %cst_9 = arith.constant dense<0.000000e+00> : vector<2x256xf32>
    %13 = tpu.matmul %11, %12, %cst_9 {dimension_numbers = #tpu.dot_dimension_numbers<[1], [0], [0], [1], [0, 0, 1, 1], [], []>} : vector<2x512xbf16>, vector<512x256xbf16>, vector<2x256xf32> -> vector<2x256xf32>
    %c0_10 = arith.constant 0 : index
    %c0_11 = arith.constant 0 : index
    %14 = vector.load %arg5[%c0_10, %c0_11] : memref<1x256xf32, #tpu.memory_space<vmem>>, vector<1x256xf32>
    %15 = vector.broadcast %14 : vector<1x256xf32> to vector<2x256xf32>
    %16 = arith.addf %13, %15 : vector<2x256xf32>
    %cst_12 = arith.constant 0.000000e+00 : f32
    %17 = vector.broadcast %cst_12 : f32 to vector<2x256xf32>
    %18 = arith.cmpf ogt, %16, %17 : vector<2x256xf32>
    %cst_13 = arith.constant 2.000000e-01 : f32
    %19 = vector.broadcast %cst_13 : f32 to vector<2x256xf32>
    %20 = arith.mulf %19, %16 : vector<2x256xf32>
    %21 = arith.select %18, %16, %20 : vector<2x256xi1>, vector<2x256xf32>
    %22 = arith.truncf %21 : vector<2x256xf32> to vector<2x256xbf16>
    %c0_14 = arith.constant 0 : index
    %c0_15 = arith.constant 0 : index
    %23 = vector.load %arg6[%c0_14, %c0_15] : memref<256x128xbf16, #tpu.memory_space<vmem>>, vector<256x128xbf16>
    %cst_16 = arith.constant dense<0.000000e+00> : vector<2x128xf32>
    %24 = tpu.matmul %22, %23, %cst_16 {dimension_numbers = #tpu.dot_dimension_numbers<[1], [0], [0], [1], [0, 0, 1, 1], [], []>} : vector<2x256xbf16>, vector<256x128xbf16>, vector<2x128xf32> -> vector<2x128xf32>
    %c0_17 = arith.constant 0 : index
    %c0_18 = arith.constant 0 : index
    %25 = vector.load %arg7[%c0_17, %c0_18] : memref<1x128xf32, #tpu.memory_space<vmem>>, vector<1x128xf32>
    %26 = vector.broadcast %25 : vector<1x128xf32> to vector<2x128xf32>
    %27 = arith.addf %24, %26 : vector<2x128xf32>
    %c0_19 = arith.constant 0 : index
    %c0_20 = arith.constant 0 : index
    %28 = vector.load %arg8[%c0_19, %c0_20] : memref<2x128xf32, #tpu.memory_space<vmem>>, vector<2x128xf32>
    tpu.vector_store %arg8[%c0_19, %c0_20], %27 {strides = array<i32>} : memref<2x128xf32, #tpu.memory_space<vmem>>, vector<2x128xf32>,
    return
  }
  func.func @transform_0(%arg0: i32) -> (i32, i32) {
    %c0_i32 = arith.constant 0 : i32
    %c0_i32_0 = arith.constant 0 : i32
    %c0_i32_1 = arith.constant 0 : i32
    return %c0_i32, %c0_i32_0 : i32, i32
  }
  func.func @transform_1(%arg0: i32) -> (i32, i32) {
    %c0_i32 = arith.constant 0 : i32
    %c0_i32_0 = arith.constant 0 : i32
    %c0_i32_1 = arith.constant 0 : i32
    return %c0_i32, %c0_i32_0 : i32, i32
  }
  func.func @transform_2(%arg0: i32) -> (i32, i32) {
    %c0_i32 = arith.constant 0 : i32
    %c0_i32_0 = arith.constant 0 : i32
    %c0_i32_1 = arith.constant 0 : i32
    return %c0_i32, %c0_i32_0 : i32, i32
  }
  func.func @transform_3(%arg0: i32) -> (i32, i32) {
    %c0_i32 = arith.constant 0 : i32
    %c0_i32_0 = arith.constant 0 : i32
    %c0_i32_1 = arith.constant 0 : i32
    return %c0_i32, %c0_i32_0 : i32, i32
  }
  func.func @transform_4(%arg0: i32) -> (i32, i32) {
    %c0_i32 = arith.constant 0 : i32
    %c0_i32_0 = arith.constant 0 : i32
    %c0_i32_1 = arith.constant 0 : i32
    return %c0_i32, %c0_i32_0 : i32, i32
  }
  func.func @transform_5(%arg0: i32) -> (i32, i32) {
    %c0_i32 = arith.constant 0 : i32
    %c0_i32_0 = arith.constant 0 : i32
    %c0_i32_1 = arith.constant 0 : i32
    return %c0_i32, %c0_i32_0 : i32, i32
  }
  func.func @transform_6(%arg0: i32) -> (i32, i32) {
    %c0_i32 = arith.constant 0 : i32
    %c0_i32_0 = arith.constant 0 : i32
    %c0_i32_1 = arith.constant 0 : i32
    return %c0_i32, %c0_i32_0 : i32, i32
  }
  func.func @transform_7(%arg0: i32) -> (i32, i32) {
    %c0_i32 = arith.constant 0 : i32
    %c0_i32_0 = arith.constant 0 : i32
    %c0_i32_1 = arith.constant 0 : i32
    return %c0_i32, %c0_i32_0 : i32, i32
  }
}

</mosaic_0001>

<llo_original>
// kernel: transform_net_forward.2
$region0: #{transform_net_forward.2}
  #allocation0 [shape = 'u32[]', space=smem, size = 0x4, offset = 0x4, fixed_abs, tag = 'smem constant byte address 0x4 - core index']
  #allocation1 [shape = 'u32[72,128]{1,0:T(1,128)}', space=vmem, size = 0x9000, scoped, tag = 'internal scratch']
  %s0 = inlined_call_operand.vmem [shape: bf16[2,8,32,6], index: 0, kind: input, shape index: {}]
  %s1 = inlined_call_operand.vmem [shape: bf16[6,64], index: 1, kind: input, shape index: {}]
  %s2 = inlined_call_operand.hbm [shape: f32[1,64], index: 2, kind: input, shape index: {}]
  %s3 = inlined_call_operand.vmem [shape: bf16[64,128], index: 3, kind: input, shape index: {}]
  %s4 = inlined_call_operand.hbm [shape: f32[1,128], index: 4, kind: input, shape index: {}]
  %s5 = inlined_call_operand.vmem [shape: bf16[128,1024], index: 5, kind: input, shape index: {}]
  %s6 = inlined_call_operand.hbm [shape: f32[1,1024], index: 6, kind: input, shape index: {}]
  %s7 = inlined_call_operand.vmem [shape: f32[2,1,1024], index: 7, kind: output, shape index: {}]
  %s8 = sld [smem:[#allocation0]]
  $region85: #{transform_net_forward.2} parent=0
    _
  %s10 = ssub.s32 1, %s8
  %s11 = scalar_select 0, %s10, %s8
  $region1: #{transform_net_forward.2} parent=0
    #allocation2 [shape = 'u8[512]{0}', space=vmem, size = 0x400, scoped, tag = 'input window, operand 2, single buffered']
    #allocation3 [shape = 's32[2]{0}', space=sflag, size = 0x8, scoped, tag = 'scoped memory for transform_net_forward.2']
    #allocation4 [shape = 'u8[512]{0}', space=vmem, size = 0x400, scoped, tag = 'input window, operand 4, single buffered']
    #allocation5 [shape = 's32[1]{0}', space=sflag, size = 0x4, scoped, tag = 'scoped memory for transform_net_forward.2']
    #allocation6 [shape = 'u8[4096]{0}', space=vmem, size = 0x1000, scoped, tag = 'input window, operand 6, single buffered']
    %12 = vsyncpa [#allocation3], 0
    %13 = vsyncpa [#allocation5], 0
    loop: start=0, step=1, limit=4
    $region2: #{transform_net_forward.2} parent=1 // loop_pre_header
      _
    $region3: #{transform_net_forward.2} parent=1 // loop_header
      %s15 = sphi 0, %s19
      %p16 = scmp.ge.s32.totalorder %s15, 4
      %s22 = sphi 0, %s34
      %s23 = sphi 0, %s30
      %s24 = sphi 0, %s22
      %s25 = sphi 0, %s23
      %s26 = sphi 0, %s24
      %s27 = sphi 0, %s25
      %s39 = sphi 0, %s41
      %s42 = sphi 0, %s39
      %s43 = sphi 0, %s42
      %s59 = sphi 0, %s43
      %s63 = sphi 0, %s63
      %s65 = sphi 0, %s63
      %s66 = sphi 0, %s65
      %s80 = sphi 0, %s66
      %s84 = sphi 0, %s84
      %s86 = sphi 0, %s84
      %s87 = sphi 0, %s86
      %s101 = sphi 0, %s87
      %s105 = sphi 0, %s105
      %s107 = sphi 0, %s105
      %s108 = sphi 0, %s107
      %s122 = sphi 0, %s108
      %s126 = sphi 0, %s126
      %s128 = sphi 0, %s126
      %s129 = sphi 0, %s128
      %s143 = sphi 0, %s129
      %s147 = sphi 0, %s147
      %s149 = sphi 0, %s147
      %s150 = sphi 0, %s149
      %s164 = sphi 0, %s150
      %s168 = sphi 0, %s168
      %s170 = sphi 0, %s168
      %s171 = sphi 0, %s170
      %s185 = sphi 0, %s171
      %s191 = sphi 0, %s193
      %s194 = sphi 0, %s191
      %s195 = sphi 0, %s194
      %s211 = sphi 0, %s195
    $region4: #{transform_net_forward.2} parent=1 // loop_header_branch
      %18 = sbr.rel (%p16) target = $region8
    $region5: #{transform_net_forward.2} parent=1 // loop_body
      %s20 = ssub.s32 %s15, 1
      %s21 = ssub.s32 %s15, 2
      %s28 = sadd.s32 1, %s23
      %p29 = scmp.ge.s32.totalorder %s28, 1
      %s30 = scalar_select %p29, 0, %s28
      %s31 = sadd.s32 1, %s22
      %s32 = scalar_select %p29, %s31, %s22
      %p33 = scmp.ge.s32.totalorder %s32, 2
      %s34 = scalar_select %p33, 0, %s32
      %s35 = ssub.s32 %s22, %s34
      %s36 = ssub.s32 %s23, %s30
      %s37 = sor.u32 %s35, %s36
      %p38 = scmp.eq.s32.totalorder %s37, 0
      %s40 = sadd.s32 %s39, 1
      %s41 = scalar_select %p38, %s39, %s40
      %p44 = pneg %p38
      %p45 = scmp.eq.s32.totalorder %s15, 1
      %p46 = por %p44, %p45
      %p47 = scmp.ne.s32.totalorder %s39, %s42
      %p48 = scmp.eq.s32.totalorder %s15, 0
      %p49 = por %p47, %p48
      %p50 = scmp.ne.s32.totalorder %s39, %s42
      %p51 = scmp.eq.s32.totalorder %s20, 1
      %p52 = por %p50, %p51
      %p53 = scmp.ne.s32.totalorder %s42, %s43
      %p54 = scmp.eq.s32.totalorder %s20, 0
      %p55 = por %p53, %p54
      %p56 = scmp.ne.s32.totalorder %s42, %s43
      %p57 = scmp.eq.s32.totalorder %s21, 1
      %p58 = por %p56, %p57
      %p60 = scmp.ne.s32.totalorder %s43, %s59
      %p61 = scmp.eq.s32.totalorder %s21, 0
      %p62 = por %p60, %p61
      %s64 = sadd.s32 %s63, 1
      %p67 = scmp.eq.s32.totalorder %s15, 1
      %p68 = scmp.ne.s32.totalorder %s63, %s65
      %p69 = scmp.eq.s32.totalorder %s15, 0
      %p70 = por %p68, %p69
      %p71 = scmp.ne.s32.totalorder %s63, %s65
      %p72 = scmp.eq.s32.totalorder %s20, 1
      %p73 = por %p71, %p72
      %p74 = scmp.ne.s32.totalorder %s65, %s66
      %p75 = scmp.eq.s32.totalorder %s20, 0
      %p76 = por %p74, %p75
      %p77 = scmp.ne.s32.totalorder %s65, %s66
      %p78 = scmp.eq.s32.totalorder %s21, 1
      %p79 = por %p77, %p78
      %p81 = scmp.ne.s32.totalorder %s66, %s80
      %p82 = scmp.eq.s32.totalorder %s21, 0
      %p83 = por %p81, %p82
      %s85 = sadd.s32 %s84, 1
      %p88 = scmp.eq.s32.totalorder %s15, 1
      %p89 = scmp.ne.s32.totalorder %s84, %s86
      %p90 = scmp.eq.s32.totalorder %s15, 0
      %p91 = por %p89, %p90
      %p92 = scmp.ne.s32.totalorder %s84, %s86
      %p93 = scmp.eq.s32.totalorder %s20, 1
      %p94 = por %p92, %p93
      %p95 = scmp.ne.s32.totalorder %s86, %s87
      %p96 = scmp.eq.s32.totalorder %s20, 0
      %p97 = por %p95, %p96
      %p98 = scmp.ne.s32.totalorder %s86, %s87
      %p99 = scmp.eq.s32.totalorder %s21, 1
      %p100 = por %p98, %p99
      %p102 = scmp.ne.s32.totalorder %s87, %s101
      %p103 = scmp.eq.s32.totalorder %s21, 0
      %p104 = por %p102, %p103
      %s106 = sadd.s32 %s105, 1
      %p109 = scmp.eq.s32.totalorder %s15, 1
      %p110 = scmp.ne.s32.totalorder %s105, %s107
      %p111 = scmp.eq.s32.totalorder %s15, 0
      %p112 = por %p110, %p111
      %p113 = scmp.ne.s32.totalorder %s105, %s107
      %p114 = scmp.eq.s32.totalorder %s20, 1
      %p115 = por %p113, %p114
      %p116 = scmp.ne.s32.totalorder %s107, %s108
      %p117 = scmp.eq.s32.totalorder %s20, 0
      %p118 = por %p116, %p117
      %p119 = scmp.ne.s32.totalorder %s107, %s108
      %p120 = scmp.eq.s32.totalorder %s21, 1
      %p121 = por %p119, %p120
      %p123 = scmp.ne.s32.totalorder %s108, %s122
      %p124 = scmp.eq.s32.totalorder %s21, 0
      %p125 = por %p123, %p124
      %s127 = sadd.s32 %s126, 1
      %p130 = scmp.eq.s32.totalorder %s15, 1
      %p131 = scmp.ne.s32.totalorder %s126, %s128
      %p132 = scmp.eq.s32.totalorder %s15, 0
      %p133 = por %p131, %p132
      %p134 = scmp.ne.s32.totalorder %s126, %s128
      %p135 = scmp.eq.s32.totalorder %s20, 1
      %p136 = por %p134, %p135
      %p137 = scmp.ne.s32.totalorder %s128, %s129
      %p138 = scmp.eq.s32.totalorder %s20, 0
      %p139 = por %p137, %p138
      %p140 = scmp.ne.s32.totalorder %s128, %s129
      %p141 = scmp.eq.s32.totalorder %s21, 1
      %p142 = por %p140, %p141
      %p144 = scmp.ne.s32.totalorder %s129, %s143
      %p145 = scmp.eq.s32.totalorder %s21, 0
      %p146 = por %p144, %p145
      %s148 = sadd.s32 %s147, 1
      %p151 = scmp.eq.s32.totalorder %s15, 1
      %p152 = scmp.ne.s32.totalorder %s147, %s149
      %p153 = scmp.eq.s32.totalorder %s15, 0
      %p154 = por %p152, %p153
      %p155 = scmp.ne.s32.totalorder %s147, %s149
      %p156 = scmp.eq.s32.totalorder %s20, 1
      %p157 = por %p155, %p156
      %p158 = scmp.ne.s32.totalorder %s149, %s150
      %p159 = scmp.eq.s32.totalorder %s20, 0
      %p160 = por %p158, %p159
      %p161 = scmp.ne.s32.totalorder %s149, %s150
      %p162 = scmp.eq.s32.totalorder %s21, 1
      %p163 = por %p161, %p162
      %p165 = scmp.ne.s32.totalorder %s150, %s164
      %p166 = scmp.eq.s32.totalorder %s21, 0
      %p167 = por %p165, %p166
      %s169 = sadd.s32 %s168, 1
      %p172 = scmp.eq.s32.totalorder %s15, 1
      %p173 = scmp.ne.s32.totalorder %s168, %s170
      %p174 = scmp.eq.s32.totalorder %s15, 0
      %p175 = por %p173, %p174
      %p176 = scmp.ne.s32.totalorder %s168, %s170
      %p177 = scmp.eq.s32.totalorder %s20, 1
      %p178 = por %p176, %p177
      %p179 = scmp.ne.s32.totalorder %s170, %s171
      %p180 = scmp.eq.s32.totalorder %s20, 0
      %p181 = por %p179, %p180
      %p182 = scmp.ne.s32.totalorder %s170, %s171
      %p183 = scmp.eq.s32.totalorder %s21, 1
      %p184 = por %p182, %p183
      %p186 = scmp.ne.s32.totalorder %s171, %s185
      %p187 = scmp.eq.s32.totalorder %s21, 0
      %p188 = por %p186, %p187
      %s189 = ssub.s32 %s22, %s34
      %p190 = scmp.eq.s32.totalorder %s189, 0
      %s192 = sadd.s32 %s191, 1
      %s193 = scalar_select %p190, %s191, %s192
      %p196 = pneg %p190
      %p197 = scmp.eq.s32.totalorder %s15, 1
      %p198 = por %p196, %p197
      %p199 = scmp.ne.s32.totalorder %s191, %s194
      %p200 = scmp.eq.s32.totalorder %s15, 0
      %p201 = por %p199, %p200
      %p202 = scmp.ne.s32.totalorder %s191, %s194
      %p203 = scmp.eq.s32.totalorder %s20, 1
      %p204 = por %p202, %p203
      %p205 = scmp.ne.s32.totalorder %s194, %s195
      %p206 = scmp.eq.s32.totalorder %s20, 0
      %p207 = por %p205, %p206
      %p208 = scmp.ne.s32.totalorder %s194, %s195
      %p209 = scmp.eq.s32.totalorder %s21, 1
      %p210 = por %p208, %p209
      %p212 = scmp.ne.s32.totalorder %s195, %s211
      %p213 = scmp.eq.s32.totalorder %s21, 0
      %p214 = por %p212, %p213
      %p215 = scmp.le.s32.totalorder 1, %s15
      %p216 = scmp.lt.s32.totalorder %s15, 3
      %p217 = pnand %p215, %p216
      %p218 = pneg %p217
      // Predicated region
      $region9: #{transform_net_forward.2} parent=5 // pred_check
        _
      $region10: #{transform_net_forward.2} parent=5 // pred_check_branch
        %220 = sbr.rel (%p217) target = $region12
      $region11: #{transform_net_forward.2} parent=5 // pred_region
        %s221 = ssub.s32 %s15, 1
        // Predicated region
        $region13: #{transform_net_forward.2} parent=11 // pred_check
          %p222 = pneg %p76
        $region14: #{transform_net_forward.2} parent=11 // pred_check_branch
          %224 = sbr.rel (%p222) target = $region16
        $region15: #{transform_net_forward.2} parent=11 // pred_region
          _
        $region16: #{transform_net_forward.2} parent=11 // pred_fallthru
          _
        // Predicated region
        $region17: #{transform_net_forward.2} parent=11 // pred_check
          %p225 = pneg %p97
        $region18: #{transform_net_forward.2} parent=11 // pred_check_branch
          %227 = sbr.rel (%p225) target = $region20
        $region19: #{transform_net_forward.2} parent=11 // pred_region
          %229 = vsyncadd [#allocation3], 0
          %s231 = sshll.u32 %s2, 4
          %s232 = int_to_ptr.hbm [resolvable:$true] %s231
          %s233 = sshll.u32 [#allocation2], 4
          %s234 = int_to_ptr.vmem [resolvable:$true] %s233
          %236 = dma.hbm_to_vmem [thread:$0]  %s232, 16, %s234, [#allocation3]
        $region20: #{transform_net_forward.2} parent=11 // pred_fallthru
          _
        // Predicated region
        $region21: #{transform_net_forward.2} parent=11 // pred_check
          %p237 = pneg %p118
        $region22: #{transform_net_forward.2} parent=11 // pred_check_branch
          %239 = sbr.rel (%p237) target = $region24
        $region23: #{transform_net_forward.2} parent=11 // pred_region
          _
        $region24: #{transform_net_forward.2} parent=11 // pred_fallthru
          _
        // Predicated region
        $region25: #{transform_net_forward.2} parent=11 // pred_check
          %p240 = pneg %p139
        $region26: #{transform_net_forward.2} parent=11 // pred_check_branch
          %242 = sbr.rel (%p240) target = $region28
        $region27: #{transform_net_forward.2} parent=11 // pred_region
          %244 = vsyncadd [#allocation5], 0
          %s246 = sshll.u32 %s4, 4
          %s247 = int_to_ptr.hbm [resolvable:$true] %s246
          %s248 = sshll.u32 [#allocation4], 4
          %s249 = int_to_ptr.vmem [resolvable:$true] %s248
          %251 = dma.hbm_to_vmem [thread:$0]  %s247, 16, %s249, [#allocation5]
        $region28: #{transform_net_forward.2} parent=11 // pred_fallthru
          _
        // Predicated region
        $region29: #{transform_net_forward.2} parent=11 // pred_check
          %p252 = pneg %p160
        $region30: #{transform_net_forward.2} parent=11 // pred_check_branch
          %254 = sbr.rel (%p252) target = $region32
        $region31: #{transform_net_forward.2} parent=11 // pred_region
          _
        $region32: #{transform_net_forward.2} parent=11 // pred_fallthru
          _
        // Predicated region
        $region33: #{transform_net_forward.2} parent=11 // pred_check
          %p255 = pneg %p181
        $region34: #{transform_net_forward.2} parent=11 // pred_check_branch
          %257 = sbr.rel (%p255) target = $region36
        $region35: #{transform_net_forward.2} parent=11 // pred_region
          %259 = vsyncadd [#allocation5], 0
          %s261 = sshll.u32 %s6, 4
          %s262 = int_to_ptr.hbm [resolvable:$true] %s261
          %s263 = sshll.u32 [#allocation6], 4
          %s264 = int_to_ptr.vmem [resolvable:$true] %s263
          %266 = dma.hbm_to_vmem [thread:$0]  %s262, 128, %s264, [#allocation5]
        $region36: #{transform_net_forward.2} parent=11 // pred_fallthru
          _
      $region12: #{transform_net_forward.2} parent=5 // pred_fallthru
        _
      %p267 = scmp.lt.s32.totalorder %s15, 2
      // Predicated region
      $region37: #{transform_net_forward.2} parent=5 // pred_check
        %p268 = pneg %p267
      $region38: #{transform_net_forward.2} parent=5 // pred_check_branch
        %270 = sbr.rel (%p268) target = $region40
      $region39: #{transform_net_forward.2} parent=5 // pred_region
        // Predicated region
        $region41: #{transform_net_forward.2} parent=39 // pred_check
          %p271 = pneg %p49
        $region42: #{transform_net_forward.2} parent=39 // pred_check_branch
          %273 = sbr.rel (%p271) target = $region44
        $region43: #{transform_net_forward.2} parent=39 // pred_region
          %s274 = smul.u32 4, %s23
          %p275 = scmp.lt.s32.totalorder %s22, 1
          %s276 = scalar_select %p275, %s22, 1
          %p277 = scmp.lt.s32.totalorder %s274, 3
          %s278 = scalar_select %p277, %s274, 3
          %s279 = smul.addr %s276, 32
          %s280 = sadd.s32 %s278, %s279
          %s281 = smul.addr %s280, 4
          %s282 = scalar_lea.vmem %s0, %s281
          %s283 = smul.u32 4, %s23
        $region44: #{transform_net_forward.2} parent=39 // pred_fallthru
          _
      $region40: #{transform_net_forward.2} parent=5 // pred_fallthru
        _
      %p284 = scmp.le.s32.totalorder 1, %s15
      %p285 = scmp.lt.s32.totalorder %s15, 3
      %p286 = pnand %p284, %p285
      %p287 = pneg %p286
      // Predicated region
      $region45: #{transform_net_forward.2} parent=5 // pred_check
        _
      $region46: #{transform_net_forward.2} parent=5 // pred_check_branch
        %289 = sbr.rel (%p286) target = $region48
      $region47: #{transform_net_forward.2} parent=5 // pred_region
        %s290 = ssub.s32 %s15, 1
        // Predicated region
        $region49: #{transform_net_forward.2} parent=47 // pred_check
          %p291 = pneg %p97
        $region50: #{transform_net_forward.2} parent=47 // pred_check_branch
          %293 = sbr.rel (%p291) target = $region52
        $region51: #{transform_net_forward.2} parent=47 // pred_region
          %295 = dma.done [#allocation3], 16
        $region52: #{transform_net_forward.2} parent=47 // pred_fallthru
          _
        // Predicated region
        $region53: #{transform_net_forward.2} parent=47 // pred_check
          %p296 = pneg %p139
        $region54: #{transform_net_forward.2} parent=47 // pred_check_branch
          %298 = sbr.rel (%p296) target = $region56
        $region55: #{transform_net_forward.2} parent=47 // pred_region
          %300 = dma.done [#allocation5], 16
        $region56: #{transform_net_forward.2} parent=47 // pred_fallthru
          _
        // Predicated region
        $region57: #{transform_net_forward.2} parent=47 // pred_check
          %p301 = pneg %p181
        $region58: #{transform_net_forward.2} parent=47 // pred_check_branch
          %303 = sbr.rel (%p301) target = $region60
        $region59: #{transform_net_forward.2} parent=47 // pred_region
          %305 = dma.done [#allocation5], 128
        $region60: #{transform_net_forward.2} parent=47 // pred_fallthru
          _
        %s306 = smul.u32 4, %s25
        %p307 = scmp.lt.s32.totalorder %s24, 1
        %s308 = scalar_select %p307, %s24, 1
        %p309 = scmp.lt.s32.totalorder %s306, 3
        %s310 = scalar_select %p309, %s306, 3
        %s311 = smul.addr %s308, 32
        %s312 = sadd.s32 %s310, %s311
        %s313 = smul.addr %s312, 4
        %s314 = scalar_lea.vmem %s0, %s313
        %p315 = pneg %p55
        %p316 = pneg %p52
        %p317 = pneg %p76
        %p318 = pneg %p73
        %p319 = pneg %p97
        %p320 = pneg %p94
        %p321 = pneg %p118
        %p322 = pneg %p115
        %p323 = pneg %p139
        %p324 = pneg %p136
        %p325 = pneg %p160
        %p326 = pneg %p157
        %p327 = pneg %p181
        %p328 = pneg %p178
        %p329 = pneg %p207
        %p330 = pneg %p204
        %p331 = scmp.lt.s32.totalorder %s24, 1
        %s332 = scalar_select %p331, %s24, 1
        %s333 = smul.addr %s332, 8
        %s334 = scalar_lea.vmem %s7, %s333
        %s335 = smul.u32 4, %s25
        %p336 = scmp.lt.s32.totalorder %s24, 1
        %s337 = scalar_select %p336, %s24, 1
        %p338 = scmp.lt.s32.totalorder %s335, 3
        %s339 = scalar_select %p338, %s335, 3
        %s340 = smul.addr %s337, 32
        %s341 = sadd.s32 %s339, %s340
        %s342 = smul.addr %s341, 4
        %s343 = scalar_lea.vmem %s0, %s342
        %s344 = smul.u32 4, %s25
        %p345 = scmp.lt.s32.totalorder %s24, 1
        %s346 = scalar_select %p345, %s24, 1
        %s347 = smul.addr %s346, 8
        %s348 = scalar_lea.vmem %s7, %s347
        %p350 = scmp.eq.s32.totalorder %s25, 0
        // Predicated region
        $region61: #{transform_net_forward.2} parent=47 // pred_check
          %p351 = pneg %p350
        $region62: #{transform_net_forward.2} parent=47 // pred_check_branch
          %353 = sbr.rel (%p351) target = $region64
        $region63: #{transform_net_forward.2} parent=47 // pred_region
          %354 = vst [vmem:[%s348] sm:$0xff] -inf
        $region64: #{transform_net_forward.2} parent=47 // pred_fallthru
          _
        %v355 = vld [vmem:[%s343] sm:$0xf]
        %v356 = vld [vmem:[%s343 + $0x4] sm:$0xf]
        %v357 = vld [vmem:[%s343 + $0x8] sm:$0xf]
        %v358 = vld [vmem:[%s343 + $0xc] sm:$0xf]
        %v359 = vld [vmem:[%s343 + $0x10] sm:$0xf]
        %v360 = vld [vmem:[%s343 + $0x14] sm:$0xf]
        %v361 = vld [vmem:[%s343 + $0x18] sm:$0xf]
        %v362 = vld [vmem:[%s343 + $0x1c] sm:$0xf]
        %v363 = vld [vmem:[%s343 + $0x20] sm:$0xf]
        %v364 = vld [vmem:[%s343 + $0x24] sm:$0xf]
        %v365 = vld [vmem:[%s343 + $0x28] sm:$0xf]
        %v366 = vld [vmem:[%s343 + $0x2c] sm:$0xf]
        %v367 = vld [vmem:[%s343 + $0x30] sm:$0xf]
        %v368 = vld [vmem:[%s343 + $0x34] sm:$0xf]
        %v369 = vld [vmem:[%s343 + $0x38] sm:$0xf]
        %v370 = vld [vmem:[%s343 + $0x3c] sm:$0xf]
        %v371 = vld [vmem:[%s343 + $0x40] sm:$0xf]
        %v372 = vld [vmem:[%s343 + $0x44] sm:$0xf]
        %v373 = vld [vmem:[%s343 + $0x48] sm:$0xf]
        %v374 = vld [vmem:[%s343 + $0x4c] sm:$0xf]
        %v375 = vld [vmem:[%s343 + $0x50] sm:$0xf]
        %v376 = vld [vmem:[%s343 + $0x54] sm:$0xf]
        %v377 = vld [vmem:[%s343 + $0x58] sm:$0xf]
        %v378 = vld [vmem:[%s343 + $0x5c] sm:$0xf]
        %v379 = vld [vmem:[%s343 + $0x60] sm:$0xf]
        %v380 = vld [vmem:[%s343 + $0x64] sm:$0xf]
        %v381 = vld [vmem:[%s343 + $0x68] sm:$0xf]
        %v382 = vld [vmem:[%s343 + $0x6c] sm:$0xf]
        %v383 = vld [vmem:[%s343 + $0x70] sm:$0xf]
        %v384 = vld [vmem:[%s343 + $0x74] sm:$0xf]
        %v385 = vld [vmem:[%s343 + $0x78] sm:$0xf]
        %v386 = vld [vmem:[%s343 + $0x7c] sm:$0xf]
        %v387 = vld [vmem:[%s1] sm:$0x7]
        %v388 = vld [vmem:[#allocation2] sm:$0x1]
        %v390 = vperm.slane %v388, 0
        %v424 = vunpack.c.l.b16 %v355
        %v425 = vunpack.c.l.b16 %v356
        %v426 = vunpack.c.l.b16 %v357
        %v427 = vunpack.c.l.b16 %v358
        %v428 = vunpack.c.l.b16 %v359
        %v429 = vunpack.c.l.b16 %v360
        %v430 = vunpack.c.l.b16 %v361
        %v431 = vunpack.c.l.b16 %v362
        %v432 = vunpack.c.l.b16 %v363
        %v433 = vunpack.c.l.b16 %v364
        %v434 = vunpack.c.l.b16 %v365
        %v435 = vunpack.c.l.b16 %v366
        %v436 = vunpack.c.l.b16 %v367
        %v437 = vunpack.c.l.b16 %v368
        %v438 = vunpack.c.l.b16 %v369
        %v439 = vunpack.c.l.b16 %v370
        %v440 = vunpack.c.l.b16 %v371
        %v441 = vunpack.c.l.b16 %v372
        %v442 = vunpack.c.l.b16 %v373
        %v443 = vunpack.c.l.b16 %v374
        %v444 = vunpack.c.l.b16 %v375
        %v445 = vunpack.c.l.b16 %v376
        %v446 = vunpack.c.l.b16 %v377
        %v447 = vunpack.c.l.b16 %v378
        %v448 = vunpack.c.l.b16 %v379
        %v449 = vunpack.c.l.b16 %v380
        %v450 = vunpack.c.l.b16 %v381
        %v451 = vunpack.c.l.b16 %v382
        %v452 = vunpack.c.l.b16 %v383
        %v453 = vunpack.c.l.b16 %v384
        %v454 = vunpack.c.l.b16 %v385
        %v455 = vunpack.c.l.b16 %v386
        %v456 = vpack.c.b16 %v425, %v424
        %v457 = vpack.c.b16 %v427, %v426
        %v458 = vpack.c.b16 %v429, %v428
        %v459 = vpack.c.b16 %v431, %v430
        %v460 = vpack.c.b16 %v433, %v432
        %v461 = vpack.c.b16 %v435, %v434
        %v462 = vpack.c.b16 %v437, %v436
        %v463 = vpack.c.b16 %v439, %v438
        %v464 = vpack.c.b16 %v441, %v440
        %v465 = vpack.c.b16 %v443, %v442
        %v466 = vpack.c.b16 %v445, %v444
        %v467 = vpack.c.b16 %v447, %v446
        %v468 = vpack.c.b16 %v449, %v448
        %v469 = vpack.c.b16 %v451, %v450
        %v470 = vpack.c.b16 %v453, %v452
        %v471 = vpack.c.b16 %v455, %v454
        %vm472 = vcmask 48128
        %v474 = vsel %vm472, %v456, 0
        %v477 = vsel %vm472, %v457, 0
        %v480 = vsel %vm472, %v458, 0
        %v483 = vsel %vm472, %v459, 0
        %v486 = vsel %vm472, %v460, 0
        %v489 = vsel %vm472, %v461, 0
        %v492 = vsel %vm472, %v462, 0
        %v495 = vsel %vm472, %v463, 0
        %v498 = vsel %vm472, %v464, 0
        %v501 = vsel %vm472, %v465, 0
        %v504 = vsel %vm472, %v466, 0
        %v507 = vsel %vm472, %v467, 0
        %v510 = vsel %vm472, %v468, 0
        %v513 = vsel %vm472, %v469, 0
        %v516 = vsel %vm472, %v470, 0
        %v519 = vsel %vm472, %v471, 0
        %vm521 = vcmask 1042432
        %v523 = vsel %vm521, %v387, 0
        %525 = vmatpush.bf16.msra.mxu0 0
        %526 = vmatpush.bf16.msra.mxu0 0
        %527 = vmatpush.bf16.msra.mxu0 0
        %528 = vmatpush.bf16.msra.mxu0 0
        %529 = vmatpush.bf16.msra.mxu0 0
        %530 = vmatpush.bf16.msra.mxu0 0
        %531 = vmatpush.bf16.msra.mxu0 0
        %532 = vmatpush.bf16.msra.mxu0 %v523
        %533 = vmatmul.bf16.gmra.mxu0 %v474
        %v534 = vpop.f32.mrf.mxu0
        %v535 = vadd.f32 %v390, %v534
        %v536 = vpop.f32.mrf.mxu0
        %v537 = vadd.f32 %v390, %v536
        %538 = vmatmul.bf16.gmra.mxu0 %v477
        %v539 = vpop.f32.mrf.mxu0
        %v540 = vadd.f32 %v390, %v539
        %v541 = vpop.f32.mrf.mxu0
        %v542 = vadd.f32 %v390, %v541
        %543 = vmatmul.bf16.gmra.mxu0 %v480
        %v544 = vpop.f32.mrf.mxu0
        %v545 = vadd.f32 %v390, %v544
        %v546 = vpop.f32.mrf.mxu0
        %v547 = vadd.f32 %v390, %v546
        %548 = vmatmul.bf16.gmra.mxu0 %v483
        %v549 = vpop.f32.mrf.mxu0
        %v550 = vadd.f32 %v390, %v549
        %v551 = vpop.f32.mrf.mxu0
        %v552 = vadd.f32 %v390, %v551
        %553 = vmatmul.bf16.gmra.mxu0 %v486
        %v554 = vpop.f32.mrf.mxu0
        %v555 = vadd.f32 %v390, %v554
        %v556 = vpop.f32.mrf.mxu0
        %v557 = vadd.f32 %v390, %v556
        %558 = vmatmul.bf16.gmra.mxu0 %v489
        %v559 = vpop.f32.mrf.mxu0
        %v560 = vadd.f32 %v390, %v559
        %v561 = vpop.f32.mrf.mxu0
        %v562 = vadd.f32 %v390, %v561
        %563 = vmatmul.bf16.gmra.mxu0 %v492
        %v564 = vpop.f32.mrf.mxu0
        %v565 = vadd.f32 %v390, %v564
        %v566 = vpop.f32.mrf.mxu0
        %v567 = vadd.f32 %v390, %v566
        %568 = vmatmul.bf16.gmra.mxu0 %v495
        %v569 = vpop.f32.mrf.mxu0
        %v570 = vadd.f32 %v390, %v569
        %v571 = vpop.f32.mrf.mxu0
        %v572 = vadd.f32 %v390, %v571
        %573 = vmatmul.bf16.gmra.mxu0 %v498
        %v574 = vpop.f32.mrf.mxu0
        %v575 = vadd.f32 %v390, %v574
        %v576 = vpop.f32.mrf.mxu0
        %v577 = vadd.f32 %v390, %v576
        %578 = vmatmul.bf16.gmra.mxu0 %v501
        %v579 = vpop.f32.mrf.mxu0
        %v580 = vadd.f32 %v390, %v579
        %v581 = vpop.f32.mrf.mxu0
        %v582 = vadd.f32 %v390, %v581
        %583 = vmatmul.bf16.gmra.mxu0 %v504
        %v584 = vpop.f32.mrf.mxu0
        %v585 = vadd.f32 %v390, %v584
        %v586 = vpop.f32.mrf.mxu0
        %v587 = vadd.f32 %v390, %v586
        %588 = vmatmul.bf16.gmra.mxu0 %v507
        %v589 = vpop.f32.mrf.mxu0
        %v590 = vadd.f32 %v390, %v589
        %v591 = vpop.f32.mrf.mxu0
        %v592 = vadd.f32 %v390, %v591
        %593 = vmatmul.bf16.gmra.mxu0 %v510
        %v594 = vpop.f32.mrf.mxu0
        %v595 = vadd.f32 %v390, %v594
        %v596 = vpop.f32.mrf.mxu0
        %v597 = vadd.f32 %v390, %v596
        %598 = vmatmul.bf16.gmra.mxu0 %v513
        %v599 = vpop.f32.mrf.mxu0
        %v600 = vadd.f32 %v390, %v599
        %v601 = vpop.f32.mrf.mxu0
        %v602 = vadd.f32 %v390, %v601
        %603 = vmatmul.bf16.gmra.mxu0 %v516
        %v604 = vpop.f32.mrf.mxu0
        %v605 = vadd.f32 %v390, %v604
        %v606 = vpop.f32.mrf.mxu0
        %v607 = vadd.f32 %v390, %v606
        %608 = vmatmul.bf16.gmra.mxu0 %v519
        %v609 = vpop.f32.mrf.mxu0
        %v610 = vadd.f32 %v390, %v609
        %v611 = vpop.f32.mrf.mxu0
        %v612 = vadd.f32 %v390, %v611
        %613 = vdwg.mxu0
        %vm614 = vcmp.gt.f32.partialorder %v535, 0.0
        %vm615 = vcmp.gt.f32.partialorder %v537, 0.0
        %vm616 = vcmp.gt.f32.partialorder %v540, 0.0
        %vm617 = vcmp.gt.f32.partialorder %v542, 0.0
        %vm618 = vcmp.gt.f32.partialorder %v545, 0.0
        %vm619 = vcmp.gt.f32.partialorder %v547, 0.0
        %vm620 = vcmp.gt.f32.partialorder %v550, 0.0
        %vm621 = vcmp.gt.f32.partialorder %v552, 0.0
        %vm622 = vcmp.gt.f32.partialorder %v555, 0.0
        %vm623 = vcmp.gt.f32.partialorder %v557, 0.0
        %vm624 = vcmp.gt.f32.partialorder %v560, 0.0
        %vm625 = vcmp.gt.f32.partialorder %v562, 0.0
        %vm626 = vcmp.gt.f32.partialorder %v565, 0.0
        %vm627 = vcmp.gt.f32.partialorder %v567, 0.0
        %vm628 = vcmp.gt.f32.partialorder %v570, 0.0
        %vm629 = vcmp.gt.f32.partialorder %v572, 0.0
        %vm630 = vcmp.gt.f32.partialorder %v575, 0.0
        %vm631 = vcmp.gt.f32.partialorder %v577, 0.0
        %vm632 = vcmp.gt.f32.partialorder %v580, 0.0
        %vm633 = vcmp.gt.f32.partialorder %v582, 0.0
        %vm634 = vcmp.gt.f32.partialorder %v585, 0.0
        %vm635 = vcmp.gt.f32.partialorder %v587, 0.0
        %vm636 = vcmp.gt.f32.partialorder %v590, 0.0
        %vm637 = vcmp.gt.f32.partialorder %v592, 0.0
        %vm638 = vcmp.gt.f32.partialorder %v595, 0.0
        %vm639 = vcmp.gt.f32.partialorder %v597, 0.0
        %vm640 = vcmp.gt.f32.partialorder %v600, 0.0
        %vm641 = vcmp.gt.f32.partialorder %v602, 0.0
        %vm642 = vcmp.gt.f32.partialorder %v605, 0.0
        %vm643 = vcmp.gt.f32.partialorder %v607, 0.0
        %vm644 = vcmp.gt.f32.partialorder %v610, 0.0
        %vm645 = vcmp.gt.f32.partialorder %v612, 0.0
        %v646 = vmul.f32 %v535, 0.2
        %v647 = vmul.f32 %v537, 0.2
        %v648 = vmul.f32 %v540, 0.2
        %v649 = vmul.f32 %v542, 0.2
        %v650 = vmul.f32 %v545, 0.2
        %v651 = vmul.f32 %v547, 0.2
        %v652 = vmul.f32 %v550, 0.2
        %v653 = vmul.f32 %v552, 0.2
        %v654 = vmul.f32 %v555, 0.2
        %v655 = vmul.f32 %v557, 0.2
        %v656 = vmul.f32 %v560, 0.2
        %v657 = vmul.f32 %v562, 0.2
        %v658 = vmul.f32 %v565, 0.2
        %v659 = vmul.f32 %v567, 0.2
        %v660 = vmul.f32 %v570, 0.2
        %v661 = vmul.f32 %v572, 0.2
        %v662 = vmul.f32 %v575, 0.2
        %v663 = vmul.f32 %v577, 0.2
        %v664 = vmul.f32 %v580, 0.2
        %v665 = vmul.f32 %v582, 0.2
        %v666 = vmul.f32 %v585, 0.2
        %v667 = vmul.f32 %v587, 0.2
        %v668 = vmul.f32 %v590, 0.2
        %v669 = vmul.f32 %v592, 0.2
        %v670 = vmul.f32 %v595, 0.2
        %v671 = vmul.f32 %v597, 0.2
        %v672 = vmul.f32 %v600, 0.2
        %v673 = vmul.f32 %v602, 0.2
        %v674 = vmul.f32 %v605, 0.2
        %v675 = vmul.f32 %v607, 0.2
        %v676 = vmul.f32 %v610, 0.2
        %v677 = vmul.f32 %v612, 0.2
        %v678 = vsel %vm614, %v535, %v646
        %v679 = vsel %vm615, %v537, %v647
        %v680 = vsel %vm616, %v540, %v648
        %v681 = vsel %vm617, %v542, %v649
        %v682 = vsel %vm618, %v545, %v650
        %v683 = vsel %vm619, %v547, %v651
        %v684 = vsel %vm620, %v550, %v652
        %v685 = vsel %vm621, %v552, %v653
        %v686 = vsel %vm622, %v555, %v654
        %v687 = vsel %vm623, %v557, %v655
        %v688 = vsel %vm624, %v560, %v656
        %v689 = vsel %vm625, %v562, %v657
        %v690 = vsel %vm626, %v565, %v658
        %v691 = vsel %vm627, %v567, %v659
        %v692 = vsel %vm628, %v570, %v660
        %v693 = vsel %vm629, %v572, %v661
        %v694 = vsel %vm630, %v575, %v662
        %v695 = vsel %vm631, %v577, %v663
        %v696 = vsel %vm632, %v580, %v664
        %v697 = vsel %vm633, %v582, %v665
        %v698 = vsel %vm634, %v585, %v666
        %v699 = vsel %vm635, %v587, %v667
        %v700 = vsel %vm636, %v590, %v668
        %v701 = vsel %vm637, %v592, %v669
        %v702 = vsel %vm638, %v595, %v670
        %v703 = vsel %vm639, %v597, %v671
        %v704 = vsel %vm640, %v600, %v672
        %v705 = vsel %vm641, %v602, %v673
        %v706 = vsel %vm642, %v605, %v674
        %v707 = vsel %vm643, %v607, %v675
        %v708 = vsel %vm644, %v610, %v676
        %v709 = vsel %vm645, %v612, %v677
        %v710 = vpack.c.bf16 %v679, %v678
        %v711 = vpack.c.bf16 %v681, %v680
        %v712 = vpack.c.bf16 %v683, %v682
        %v713 = vpack.c.bf16 %v685, %v684
        %v714 = vpack.c.bf16 %v687, %v686
        %v715 = vpack.c.bf16 %v689, %v688
        %v716 = vpack.c.bf16 %v691, %v690
        %v717 = vpack.c.bf16 %v693, %v692
        %v718 = vpack.c.bf16 %v695, %v694
        %v719 = vpack.c.bf16 %v697, %v696
        %v720 = vpack.c.bf16 %v699, %v698
        %v721 = vpack.c.bf16 %v701, %v700
        %v722 = vpack.c.bf16 %v703, %v702
        %v723 = vpack.c.bf16 %v705, %v704
        %v724 = vpack.c.bf16 %v707, %v706
        %v725 = vpack.c.bf16 %v709, %v708
        %v726 = vld [vmem:[%s3] sm:$0xf]
        %v727 = vld [vmem:[%s3 + $0x4] sm:$0xf]
        %v728 = vld [vmem:[%s3 + $0x8] sm:$0xf]
        %v729 = vld [vmem:[%s3 + $0xc] sm:$0xf]
        %v730 = vld [vmem:[%s3 + $0x10] sm:$0xf]
        %v731 = vld [vmem:[%s3 + $0x14] sm:$0xf]
        %v732 = vld [vmem:[%s3 + $0x18] sm:$0xf]
        %v733 = vld [vmem:[%s3 + $0x1c] sm:$0xf]
        %v742 = vunpack.c.l.b16 %v726
        %v743 = vunpack.c.l.b16 %v727
        %v744 = vunpack.c.l.b16 %v728
        %v745 = vunpack.c.l.b16 %v729
        %v746 = vunpack.c.l.b16 %v730
        %v747 = vunpack.c.l.b16 %v731
        %v748 = vunpack.c.l.b16 %v732
        %v749 = vunpack.c.l.b16 %v733
        %v750 = vpack.c.b16 %v743, %v742
        %v751 = vpack.c.b16 %v745, %v744
        %v752 = vpack.c.b16 %v747, %v746
        %v753 = vpack.c.b16 %v749, %v748
        %vm758 = vcmask 523264
        %v760 = vsel %vm758, %v710, 0
        %v763 = vsel %vm758, %v711, 0
        %v766 = vsel %vm758, %v712, 0
        %v769 = vsel %vm758, %v713, 0
        %v772 = vsel %vm758, %v714, 0
        %v775 = vsel %vm758, %v715, 0
        %v778 = vsel %vm758, %v716, 0
        %v781 = vsel %vm758, %v717, 0
        %v784 = vsel %vm758, %v718, 0
        %v787 = vsel %vm758, %v719, 0
        %v790 = vsel %vm758, %v720, 0
        %v793 = vsel %vm758, %v721, 0
        %v796 = vsel %vm758, %v722, 0
        %v799 = vsel %vm758, %v723, 0
        %v802 = vsel %vm758, %v724, 0
        %v805 = vsel %vm758, %v725, 0
        %807 = vmatpush.bf16.msra.mxu0 0
        %808 = vmatpush.bf16.msra.mxu0 0
        %809 = vmatpush.bf16.msra.mxu0 0
        %810 = vmatpush.bf16.msra.mxu0 0
        %811 = vmatpush.bf16.msra.mxu0 %v753
        %812 = vmatpush.bf16.msra.mxu0 %v752
        %813 = vmatpush.bf16.msra.mxu0 %v751
        %814 = vmatpush.bf16.msra.mxu0 %v750
        %815 = vmatmul.bf16.gmra.mxu0 %v760
        %v816 = vpop.f32.mrf.mxu0
        %v817 = vadd.f32 0.0, %v816
        %v818 = vpop.f32.mrf.mxu0
        %v819 = vadd.f32 0.0, %v818
        %820 = vmatmul.bf16.gmra.mxu0 %v763
        %v821 = vpop.f32.mrf.mxu0
        %v822 = vadd.f32 0.0, %v821
        %v823 = vpop.f32.mrf.mxu0
        %v824 = vadd.f32 0.0, %v823
        %825 = vmatmul.bf16.gmra.mxu0 %v766
        %v826 = vpop.f32.mrf.mxu0
        %v827 = vadd.f32 0.0, %v826
        %v828 = vpop.f32.mrf.mxu0
        %v829 = vadd.f32 0.0, %v828
        %830 = vmatmul.bf16.gmra.mxu0 %v769
        %v831 = vpop.f32.mrf.mxu0
        %v832 = vadd.f32 0.0, %v831
        %v833 = vpop.f32.mrf.mxu0
        %v834 = vadd.f32 0.0, %v833
        %835 = vmatmul.bf16.gmra.mxu0 %v772
        %v836 = vpop.f32.mrf.mxu0
        %v837 = vadd.f32 0.0, %v836
        %v838 = vpop.f32.mrf.mxu0
        %v839 = vadd.f32 0.0, %v838
        %840 = vmatmul.bf16.gmra.mxu0 %v775
        %v841 = vpop.f32.mrf.mxu0
        %v842 = vadd.f32 0.0, %v841
        %v843 = vpop.f32.mrf.mxu0
        %v844 = vadd.f32 0.0, %v843
        %845 = vmatmul.bf16.gmra.mxu0 %v778
        %v846 = vpop.f32.mrf.mxu0
        %v847 = vadd.f32 0.0, %v846
        %v848 = vpop.f32.mrf.mxu0
        %v849 = vadd.f32 0.0, %v848
        %850 = vmatmul.bf16.gmra.mxu0 %v781
        %v851 = vpop.f32.mrf.mxu0
        %v852 = vadd.f32 0.0, %v851
        %v853 = vpop.f32.mrf.mxu0
        %v854 = vadd.f32 0.0, %v853
        %855 = vmatmul.bf16.gmra.mxu0 %v784
        %v856 = vpop.f32.mrf.mxu0
        %v857 = vadd.f32 0.0, %v856
        %v858 = vpop.f32.mrf.mxu0
        %v859 = vadd.f32 0.0, %v858
        %860 = vmatmul.bf16.gmra.mxu0 %v787
        %v861 = vpop.f32.mrf.mxu0
        %v862 = vadd.f32 0.0, %v861
        %v863 = vpop.f32.mrf.mxu0
        %v864 = vadd.f32 0.0, %v863
        %865 = vmatmul.bf16.gmra.mxu0 %v790
        %v866 = vpop.f32.mrf.mxu0
        %v867 = vadd.f32 0.0, %v866
        %v868 = vpop.f32.mrf.mxu0
        %v869 = vadd.f32 0.0, %v868
        %870 = vmatmul.bf16.gmra.mxu0 %v793
        %v871 = vpop.f32.mrf.mxu0
        %v872 = vadd.f32 0.0, %v871
        %v873 = vpop.f32.mrf.mxu0
        %v874 = vadd.f32 0.0, %v873
        %875 = vmatmul.bf16.gmra.mxu0 %v796
        %v876 = vpop.f32.mrf.mxu0
        %v877 = vadd.f32 0.0, %v876
        %v878 = vpop.f32.mrf.mxu0
        %v879 = vadd.f32 0.0, %v878
        %880 = vmatmul.bf16.gmra.mxu0 %v799
        %v881 = vpop.f32.mrf.mxu0
        %v882 = vadd.f32 0.0, %v881
        %v883 = vpop.f32.mrf.mxu0
        %v884 = vadd.f32 0.0, %v883
        %885 = vmatmul.bf16.gmra.mxu0 %v802
        %v886 = vpop.f32.mrf.mxu0
        %v887 = vadd.f32 0.0, %v886
        %v888 = vpop.f32.mrf.mxu0
        %v889 = vadd.f32 0.0, %v888
        %890 = vmatmul.bf16.gmra.mxu0 %v805
        %v891 = vpop.f32.mrf.mxu0
        %v892 = vadd.f32 0.0, %v891
        %v893 = vpop.f32.mrf.mxu0
        %v894 = vadd.f32 0.0, %v893
        %895 = vdwg.mxu0
        %v896 = vmax.f32 %v817, %v827
        %v897 = vmax.f32 %v819, %v829
        %v898 = vmax.f32 %v822, %v832
        %v899 = vmax.f32 %v824, %v834
        %v900 = vmax.f32 %v896, %v837
        %v901 = vmax.f32 %v897, %v839
        %v902 = vmax.f32 %v898, %v842
        %v903 = vmax.f32 %v899, %v844
        %v904 = vmax.f32 %v900, %v847
        %v905 = vmax.f32 %v901, %v849
        %v906 = vmax.f32 %v902, %v852
        %v907 = vmax.f32 %v903, %v854
        %v908 = vmax.f32 %v904, %v857
        %v909 = vmax.f32 %v905, %v859
        %v910 = vmax.f32 %v906, %v862
        %v911 = vmax.f32 %v907, %v864
        %v912 = vmax.f32 %v908, %v867
        %v913 = vmax.f32 %v909, %v869
        %v914 = vmax.f32 %v910, %v872
        %v915 = vmax.f32 %v911, %v874
        %v916 = vmax.f32 %v912, %v877
        %v917 = vmax.f32 %v913, %v879
        %v918 = vmax.f32 %v914, %v882
        %v919 = vmax.f32 %v915, %v884
        %v920 = vmax.f32 %v916, %v887
        %v921 = vmax.f32 %v917, %v889
        %v922 = vmax.f32 %v918, %v892
        %v923 = vmax.f32 %v919, %v894
        %v924 = vld [vmem:[#allocation4] sm:$0x1]
        %v926 = vperm.slane %v924, 0
        %v928 = vadd.f32 %v920, %v926
        %v929 = vadd.f32 %v921, %v926
        %v930 = vadd.f32 %v922, %v926
        %v931 = vadd.f32 %v923, %v926
        %vm932 = vcmp.gt.f32.partialorder %v928, 0.0
        %vm933 = vcmp.gt.f32.partialorder %v929, 0.0
        %vm934 = vcmp.gt.f32.partialorder %v930, 0.0
        %vm935 = vcmp.gt.f32.partialorder %v931, 0.0
        %v936 = vmul.f32 %v928, 0.2
        %v937 = vmul.f32 %v929, 0.2
        %v938 = vmul.f32 %v930, 0.2
        %v939 = vmul.f32 %v931, 0.2
        %v940 = vsel %vm932, %v928, %v936
        %v941 = vsel %vm933, %v929, %v937
        %v942 = vsel %vm934, %v930, %v938
        %v943 = vsel %vm935, %v931, %v939
        %v944 = vpack.c.bf16 %v941, %v940
        %v945 = vpack.c.bf16 %v943, %v942
        %v946 = vld [vmem:[%s5] sm:$0xff]
        %v947 = vld [vmem:[%s5 + $0x8] sm:$0xff]
        %v948 = vld [vmem:[%s5 + $0x10] sm:$0xff]
        %v949 = vld [vmem:[%s5 + $0x18] sm:$0xff]
        %v950 = vld [vmem:[%s5 + $0x20] sm:$0xff]
        %v951 = vld [vmem:[%s5 + $0x28] sm:$0xff]
        %v952 = vld [vmem:[%s5 + $0x30] sm:$0xff]
        %v953 = vld [vmem:[%s5 + $0x38] sm:$0xff]
        %v954 = vld [vmem:[%s5 + $0x40] sm:$0xff]
        %v955 = vld [vmem:[%s5 + $0x48] sm:$0xff]
        %v956 = vld [vmem:[%s5 + $0x50] sm:$0xff]
        %v957 = vld [vmem:[%s5 + $0x58] sm:$0xff]
        %v958 = vld [vmem:[%s5 + $0x60] sm:$0xff]
        %v959 = vld [vmem:[%s5 + $0x68] sm:$0xff]
        %v960 = vld [vmem:[%s5 + $0x70] sm:$0xff]
        %v961 = vld [vmem:[%s5 + $0x78] sm:$0xff]
        %v962 = vld [vmem:[%s5 + $0x80] sm:$0xff]
        %v963 = vld [vmem:[%s5 + $0x88] sm:$0xff]
        %v964 = vld [vmem:[%s5 + $0x90] sm:$0xff]
        %v965 = vld [vmem:[%s5 + $0x98] sm:$0xff]
        %v966 = vld [vmem:[%s5 + $0xa0] sm:$0xff]
        %v967 = vld [vmem:[%s5 + $0xa8] sm:$0xff]
        %v968 = vld [vmem:[%s5 + $0xb0] sm:$0xff]
        %v969 = vld [vmem:[%s5 + $0xb8] sm:$0xff]
        %v970 = vld [vmem:[%s5 + $0xc0] sm:$0xff]
        %v971 = vld [vmem:[%s5 + $0xc8] sm:$0xff]
        %v972 = vld [vmem:[%s5 + $0xd0] sm:$0xff]
        %v973 = vld [vmem:[%s5 + $0xd8] sm:$0xff]
        %v974 = vld [vmem:[%s5 + $0xe0] sm:$0xff]
        %v975 = vld [vmem:[%s5 + $0xe8] sm:$0xff]
        %v976 = vld [vmem:[%s5 + $0xf0] sm:$0xff]
        %v977 = vld [vmem:[%s5 + $0xf8] sm:$0xff]
        %v978 = vld [vmem:[%s5 + $0x100] sm:$0xff]
        %v979 = vld [vmem:[%s5 + $0x108] sm:$0xff]
        %v980 = vld [vmem:[%s5 + $0x110] sm:$0xff]
        %v981 = vld [vmem:[%s5 + $0x118] sm:$0xff]
        %v982 = vld [vmem:[%s5 + $0x120] sm:$0xff]
        %v983 = vld [vmem:[%s5 + $0x128] sm:$0xff]
        %v984 = vld [vmem:[%s5 + $0x130] sm:$0xff]
        %v985 = vld [vmem:[%s5 + $0x138] sm:$0xff]
        %v986 = vld [vmem:[%s5 + $0x140] sm:$0xff]
        %v987 = vld [vmem:[%s5 + $0x148] sm:$0xff]
        %v988 = vld [vmem:[%s5 + $0x150] sm:$0xff]
        %v989 = vld [vmem:[%s5 + $0x158] sm:$0xff]
        %v990 = vld [vmem:[%s5 + $0x160] sm:$0xff]
        %v991 = vld [vmem:[%s5 + $0x168] sm:$0xff]
        %v992 = vld [vmem:[%s5 + $0x170] sm:$0xff]
        %v993 = vld [vmem:[%s5 + $0x178] sm:$0xff]
        %v994 = vld [vmem:[%s5 + $0x180] sm:$0xff]
        %v995 = vld [vmem:[%s5 + $0x188] sm:$0xff]
        %v996 = vld [vmem:[%s5 + $0x190] sm:$0xff]
        %v997 = vld [vmem:[%s5 + $0x198] sm:$0xff]
        %v998 = vld [vmem:[%s5 + $0x1a0] sm:$0xff]
        %v999 = vld [vmem:[%s5 + $0x1a8] sm:$0xff]
        %v1000 = vld [vmem:[%s5 + $0x1b0] sm:$0xff]
        %v1001 = vld [vmem:[%s5 + $0x1b8] sm:$0xff]
        %v1002 = vld [vmem:[%s5 + $0x1c0] sm:$0xff]
        %v1003 = vld [vmem:[%s5 + $0x1c8] sm:$0xff]
        %v1004 = vld [vmem:[%s5 + $0x1d0] sm:$0xff]
        %v1005 = vld [vmem:[%s5 + $0x1d8] sm:$0xff]
        %v1006 = vld [vmem:[%s5 + $0x1e0] sm:$0xff]
        %v1007 = vld [vmem:[%s5 + $0x1e8] sm:$0xff]
        %v1008 = vld [vmem:[%s5 + $0x1f0] sm:$0xff]
        %v1009 = vld [vmem:[%s5 + $0x1f8] sm:$0xff]
        %v1074 = vunpack.c.l.b16 %v946
        %v1075 = vunpack.c.h.b16 %v946
        %v1076 = vunpack.c.l.b16 %v947
        %v1077 = vunpack.c.h.b16 %v947
        %v1078 = vunpack.c.l.b16 %v948
        %v1079 = vunpack.c.h.b16 %v948
        %v1080 = vunpack.c.l.b16 %v949
        %v1081 = vunpack.c.h.b16 %v949
        %v1082 = vunpack.c.l.b16 %v950
        %v1083 = vunpack.c.h.b16 %v950
        %v1084 = vunpack.c.l.b16 %v951
        %v1085 = vunpack.c.h.b16 %v951
        %v1086 = vunpack.c.l.b16 %v952
        %v1087 = vunpack.c.h.b16 %v952
        %v1088 = vunpack.c.l.b16 %v953
        %v1089 = vunpack.c.h.b16 %v953
        %v1090 = vunpack.c.l.b16 %v954
        %v1091 = vunpack.c.h.b16 %v954
        %v1092 = vunpack.c.l.b16 %v955
        %v1093 = vunpack.c.h.b16 %v955
        %v1094 = vunpack.c.l.b16 %v956
        %v1095 = vunpack.c.h.b16 %v956
        %v1096 = vunpack.c.l.b16 %v957
        %v1097 = vunpack.c.h.b16 %v957
        %v1098 = vunpack.c.l.b16 %v958
        %v1099 = vunpack.c.h.b16 %v958
        %v1100 = vunpack.c.l.b16 %v959
        %v1101 = vunpack.c.h.b16 %v959
        %v1102 = vunpack.c.l.b16 %v960
        %v1103 = vunpack.c.h.b16 %v960
        %v1104 = vunpack.c.l.b16 %v961
        %v1105 = vunpack.c.h.b16 %v961
        %v1106 = vunpack.c.l.b16 %v962
        %v1107 = vunpack.c.h.b16 %v962
        %v1108 = vunpack.c.l.b16 %v963
        %v1109 = vunpack.c.h.b16 %v963
        %v1110 = vunpack.c.l.b16 %v964
        %v1111 = vunpack.c.h.b16 %v964
        %v1112 = vunpack.c.l.b16 %v965
        %v1113 = vunpack.c.h.b16 %v965
        %v1114 = vunpack.c.l.b16 %v966
        %v1115 = vunpack.c.h.b16 %v966
        %v1116 = vunpack.c.l.b16 %v967
        %v1117 = vunpack.c.h.b16 %v967
        %v1118 = vunpack.c.l.b16 %v968
        %v1119 = vunpack.c.h.b16 %v968
        %v1120 = vunpack.c.l.b16 %v969
        %v1121 = vunpack.c.h.b16 %v969
        %v1122 = vunpack.c.l.b16 %v970
        %v1123 = vunpack.c.h.b16 %v970
        %v1124 = vunpack.c.l.b16 %v971
        %v1125 = vunpack.c.h.b16 %v971
        %v1126 = vunpack.c.l.b16 %v972
        %v1127 = vunpack.c.h.b16 %v972
        %v1128 = vunpack.c.l.b16 %v973
        %v1129 = vunpack.c.h.b16 %v973
        %v1130 = vunpack.c.l.b16 %v974
        %v1131 = vunpack.c.h.b16 %v974
        %v1132 = vunpack.c.l.b16 %v975
        %v1133 = vunpack.c.h.b16 %v975
        %v1134 = vunpack.c.l.b16 %v976
        %v1135 = vunpack.c.h.b16 %v976
        %v1136 = vunpack.c.l.b16 %v977
        %v1137 = vunpack.c.h.b16 %v977
        %v1138 = vunpack.c.l.b16 %v978
        %v1139 = vunpack.c.h.b16 %v978
        %v1140 = vunpack.c.l.b16 %v979
        %v1141 = vunpack.c.h.b16 %v979
        %v1142 = vunpack.c.l.b16 %v980
        %v1143 = vunpack.c.h.b16 %v980
        %v1144 = vunpack.c.l.b16 %v981
        %v1145 = vunpack.c.h.b16 %v981
        %v1146 = vunpack.c.l.b16 %v982
        %v1147 = vunpack.c.h.b16 %v982
        %v1148 = vunpack.c.l.b16 %v983
        %v1149 = vunpack.c.h.b16 %v983
        %v1150 = vunpack.c.l.b16 %v984
        %v1151 = vunpack.c.h.b16 %v984
        %v1152 = vunpack.c.l.b16 %v985
        %v1153 = vunpack.c.h.b16 %v985
        %v1154 = vunpack.c.l.b16 %v986
        %v1155 = vunpack.c.h.b16 %v986
        %v1156 = vunpack.c.l.b16 %v987
        %v1157 = vunpack.c.h.b16 %v987
        %v1158 = vunpack.c.l.b16 %v988
        %v1159 = vunpack.c.h.b16 %v988
        %v1160 = vunpack.c.l.b16 %v989
        %v1161 = vunpack.c.h.b16 %v989
        %v1162 = vunpack.c.l.b16 %v990
        %v1163 = vunpack.c.h.b16 %v990
        %v1164 = vunpack.c.l.b16 %v991
        %v1165 = vunpack.c.h.b16 %v991
        %v1166 = vunpack.c.l.b16 %v992
        %v1167 = vunpack.c.h.b16 %v992
        %v1168 = vunpack.c.l.b16 %v993
        %v1169 = vunpack.c.h.b16 %v993
        %v1170 = vunpack.c.l.b16 %v994
        %v1171 = vunpack.c.h.b16 %v994
        %v1172 = vunpack.c.l.b16 %v995
        %v1173 = vunpack.c.h.b16 %v995
        %v1174 = vunpack.c.l.b16 %v996
        %v1175 = vunpack.c.h.b16 %v996
        %v1176 = vunpack.c.l.b16 %v997
        %v1177 = vunpack.c.h.b16 %v997
        %v1178 = vunpack.c.l.b16 %v998
        %v1179 = vunpack.c.h.b16 %v998
        %v1180 = vunpack.c.l.b16 %v999
        %v1181 = vunpack.c.h.b16 %v999
        %v1182 = vunpack.c.l.b16 %v1000
        %v1183 = vunpack.c.h.b16 %v1000
        %v1184 = vunpack.c.l.b16 %v1001
        %v1185 = vunpack.c.h.b16 %v1001
        %v1186 = vunpack.c.l.b16 %v1002
        %v1187 = vunpack.c.h.b16 %v1002
        %v1188 = vunpack.c.l.b16 %v1003
        %v1189 = vunpack.c.h.b16 %v1003
        %v1190 = vunpack.c.l.b16 %v1004
        %v1191 = vunpack.c.h.b16 %v1004
        %v1192 = vunpack.c.l.b16 %v1005
        %v1193 = vunpack.c.h.b16 %v1005
        %v1194 = vunpack.c.l.b16 %v1006
        %v1195 = vunpack.c.h.b16 %v1006
        %v1196 = vunpack.c.l.b16 %v1007
        %v1197 = vunpack.c.h.b16 %v1007
        %v1198 = vunpack.c.l.b16 %v1008
        %v1199 = vunpack.c.h.b16 %v1008
        %v1200 = vunpack.c.l.b16 %v1009
        %v1201 = vunpack.c.h.b16 %v1009
        %v1202 = vpack.c.b16 %v1082, %v1074
        %v1203 = vpack.c.b16 %v1083, %v1075
        %v1204 = vpack.c.b16 %v1084, %v1076
        %v1205 = vpack.c.b16 %v1085, %v1077
        %v1206 = vpack.c.b16 %v1086, %v1078
        %v1207 = vpack.c.b16 %v1087, %v1079
        %v1208 = vpack.c.b16 %v1088, %v1080
        %v1209 = vpack.c.b16 %v1089, %v1081
        %v1210 = vpack.c.b16 %v1098, %v1090
        %v1211 = vpack.c.b16 %v1099, %v1091
        %v1212 = vpack.c.b16 %v1100, %v1092
        %v1213 = vpack.c.b16 %v1101, %v1093
        %v1214 = vpack.c.b16 %v1102, %v1094
        %v1215 = vpack.c.b16 %v1103, %v1095
        %v1216 = vpack.c.b16 %v1104, %v1096
        %v1217 = vpack.c.b16 %v1105, %v1097
        %v1218 = vpack.c.b16 %v1114, %v1106
        %v1219 = vpack.c.b16 %v1115, %v1107
        %v1220 = vpack.c.b16 %v1116, %v1108
        %v1221 = vpack.c.b16 %v1117, %v1109
        %v1222 = vpack.c.b16 %v1118, %v1110
        %v1223 = vpack.c.b16 %v1119, %v1111
        %v1224 = vpack.c.b16 %v1120, %v1112
        %v1225 = vpack.c.b16 %v1121, %v1113
        %v1226 = vpack.c.b16 %v1130, %v1122
        %v1227 = vpack.c.b16 %v1131, %v1123
        %v1228 = vpack.c.b16 %v1132, %v1124
        %v1229 = vpack.c.b16 %v1133, %v1125
        %v1230 = vpack.c.b16 %v1134, %v1126
        %v1231 = vpack.c.b16 %v1135, %v1127
        %v1232 = vpack.c.b16 %v1136, %v1128
        %v1233 = vpack.c.b16 %v1137, %v1129
        %v1234 = vpack.c.b16 %v1146, %v1138
        %v1235 = vpack.c.b16 %v1147, %v1139
        %v1236 = vpack.c.b16 %v1148, %v1140
        %v1237 = vpack.c.b16 %v1149, %v1141
        %v1238 = vpack.c.b16 %v1150, %v1142
        %v1239 = vpack.c.b16 %v1151, %v1143
        %v1240 = vpack.c.b16 %v1152, %v1144
        %v1241 = vpack.c.b16 %v1153, %v1145
        %v1242 = vpack.c.b16 %v1162, %v1154
        %v1243 = vpack.c.b16 %v1163, %v1155
        %v1244 = vpack.c.b16 %v1164, %v1156
        %v1245 = vpack.c.b16 %v1165, %v1157
        %v1246 = vpack.c.b16 %v1166, %v1158
        %v1247 = vpack.c.b16 %v1167, %v1159
        %v1248 = vpack.c.b16 %v1168, %v1160
        %v1249 = vpack.c.b16 %v1169, %v1161
        %v1250 = vpack.c.b16 %v1178, %v1170
        %v1251 = vpack.c.b16 %v1179, %v1171
        %v1252 = vpack.c.b16 %v1180, %v1172
        %v1253 = vpack.c.b16 %v1181, %v1173
        %v1254 = vpack.c.b16 %v1182, %v1174
        %v1255 = vpack.c.b16 %v1183, %v1175
        %v1256 = vpack.c.b16 %v1184, %v1176
        %v1257 = vpack.c.b16 %v1185, %v1177
        %v1258 = vpack.c.b16 %v1194, %v1186
        %v1259 = vpack.c.b16 %v1195, %v1187
        %v1260 = vpack.c.b16 %v1196, %v1188
        %v1261 = vpack.c.b16 %v1197, %v1189
        %v1262 = vpack.c.b16 %v1198, %v1190
        %v1263 = vpack.c.b16 %v1199, %v1191
        %v1264 = vpack.c.b16 %v1200, %v1192
        %v1265 = vpack.c.b16 %v1201, %v1193
        %1330 = vmatpush.bf16.msra.mxu0 %v1258
        %1331 = vmatpush.bf16.msra.mxu0 %v1250
        %1332 = vmatpush.bf16.msra.mxu0 %v1242
        %1333 = vmatpush.bf16.msra.mxu0 %v1234
        %1334 = vmatpush.bf16.msra.mxu0 %v1226
        %1335 = vmatpush.bf16.msra.mxu0 %v1218
        %1336 = vmatpush.bf16.msra.mxu0 %v1210
        %1337 = vmatpush.bf16.msra.mxu0 %v1202
        %1338 = vmatmul.bf16.gmra.mxu0 %v944
        %v1339 = vpop.f32.mrf.mxu0
        %v1340 = vadd.f32 0.0, %v1339
        %v1341 = vpop.f32.mrf.mxu0
        %v1342 = vadd.f32 0.0, %v1341
        %1343 = vmatmul.bf16.gmra.mxu0 %v945
        %v1344 = vpop.f32.mrf.mxu0
        %v1345 = vadd.f32 0.0, %v1344
        %v1346 = vpop.f32.mrf.mxu0
        %v1347 = vadd.f32 0.0, %v1346
        %1348 = vdwg.mxu0
        %1349 = vmatpush.bf16.msra.mxu0 %v1259
        %1350 = vmatpush.bf16.msra.mxu0 %v1251
        %1351 = vmatpush.bf16.msra.mxu0 %v1243
        %1352 = vmatpush.bf16.msra.mxu0 %v1235
        %1353 = vmatpush.bf16.msra.mxu0 %v1227
        %1354 = vmatpush.bf16.msra.mxu0 %v1219
        %1355 = vmatpush.bf16.msra.mxu0 %v1211
        %1356 = vmatpush.bf16.msra.mxu0 %v1203
        %1357 = vmatmul.bf16.gmra.mxu0 %v944
        %v1358 = vpop.f32.mrf.mxu0
        %v1359 = vadd.f32 0.0, %v1358
        %v1360 = vpop.f32.mrf.mxu0
        %v1361 = vadd.f32 0.0, %v1360
        %1362 = vmatmul.bf16.gmra.mxu0 %v945
        %v1363 = vpop.f32.mrf.mxu0
        %v1364 = vadd.f32 0.0, %v1363
        %v1365 = vpop.f32.mrf.mxu0
        %v1366 = vadd.f32 0.0, %v1365
        %1367 = vdwg.mxu0
        %1368 = vmatpush.bf16.msra.mxu0 %v1260
        %1369 = vmatpush.bf16.msra.mxu0 %v1252
        %1370 = vmatpush.bf16.msra.mxu0 %v1244
        %1371 = vmatpush.bf16.msra.mxu0 %v1236
        %1372 = vmatpush.bf16.msra.mxu0 %v1228
        %1373 = vmatpush.bf16.msra.mxu0 %v1220
        %1374 = vmatpush.bf16.msra.mxu0 %v1212
        %1375 = vmatpush.bf16.msra.mxu0 %v1204
        %1376 = vmatmul.bf16.gmra.mxu0 %v944
        %v1377 = vpop.f32.mrf.mxu0
        %v1378 = vadd.f32 0.0, %v1377
        %v1379 = vpop.f32.mrf.mxu0
        %v1380 = vadd.f32 0.0, %v1379
        %1381 = vmatmul.bf16.gmra.mxu0 %v945
        %v1382 = vpop.f32.mrf.mxu0
        %v1383 = vadd.f32 0.0, %v1382
        %v1384 = vpop.f32.mrf.mxu0
        %v1385 = vadd.f32 0.0, %v1384
        %1386 = vdwg.mxu0
        %1387 = vmatpush.bf16.msra.mxu0 %v1261
        %1388 = vmatpush.bf16.msra.mxu0 %v1253
        %1389 = vmatpush.bf16.msra.mxu0 %v1245
        %1390 = vmatpush.bf16.msra.mxu0 %v1237
        %1391 = vmatpush.bf16.msra.mxu0 %v1229
        %1392 = vmatpush.bf16.msra.mxu0 %v1221
        %1393 = vmatpush.bf16.msra.mxu0 %v1213
        %1394 = vmatpush.bf16.msra.mxu0 %v1205
        %1395 = vmatmul.bf16.gmra.mxu0 %v944
        %v1396 = vpop.f32.mrf.mxu0
        %v1397 = vadd.f32 0.0, %v1396
        %v1398 = vpop.f32.mrf.mxu0
        %v1399 = vadd.f32 0.0, %v1398
        %1400 = vmatmul.bf16.gmra.mxu0 %v945
        %v1401 = vpop.f32.mrf.mxu0
        %v1402 = vadd.f32 0.0, %v1401
        %v1403 = vpop.f32.mrf.mxu0
        %v1404 = vadd.f32 0.0, %v1403
        %1405 = vdwg.mxu0
        %1406 = vmatpush.bf16.msra.mxu0 %v1262
        %1407 = vmatpush.bf16.msra.mxu0 %v1254
        %1408 = vmatpush.bf16.msra.mxu0 %v1246
        %1409 = vmatpush.bf16.msra.mxu0 %v1238
        %1410 = vmatpush.bf16.msra.mxu0 %v1230
        %1411 = vmatpush.bf16.msra.mxu0 %v1222
        %1412 = vmatpush.bf16.msra.mxu0 %v1214
        %1413 = vmatpush.bf16.msra.mxu0 %v1206
        %1414 = vmatmul.bf16.gmra.mxu0 %v944
        %v1415 = vpop.f32.mrf.mxu0
        %v1416 = vadd.f32 0.0, %v1415
        %v1417 = vpop.f32.mrf.mxu0
        %v1418 = vadd.f32 0.0, %v1417
        %1419 = vmatmul.bf16.gmra.mxu0 %v945
        %v1420 = vpop.f32.mrf.mxu0
        %v1421 = vadd.f32 0.0, %v1420
        %v1422 = vpop.f32.mrf.mxu0
        %v1423 = vadd.f32 0.0, %v1422
        %1424 = vdwg.mxu0
        %1425 = vmatpush.bf16.msra.mxu0 %v1263
        %1426 = vmatpush.bf16.msra.mxu0 %v1255
        %1427 = vmatpush.bf16.msra.mxu0 %v1247
        %1428 = vmatpush.bf16.msra.mxu0 %v1239
        %1429 = vmatpush.bf16.msra.mxu0 %v1231
        %1430 = vmatpush.bf16.msra.mxu0 %v1223
        %1431 = vmatpush.bf16.msra.mxu0 %v1215
        %1432 = vmatpush.bf16.msra.mxu0 %v1207
        %1433 = vmatmul.bf16.gmra.mxu0 %v944
        %v1434 = vpop.f32.mrf.mxu0
        %v1435 = vadd.f32 0.0, %v1434
        %v1436 = vpop.f32.mrf.mxu0
        %v1437 = vadd.f32 0.0, %v1436
        %1438 = vmatmul.bf16.gmra.mxu0 %v945
        %v1439 = vpop.f32.mrf.mxu0
        %v1440 = vadd.f32 0.0, %v1439
        %v1441 = vpop.f32.mrf.mxu0
        %v1442 = vadd.f32 0.0, %v1441
        %1443 = vdwg.mxu0
        %1444 = vmatpush.bf16.msra.mxu0 %v1264
        %1445 = vmatpush.bf16.msra.mxu0 %v1256
        %1446 = vmatpush.bf16.msra.mxu0 %v1248
        %1447 = vmatpush.bf16.msra.mxu0 %v1240
        %1448 = vmatpush.bf16.msra.mxu0 %v1232
        %1449 = vmatpush.bf16.msra.mxu0 %v1224
        %1450 = vmatpush.bf16.msra.mxu0 %v1216
        %1451 = vmatpush.bf16.msra.mxu0 %v1208
        %1452 = vmatmul.bf16.gmra.mxu0 %v944
        %v1453 = vpop.f32.mrf.mxu0
        %v1454 = vadd.f32 0.0, %v1453
        %v1455 = vpop.f32.mrf.mxu0
        %v1456 = vadd.f32 0.0, %v1455
        %1457 = vmatmul.bf16.gmra.mxu0 %v945
        %v1458 = vpop.f32.mrf.mxu0
        %v1459 = vadd.f32 0.0, %v1458
        %v1460 = vpop.f32.mrf.mxu0
        %v1461 = vadd.f32 0.0, %v1460
        %1462 = vdwg.mxu0
        %1463 = vmatpush.bf16.msra.mxu0 %v1265
        %1464 = vmatpush.bf16.msra.mxu0 %v1257
        %1465 = vmatpush.bf16.msra.mxu0 %v1249
        %1466 = vmatpush.bf16.msra.mxu0 %v1241
        %1467 = vmatpush.bf16.msra.mxu0 %v1233
        %1468 = vmatpush.bf16.msra.mxu0 %v1225
        %1469 = vmatpush.bf16.msra.mxu0 %v1217
        %1470 = vmatpush.bf16.msra.mxu0 %v1209
        %1471 = vmatmul.bf16.gmra.mxu0 %v944
        %v1472 = vpop.f32.mrf.mxu0
        %v1473 = vadd.f32 0.0, %v1472
        %v1474 = vpop.f32.mrf.mxu0
        %v1475 = vadd.f32 0.0, %v1474
        %1476 = vmatmul.bf16.gmra.mxu0 %v945
        %v1477 = vpop.f32.mrf.mxu0
        %v1478 = vadd.f32 0.0, %v1477
        %v1479 = vpop.f32.mrf.mxu0
        %v1480 = vadd.f32 0.0, %v1479
        %1481 = vdwg.mxu0
        %v1482 = vld [vmem:[%s348] sm:$0xff]
        %v1483 = vmax.f32 %v1340, %v1342
        %v1484 = vmax.f32 %v1483, %v1345
        %v1485 = vmax.f32 %v1484, %v1347
        %v1486 = vrot.slane %v1485, 4
        %v1487 = vmax.f32 %v1485, %v1486
        %v1488 = vrot.slane %v1487, 2
        %v1489 = vmax.f32 %v1487, %v1488
        %v1490 = vrot.slane %v1489, 1
        %v1491 = vmax.f32 %v1489, %v1490
        %v1492 = vmax.f32 %v1359, %v1361
        %v1493 = vmax.f32 %v1492, %v1364
        %v1494 = vmax.f32 %v1493, %v1366
        %v1495 = vrot.slane %v1494, 4
        %v1496 = vmax.f32 %v1494, %v1495
        %v1497 = vrot.slane %v1496, 2
        %v1498 = vmax.f32 %v1496, %v1497
        %v1499 = vrot.slane %v1498, 1
        %v1500 = vmax.f32 %v1498, %v1499
        %v1501 = vmax.f32 %v1378, %v1380
        %v1502 = vmax.f32 %v1501, %v1383
        %v1503 = vmax.f32 %v1502, %v1385
        %v1504 = vrot.slane %v1503, 4
        %v1505 = vmax.f32 %v1503, %v1504
        %v1506 = vrot.slane %v1505, 2
        %v1507 = vmax.f32 %v1505, %v1506
        %v1508 = vrot.slane %v1507, 1
        %v1509 = vmax.f32 %v1507, %v1508
        %v1510 = vmax.f32 %v1397, %v1399
        %v1511 = vmax.f32 %v1510, %v1402
        %v1512 = vmax.f32 %v1511, %v1404
        %v1513 = vrot.slane %v1512, 4
        %v1514 = vmax.f32 %v1512, %v1513
        %v1515 = vrot.slane %v1514, 2
        %v1516 = vmax.f32 %v1514, %v1515
        %v1517 = vrot.slane %v1516, 1
        %v1518 = vmax.f32 %v1516, %v1517
        %v1519 = vmax.f32 %v1416, %v1418
        %v1520 = vmax.f32 %v1519, %v1421
        %v1521 = vmax.f32 %v1520, %v1423
        %v1522 = vrot.slane %v1521, 4
        %v1523 = vmax.f32 %v1521, %v1522
        %v1524 = vrot.slane %v1523, 2
        %v1525 = vmax.f32 %v1523, %v1524
        %v1526 = vrot.slane %v1525, 1
        %v1527 = vmax.f32 %v1525, %v1526
        %v1528 = vmax.f32 %v1435, %v1437
        %v1529 = vmax.f32 %v1528, %v1440
        %v1530 = vmax.f32 %v1529, %v1442
        %v1531 = vrot.slane %v1530, 4
        %v1532 = vmax.f32 %v1530, %v1531
        %v1533 = vrot.slane %v1532, 2
        %v1534 = vmax.f32 %v1532, %v1533
        %v1535 = vrot.slane %v1534, 1
        %v1536 = vmax.f32 %v1534, %v1535
        %v1537 = vmax.f32 %v1454, %v1456
        %v1538 = vmax.f32 %v1537, %v1459
        %v1539 = vmax.f32 %v1538, %v1461
        %v1540 = vrot.slane %v1539, 4
        %v1541 = vmax.f32 %v1539, %v1540
        %v1542 = vrot.slane %v1541, 2
        %v1543 = vmax.f32 %v1541, %v1542
        %v1544 = vrot.slane %v1543, 1
        %v1545 = vmax.f32 %v1543, %v1544
        %v1546 = vmax.f32 %v1473, %v1475
        %v1547 = vmax.f32 %v1546, %v1478
        %v1548 = vmax.f32 %v1547, %v1480
        %v1549 = vrot.slane %v1548, 4
        %v1550 = vmax.f32 %v1548, %v1549
        %v1551 = vrot.slane %v1550, 2
        %v1552 = vmax.f32 %v1550, %v1551
        %v1553 = vrot.slane %v1552, 1
        %v1554 = vmax.f32 %v1552, %v1553
        %v1563 = vrot.slane %v1500, 7
        %v1564 = vrot.slane %v1509, 6
        %v1565 = vrot.slane %v1518, 5
        %v1566 = vrot.slane %v1527, 4
        %v1567 = vrot.slane %v1536, 3
        %v1568 = vrot.slane %v1545, 2
        %v1569 = vrot.slane %v1554, 1
        %vm1570 = vcmask 1040384
        %v1571 = vsel %vm1570, %v1491, %v1563
        %vm1572 = vcmask 1042434
        %v1573 = vsel %vm1572, %v1564, %v1565
        %vm1574 = vcmask 1041408
        %v1575 = vsel %vm1574, %v1571, %v1573
        %vm1576 = vcmask 1044484
        %v1577 = vsel %vm1576, %v1566, %v1567
        %vm1578 = vcmask 1046534
        %v1579 = vsel %vm1578, %v1568, %v1569
        %vm1580 = vcmask 1045508
        %v1581 = vsel %vm1580, %v1577, %v1579
        %vm1582 = vcmask 1043456
        %v1583 = vsel %vm1582, %v1575, %v1581
        %v1585 = vmax.f32 %v1482, %v1583
        %p1586 = scmp.ne.s32.totalorder %s25, 0
        // Predicated region
        $region65: #{transform_net_forward.2} parent=47 // pred_check
          %p1587 = pneg %p1586
        $region66: #{transform_net_forward.2} parent=47 // pred_check_branch
          %1589 = sbr.rel (%p1587) target = $region68
        $region67: #{transform_net_forward.2} parent=47 // pred_region
          %1590 = vst [vmem:[%s348] sm:$0xff] %v1585
        $region68: #{transform_net_forward.2} parent=47 // pred_fallthru
          _
        // Predicated region
        $region69: #{transform_net_forward.2} parent=47 // pred_check
          %p1591 = pneg %p350
        $region70: #{transform_net_forward.2} parent=47 // pred_check_branch
          %1593 = sbr.rel (%p1591) target = $region72
        $region71: #{transform_net_forward.2} parent=47 // pred_region
          %v1594 = vld [vmem:[#allocation6] sm:$0xff]
          %v1595 = vadd.f32 %v1585, %v1594
          %vm1596 = vcmp.gt.f32.partialorder %v1595, 0.0
          %v1597 = vmul.f32 %v1595, 0.2
          %v1598 = vsel %vm1596, %v1595, %v1597
          %1599 = vst [vmem:[%s348] sm:$0xff] %v1598
        $region72: #{transform_net_forward.2} parent=47 // pred_fallthru
          _
        %p1600 = scmp.lt.s32.totalorder %s24, 1
        %s1601 = scalar_select %p1600, %s24, 1
        %s1602 = smul.addr %s1601, 8
        %s1603 = scalar_lea.vmem %s7, %s1602
        // Predicated region
        $region73: #{transform_net_forward.2} parent=47 // pred_check
          %p1604 = pneg %p204
        $region74: #{transform_net_forward.2} parent=47 // pred_check_branch
          %1606 = sbr.rel (%p1604) target = $region76
        $region75: #{transform_net_forward.2} parent=47 // pred_region
          _
        $region76: #{transform_net_forward.2} parent=47 // pred_fallthru
          _
      $region48: #{transform_net_forward.2} parent=5 // pred_fallthru
        _
      %p1607 = scmp.le.s32.totalorder 2, %s15
      // Predicated region
      $region77: #{transform_net_forward.2} parent=5 // pred_check
        %p1608 = pneg %p1607
      $region78: #{transform_net_forward.2} parent=5 // pred_check_branch
        %1610 = sbr.rel (%p1608) target = $region80
      $region79: #{transform_net_forward.2} parent=5 // pred_region
        %s1611 = ssub.s32 %s15, 2
        // Predicated region
        $region81: #{transform_net_forward.2} parent=79 // pred_check
          %p1612 = pneg %p210
        $region82: #{transform_net_forward.2} parent=79 // pred_check_branch
          %1614 = sbr.rel (%p1612) target = $region84
        $region83: #{transform_net_forward.2} parent=79 // pred_region
          %p1615 = scmp.lt.s32.totalorder %s26, 1
          %s1616 = scalar_select %p1615, %s26, 1
          %s1617 = smul.addr %s1616, 8
          %s1618 = scalar_lea.vmem %s7, %s1617
        $region84: #{transform_net_forward.2} parent=79 // pred_fallthru
          _
      $region80: #{transform_net_forward.2} parent=5 // pred_fallthru
        _
    $region6: #{transform_net_forward.2} parent=1 // loop_footer
      %s19 = sadd.s32 1, %s15
    $region7: #{transform_net_forward.2} parent=1 // loop_footer_branch
      %14 = sbr.rel target = $region3
    $region8: #{transform_net_forward.2} parent=1 // loop_exit
      _
    %1619 = vsyncpa [#allocation3], 1
    %s1620 = scalar_lea.sflag [#allocation3], 1
    %1621 = vsyncpa %s1620, 1
    %1622 = vsyncpa [#allocation5], 1

// kernel: transform_net_forward.3
$region0: #{transform_net_forward.3}
  #allocation0 [shape = 'u32[]', space=smem, size = 0x4, offset = 0x4, fixed_abs, tag = 'smem constant byte address 0x4 - core index']
  #allocation1 [shape = 'u32[72,128]{1,0:T(1,128)}', space=vmem, size = 0x9000, scoped, tag = 'internal scratch']
  %s0 = inlined_call_operand.vmem [shape: bf16[2,1024], index: 0, kind: input, shape index: {}]
  %s1 = inlined_call_operand.vmem [shape: bf16[1024,512], index: 1, kind: input, shape index: {}]
  %s2 = inlined_call_operand.vmem [shape: f32[1,512], index: 2, kind: input, shape index: {}]
  %s3 = inlined_call_operand.vmem [shape: bf16[512,256], index: 3, kind: input, shape index: {}]
  %s4 = inlined_call_operand.vmem [shape: f32[1,256], index: 4, kind: input, shape index: {}]
  %s5 = inlined_call_operand.vmem [shape: bf16[256,128], index: 5, kind: input, shape index: {}]
  %s6 = inlined_call_operand.vmem [shape: f32[1,128], index: 6, kind: input, shape index: {}]
  %s7 = inlined_call_operand.vmem [shape: f32[2,128], index: 7, kind: output, shape index: {}]
  %s8 = sld [smem:[#allocation0]]
  $region38: #{transform_net_forward.3} parent=0
    _
  %s10 = ssub.s32 1, %s8
  %s11 = scalar_select 0, %s10, %s8
  // Predicated region
  $region2: #{transform_net_forward.3} parent=0 // pred_check
    _
  $region3: #{transform_net_forward.3} parent=0 // pred_check_branch
    %13 = sbr.rel (0) target = $region5
  $region4: #{transform_net_forward.3} parent=0 // pred_region
    _
  $region5: #{transform_net_forward.3} parent=0 // pred_fallthru
    _
  // Predicated region
  $region6: #{transform_net_forward.3} parent=0 // pred_check
    _
  $region7: #{transform_net_forward.3} parent=0 // pred_check_branch
    %15 = sbr.rel (0) target = $region9
  $region8: #{transform_net_forward.3} parent=0 // pred_region
    _
  $region9: #{transform_net_forward.3} parent=0 // pred_fallthru
    _
  // Predicated region
  $region10: #{transform_net_forward.3} parent=0 // pred_check
    _
  $region11: #{transform_net_forward.3} parent=0 // pred_check_branch
    %17 = sbr.rel (0) target = $region13
  $region12: #{transform_net_forward.3} parent=0 // pred_region
    _
  $region13: #{transform_net_forward.3} parent=0 // pred_fallthru
    _
  // Predicated region
  $region14: #{transform_net_forward.3} parent=0 // pred_check
    _
  $region15: #{transform_net_forward.3} parent=0 // pred_check_branch
    %19 = sbr.rel (0) target = $region17
  $region16: #{transform_net_forward.3} parent=0 // pred_region
    _
  $region17: #{transform_net_forward.3} parent=0 // pred_fallthru
    _
  // Predicated region
  $region18: #{transform_net_forward.3} parent=0 // pred_check
    _
  $region19: #{transform_net_forward.3} parent=0 // pred_check_branch
    %21 = sbr.rel (0) target = $region21
  $region20: #{transform_net_forward.3} parent=0 // pred_region
    _
  $region21: #{transform_net_forward.3} parent=0 // pred_fallthru
    _
  // Predicated region
  $region22: #{transform_net_forward.3} parent=0 // pred_check
    _
  $region23: #{transform_net_forward.3} parent=0 // pred_check_branch
    %23 = sbr.rel (0) target = $region25
  $region24: #{transform_net_forward.3} parent=0 // pred_region
    _
  $region25: #{transform_net_forward.3} parent=0 // pred_fallthru
    _
  // Predicated region
  $region26: #{transform_net_forward.3} parent=0 // pred_check
    _
  $region27: #{transform_net_forward.3} parent=0 // pred_check_branch
    %25 = sbr.rel (0) target = $region29
  $region28: #{transform_net_forward.3} parent=0 // pred_region
    _
  $region29: #{transform_net_forward.3} parent=0 // pred_fallthru
    _
  %v26 = vld [vmem:[%s0] sm:$0xff]
  %v27 = vld [vmem:[%s1] sm:$0xff]
  %v28 = vld [vmem:[%s1 + $0x8] sm:$0xff]
  %v29 = vld [vmem:[%s1 + $0x10] sm:$0xff]
  %v30 = vld [vmem:[%s1 + $0x18] sm:$0xff]
  %v31 = vld [vmem:[%s1 + $0x20] sm:$0xff]
  %v32 = vld [vmem:[%s1 + $0x28] sm:$0xff]
  %v33 = vld [vmem:[%s1 + $0x30] sm:$0xff]
  %v34 = vld [vmem:[%s1 + $0x38] sm:$0xff]
  %v35 = vld [vmem:[%s1 + $0x40] sm:$0xff]
  %v36 = vld [vmem:[%s1 + $0x48] sm:$0xff]
  %v37 = vld [vmem:[%s1 + $0x50] sm:$0xff]
  %v38 = vld [vmem:[%s1 + $0x58] sm:$0xff]
  %v39 = vld [vmem:[%s1 + $0x60] sm:$0xff]
  %v40 = vld [vmem:[%s1 + $0x68] sm:$0xff]
  %v41 = vld [vmem:[%s1 + $0x70] sm:$0xff]
  %v42 = vld [vmem:[%s1 + $0x78] sm:$0xff]
  %v43 = vld [vmem:[%s1 + $0x80] sm:$0xff]
  %v44 = vld [vmem:[%s1 + $0x88] sm:$0xff]
  %v45 = vld [vmem:[%s1 + $0x90] sm:$0xff]
  %v46 = vld [vmem:[%s1 + $0x98] sm:$0xff]
  %v47 = vld [vmem:[%s1 + $0xa0] sm:$0xff]
  %v48 = vld [vmem:[%s1 + $0xa8] sm:$0xff]
  %v49 = vld [vmem:[%s1 + $0xb0] sm:$0xff]
  %v50 = vld [vmem:[%s1 + $0xb8] sm:$0xff]
  %v51 = vld [vmem:[%s1 + $0xc0] sm:$0xff]
  %v52 = vld [vmem:[%s1 + $0xc8] sm:$0xff]
  %v53 = vld [vmem:[%s1 + $0xd0] sm:$0xff]
  %v54 = vld [vmem:[%s1 + $0xd8] sm:$0xff]
  %v55 = vld [vmem:[%s1 + $0xe0] sm:$0xff]
  %v56 = vld [vmem:[%s1 + $0xe8] sm:$0xff]
  %v57 = vld [vmem:[%s1 + $0xf0] sm:$0xff]
  %v58 = vld [vmem:[%s1 + $0xf8] sm:$0xff]
  %v59 = vld [vmem:[%s1 + $0x100] sm:$0xff]
  %v60 = vld [vmem:[%s1 + $0x108] sm:$0xff]
  %v61 = vld [vmem:[%s1 + $0x110] sm:$0xff]
  %v62 = vld [vmem:[%s1 + $0x118] sm:$0xff]
  %v63 = vld [vmem:[%s1 + $0x120] sm:$0xff]
  %v64 = vld [vmem:[%s1 + $0x128] sm:$0xff]
  %v65 = vld [vmem:[%s1 + $0x130] sm:$0xff]
  %v66 = vld [vmem:[%s1 + $0x138] sm:$0xff]
  %v67 = vld [vmem:[%s1 + $0x140] sm:$0xff]
  %v68 = vld [vmem:[%s1 + $0x148] sm:$0xff]
  %v69 = vld [vmem:[%s1 + $0x150] sm:$0xff]
  %v70 = vld [vmem:[%s1 + $0x158] sm:$0xff]
  %v71 = vld [vmem:[%s1 + $0x160] sm:$0xff]
  %v72 = vld [vmem:[%s1 + $0x168] sm:$0xff]
  %v73 = vld [vmem:[%s1 + $0x170] sm:$0xff]
  %v74 = vld [vmem:[%s1 + $0x178] sm:$0xff]
  %v75 = vld [vmem:[%s1 + $0x180] sm:$0xff]
  %v76 = vld [vmem:[%s1 + $0x188] sm:$0xff]
  %v77 = vld [vmem:[%s1 + $0x190] sm:$0xff]
  %v78 = vld [vmem:[%s1 + $0x198] sm:$0xff]
  %v79 = vld [vmem:[%s1 + $0x1a0] sm:$0xff]
  %v80 = vld [vmem:[%s1 + $0x1a8] sm:$0xff]
  %v81 = vld [vmem:[%s1 + $0x1b0] sm:$0xff]
  %v82 = vld [vmem:[%s1 + $0x1b8] sm:$0xff]
  %v83 = vld [vmem:[%s1 + $0x1c0] sm:$0xff]
  %v84 = vld [vmem:[%s1 + $0x1c8] sm:$0xff]
  %v85 = vld [vmem:[%s1 + $0x1d0] sm:$0xff]
  %v86 = vld [vmem:[%s1 + $0x1d8] sm:$0xff]
  %v87 = vld [vmem:[%s1 + $0x1e0] sm:$0xff]
  %v88 = vld [vmem:[%s1 + $0x1e8] sm:$0xff]
  %v89 = vld [vmem:[%s1 + $0x1f0] sm:$0xff]
  %v90 = vld [vmem:[%s1 + $0x1f8] sm:$0xff]
  %v91 = vld [vmem:[%s1 + $0x200] sm:$0xff]
  %v92 = vld [vmem:[%s1 + $0x208] sm:$0xff]
  %v93 = vld [vmem:[%s1 + $0x210] sm:$0xff]
  %v94 = vld [vmem:[%s1 + $0x218] sm:$0xff]
  %v95 = vld [vmem:[%s1 + $0x220] sm:$0xff]
  %v96 = vld [vmem:[%s1 + $0x228] sm:$0xff]
  %v97 = vld [vmem:[%s1 + $0x230] sm:$0xff]
  %v98 = vld [vmem:[%s1 + $0x238] sm:$0xff]
  %v99 = vld [vmem:[%s1 + $0x240] sm:$0xff]
  %v100 = vld [vmem:[%s1 + $0x248] sm:$0xff]
  %v101 = vld [vmem:[%s1 + $0x250] sm:$0xff]
  %v102 = vld [vmem:[%s1 + $0x258] sm:$0xff]
  %v103 = vld [vmem:[%s1 + $0x260] sm:$0xff]
  %v104 = vld [vmem:[%s1 + $0x268] sm:$0xff]
  %v105 = vld [vmem:[%s1 + $0x270] sm:$0xff]
  %v106 = vld [vmem:[%s1 + $0x278] sm:$0xff]
  %v107 = vld [vmem:[%s1 + $0x280] sm:$0xff]
  %v108 = vld [vmem:[%s1 + $0x288] sm:$0xff]
  %v109 = vld [vmem:[%s1 + $0x290] sm:$0xff]
  %v110 = vld [vmem:[%s1 + $0x298] sm:$0xff]
  %v111 = vld [vmem:[%s1 + $0x2a0] sm:$0xff]
  %v112 = vld [vmem:[%s1 + $0x2a8] sm:$0xff]
  %v113 = vld [vmem:[%s1 + $0x2b0] sm:$0xff]
  %v114 = vld [vmem:[%s1 + $0x2b8] sm:$0xff]
  %v115 = vld [vmem:[%s1 + $0x2c0] sm:$0xff]
  %v116 = vld [vmem:[%s1 + $0x2c8] sm:$0xff]
  %v117 = vld [vmem:[%s1 + $0x2d0] sm:$0xff]
  %v118 = vld [vmem:[%s1 + $0x2d8] sm:$0xff]
  %v119 = vld [vmem:[%s1 + $0x2e0] sm:$0xff]
  %v120 = vld [vmem:[%s1 + $0x2e8] sm:$0xff]
  %v121 = vld [vmem:[%s1 + $0x2f0] sm:$0xff]
  %v122 = vld [vmem:[%s1 + $0x2f8] sm:$0xff]
  %v123 = vld [vmem:[%s1 + $0x300] sm:$0xff]
  %v124 = vld [vmem:[%s1 + $0x308] sm:$0xff]
  %v125 = vld [vmem:[%s1 + $0x310] sm:$0xff]
  %v126 = vld [vmem:[%s1 + $0x318] sm:$0xff]
  %v127 = vld [vmem:[%s1 + $0x320] sm:$0xff]
  %v128 = vld [vmem:[%s1 + $0x328] sm:$0xff]
  %v129 = vld [vmem:[%s1 + $0x330] sm:$0xff]
  %v130 = vld [vmem:[%s1 + $0x338] sm:$0xff]
  %v131 = vld [vmem:[%s1 + $0x340] sm:$0xff]
  %v132 = vld [vmem:[%s1 + $0x348] sm:$0xff]
  %v133 = vld [vmem:[%s1 + $0x350] sm:$0xff]
  %v134 = vld [vmem:[%s1 + $0x358] sm:$0xff]
  %v135 = vld [vmem:[%s1 + $0x360] sm:$0xff]
  %v136 = vld [vmem:[%s1 + $0x368] sm:$0xff]
  %v137 = vld [vmem:[%s1 + $0x370] sm:$0xff]
  %v138 = vld [vmem:[%s1 + $0x378] sm:$0xff]
  %v139 = vld [vmem:[%s1 + $0x380] sm:$0xff]
  %v140 = vld [vmem:[%s1 + $0x388] sm:$0xff]
  %v141 = vld [vmem:[%s1 + $0x390] sm:$0xff]
  %v142 = vld [vmem:[%s1 + $0x398] sm:$0xff]
  %v143 = vld [vmem:[%s1 + $0x3a0] sm:$0xff]
  %v144 = vld [vmem:[%s1 + $0x3a8] sm:$0xff]
  %v145 = vld [vmem:[%s1 + $0x3b0] sm:$0xff]
  %v146 = vld [vmem:[%s1 + $0x3b8] sm:$0xff]
  %v147 = vld [vmem:[%s1 + $0x3c0] sm:$0xff]
  %v148 = vld [vmem:[%s1 + $0x3c8] sm:$0xff]
  %v149 = vld [vmem:[%s1 + $0x3d0] sm:$0xff]
  %v150 = vld [vmem:[%s1 + $0x3d8] sm:$0xff]
  %v151 = vld [vmem:[%s1 + $0x3e0] sm:$0xff]
  %v152 = vld [vmem:[%s1 + $0x3e8] sm:$0xff]
  %v153 = vld [vmem:[%s1 + $0x3f0] sm:$0xff]
  %v154 = vld [vmem:[%s1 + $0x3f8] sm:$0xff]
  %v155 = vld [vmem:[%s1 + $0x400] sm:$0xff]
  %v156 = vld [vmem:[%s1 + $0x408] sm:$0xff]
  %v157 = vld [vmem:[%s1 + $0x410] sm:$0xff]
  %v158 = vld [vmem:[%s1 + $0x418] sm:$0xff]
  %v159 = vld [vmem:[%s1 + $0x420] sm:$0xff]
  %v160 = vld [vmem:[%s1 + $0x428] sm:$0xff]
  %v161 = vld [vmem:[%s1 + $0x430] sm:$0xff]
  %v162 = vld [vmem:[%s1 + $0x438] sm:$0xff]
  %v163 = vld [vmem:[%s1 + $0x440] sm:$0xff]
  %v164 = vld [vmem:[%s1 + $0x448] sm:$0xff]
  %v165 = vld [vmem:[%s1 + $0x450] sm:$0xff]
  %v166 = vld [vmem:[%s1 + $0x458] sm:$0xff]
  %v167 = vld [vmem:[%s1 + $0x460] sm:$0xff]
  %v168 = vld [vmem:[%s1 + $0x468] sm:$0xff]
  %v169 = vld [vmem:[%s1 + $0x470] sm:$0xff]
  %v170 = vld [vmem:[%s1 + $0x478] sm:$0xff]
  %v171 = vld [vmem:[%s1 + $0x480] sm:$0xff]
  %v172 = vld [vmem:[%s1 + $0x488] sm:$0xff]
  %v173 = vld [vmem:[%s1 + $0x490] sm:$0xff]
  %v174 = vld [vmem:[%s1 + $0x498] sm:$0xff]
  %v175 = vld [vmem:[%s1 + $0x4a0] sm:$0xff]
  %v176 = vld [vmem:[%s1 + $0x4a8] sm:$0xff]
  %v177 = vld [vmem:[%s1 + $0x4b0] sm:$0xff]
  %v178 = vld [vmem:[%s1 + $0x4b8] sm:$0xff]
  %v179 = vld [vmem:[%s1 + $0x4c0] sm:$0xff]
  %v180 = vld [vmem:[%s1 + $0x4c8] sm:$0xff]
  %v181 = vld [vmem:[%s1 + $0x4d0] sm:$0xff]
  %v182 = vld [vmem:[%s1 + $0x4d8] sm:$0xff]
  %v183 = vld [vmem:[%s1 + $0x4e0] sm:$0xff]
  %v184 = vld [vmem:[%s1 + $0x4e8] sm:$0xff]
  %v185 = vld [vmem:[%s1 + $0x4f0] sm:$0xff]
  %v186 = vld [vmem:[%s1 + $0x4f8] sm:$0xff]
  %v187 = vld [vmem:[%s1 + $0x500] sm:$0xff]
  %v188 = vld [vmem:[%s1 + $0x508] sm:$0xff]
  %v189 = vld [vmem:[%s1 + $0x510] sm:$0xff]
  %v190 = vld [vmem:[%s1 + $0x518] sm:$0xff]
  %v191 = vld [vmem:[%s1 + $0x520] sm:$0xff]
  %v192 = vld [vmem:[%s1 + $0x528] sm:$0xff]
  %v193 = vld [vmem:[%s1 + $0x530] sm:$0xff]
  %v194 = vld [vmem:[%s1 + $0x538] sm:$0xff]
  %v195 = vld [vmem:[%s1 + $0x540] sm:$0xff]
  %v196 = vld [vmem:[%s1 + $0x548] sm:$0xff]
  %v197 = vld [vmem:[%s1 + $0x550] sm:$0xff]
  %v198 = vld [vmem:[%s1 + $0x558] sm:$0xff]
  %v199 = vld [vmem:[%s1 + $0x560] sm:$0xff]
  %v200 = vld [vmem:[%s1 + $0x568] sm:$0xff]
  %v201 = vld [vmem:[%s1 + $0x570] sm:$0xff]
  %v202 = vld [vmem:[%s1 + $0x578] sm:$0xff]
  %v203 = vld [vmem:[%s1 + $0x580] sm:$0xff]
  %v204 = vld [vmem:[%s1 + $0x588] sm:$0xff]
  %v205 = vld [vmem:[%s1 + $0x590] sm:$0xff]
  %v206 = vld [vmem:[%s1 + $0x598] sm:$0xff]
  %v207 = vld [vmem:[%s1 + $0x5a0] sm:$0xff]
  %v208 = vld [vmem:[%s1 + $0x5a8] sm:$0xff]
  %v209 = vld [vmem:[%s1 + $0x5b0] sm:$0xff]
  %v210 = vld [vmem:[%s1 + $0x5b8] sm:$0xff]
  %v211 = vld [vmem:[%s1 + $0x5c0] sm:$0xff]
  %v212 = vld [vmem:[%s1 + $0x5c8] sm:$0xff]
  %v213 = vld [vmem:[%s1 + $0x5d0] sm:$0xff]
  %v214 = vld [vmem:[%s1 + $0x5d8] sm:$0xff]
  %v215 = vld [vmem:[%s1 + $0x5e0] sm:$0xff]
  %v216 = vld [vmem:[%s1 + $0x5e8] sm:$0xff]
  %v217 = vld [vmem:[%s1 + $0x5f0] sm:$0xff]
  %v218 = vld [vmem:[%s1 + $0x5f8] sm:$0xff]
  %v219 = vld [vmem:[%s1 + $0x600] sm:$0xff]
  %v220 = vld [vmem:[%s1 + $0x608] sm:$0xff]
  %v221 = vld [vmem:[%s1 + $0x610] sm:$0xff]
  %v222 = vld [vmem:[%s1 + $0x618] sm:$0xff]
  %v223 = vld [vmem:[%s1 + $0x620] sm:$0xff]
  %v224 = vld [vmem:[%s1 + $0x628] sm:$0xff]
  %v225 = vld [vmem:[%s1 + $0x630] sm:$0xff]
  %v226 = vld [vmem:[%s1 + $0x638] sm:$0xff]
  %v227 = vld [vmem:[%s1 + $0x640] sm:$0xff]
  %v228 = vld [vmem:[%s1 + $0x648] sm:$0xff]
  %v229 = vld [vmem:[%s1 + $0x650] sm:$0xff]
  %v230 = vld [vmem:[%s1 + $0x658] sm:$0xff]
  %v231 = vld [vmem:[%s1 + $0x660] sm:$0xff]
  %v232 = vld [vmem:[%s1 + $0x668] sm:$0xff]
  %v233 = vld [vmem:[%s1 + $0x670] sm:$0xff]
  %v234 = vld [vmem:[%s1 + $0x678] sm:$0xff]
  %v235 = vld [vmem:[%s1 + $0x680] sm:$0xff]
  %v236 = vld [vmem:[%s1 + $0x688] sm:$0xff]
  %v237 = vld [vmem:[%s1 + $0x690] sm:$0xff]
  %v238 = vld [vmem:[%s1 + $0x698] sm:$0xff]
  %v239 = vld [vmem:[%s1 + $0x6a0] sm:$0xff]
  %v240 = vld [vmem:[%s1 + $0x6a8] sm:$0xff]
  %v241 = vld [vmem:[%s1 + $0x6b0] sm:$0xff]
  %v242 = vld [vmem:[%s1 + $0x6b8] sm:$0xff]
  %v243 = vld [vmem:[%s1 + $0x6c0] sm:$0xff]
  %v244 = vld [vmem:[%s1 + $0x6c8] sm:$0xff]
  %v245 = vld [vmem:[%s1 + $0x6d0] sm:$0xff]
  %v246 = vld [vmem:[%s1 + $0x6d8] sm:$0xff]
  %v247 = vld [vmem:[%s1 + $0x6e0] sm:$0xff]
  %v248 = vld [vmem:[%s1 + $0x6e8] sm:$0xff]
  %v249 = vld [vmem:[%s1 + $0x6f0] sm:$0xff]
  %v250 = vld [vmem:[%s1 + $0x6f8] sm:$0xff]
  %v251 = vld [vmem:[%s1 + $0x700] sm:$0xff]
  %v252 = vld [vmem:[%s1 + $0x708] sm:$0xff]
  %v253 = vld [vmem:[%s1 + $0x710] sm:$0xff]
  %v254 = vld [vmem:[%s1 + $0x718] sm:$0xff]
  %v255 = vld [vmem:[%s1 + $0x720] sm:$0xff]
  %v256 = vld [vmem:[%s1 + $0x728] sm:$0xff]
  %v257 = vld [vmem:[%s1 + $0x730] sm:$0xff]
  %v258 = vld [vmem:[%s1 + $0x738] sm:$0xff]
  %v259 = vld [vmem:[%s1 + $0x740] sm:$0xff]
  %v260 = vld [vmem:[%s1 + $0x748] sm:$0xff]
  %v261 = vld [vmem:[%s1 + $0x750] sm:$0xff]
  %v262 = vld [vmem:[%s1 + $0x758] sm:$0xff]
  %v263 = vld [vmem:[%s1 + $0x760] sm:$0xff]
  %v264 = vld [vmem:[%s1 + $0x768] sm:$0xff]
  %v265 = vld [vmem:[%s1 + $0x770] sm:$0xff]
  %v266 = vld [vmem:[%s1 + $0x778] sm:$0xff]
  %v267 = vld [vmem:[%s1 + $0x780] sm:$0xff]
  %v268 = vld [vmem:[%s1 + $0x788] sm:$0xff]
  %v269 = vld [vmem:[%s1 + $0x790] sm:$0xff]
  %v270 = vld [vmem:[%s1 + $0x798] sm:$0xff]
  %v271 = vld [vmem:[%s1 + $0x7a0] sm:$0xff]
  %v272 = vld [vmem:[%s1 + $0x7a8] sm:$0xff]
  %v273 = vld [vmem:[%s1 + $0x7b0] sm:$0xff]
  %v274 = vld [vmem:[%s1 + $0x7b8] sm:$0xff]
  %v275 = vld [vmem:[%s1 + $0x7c0] sm:$0xff]
  %v276 = vld [vmem:[%s1 + $0x7c8] sm:$0xff]
  %v277 = vld [vmem:[%s1 + $0x7d0] sm:$0xff]
  %v278 = vld [vmem:[%s1 + $0x7d8] sm:$0xff]
  %v279 = vld [vmem:[%s1 + $0x7e0] sm:$0xff]
  %v280 = vld [vmem:[%s1 + $0x7e8] sm:$0xff]
  %v281 = vld [vmem:[%s1 + $0x7f0] sm:$0xff]
  %v282 = vld [vmem:[%s1 + $0x7f8] sm:$0xff]
  %v283 = vld [vmem:[%s2] sm:$0xf]
  %v285 = vperm.slane %v283, 0
  %v286 = vperm.slane %v283, 1
  %v287 = vperm.slane %v283, 2
  %v288 = vperm.slane %v283, 3
  %294 = vst [vmem:[#allocation1] ss:$9 sm:$0xff] %v26
  %v295 = vld [vmem:[#allocation1] sm:$0xff]
  %v296 = vld [vmem:[#allocation1 + $0x9] sm:$0xff]
  %v297 = vld [vmem:[#allocation1 + $0x12] sm:$0xff]
  %v298 = vld [vmem:[#allocation1 + $0x1b] sm:$0xff]
  %v299 = vld [vmem:[#allocation1 + $0x24] sm:$0xff]
  %v300 = vld [vmem:[#allocation1 + $0x2d] sm:$0xff]
  %v301 = vld [vmem:[#allocation1 + $0x36] sm:$0xff]
  %v302 = vld [vmem:[#allocation1 + $0x3f] sm:$0xff]
  %v567 = vunpack.c.l.b16 %v27
  %v568 = vunpack.c.h.b16 %v27
  %v569 = vunpack.c.l.b16 %v28
  %v570 = vunpack.c.h.b16 %v28
  %v571 = vunpack.c.l.b16 %v29
  %v572 = vunpack.c.h.b16 %v29
  %v573 = vunpack.c.l.b16 %v30
  %v574 = vunpack.c.h.b16 %v30
  %v575 = vunpack.c.l.b16 %v31
  %v576 = vunpack.c.h.b16 %v31
  %v577 = vunpack.c.l.b16 %v32
  %v578 = vunpack.c.h.b16 %v32
  %v579 = vunpack.c.l.b16 %v33
  %v580 = vunpack.c.h.b16 %v33
  %v581 = vunpack.c.l.b16 %v34
  %v582 = vunpack.c.h.b16 %v34
  %v583 = vunpack.c.l.b16 %v35
  %v584 = vunpack.c.h.b16 %v35
  %v585 = vunpack.c.l.b16 %v36
  %v586 = vunpack.c.h.b16 %v36
  %v587 = vunpack.c.l.b16 %v37
  %v588 = vunpack.c.h.b16 %v37
  %v589 = vunpack.c.l.b16 %v38
  %v590 = vunpack.c.h.b16 %v38
  %v591 = vunpack.c.l.b16 %v39
  %v592 = vunpack.c.h.b16 %v39
  %v593 = vunpack.c.l.b16 %v40
  %v594 = vunpack.c.h.b16 %v40
  %v595 = vunpack.c.l.b16 %v41
  %v596 = vunpack.c.h.b16 %v41
  %v597 = vunpack.c.l.b16 %v42
  %v598 = vunpack.c.h.b16 %v42
  %v599 = vunpack.c.l.b16 %v43
  %v600 = vunpack.c.h.b16 %v43
  %v601 = vunpack.c.l.b16 %v44
  %v602 = vunpack.c.h.b16 %v44
  %v603 = vunpack.c.l.b16 %v45
  %v604 = vunpack.c.h.b16 %v45
  %v605 = vunpack.c.l.b16 %v46
  %v606 = vunpack.c.h.b16 %v46
  %v607 = vunpack.c.l.b16 %v47
  %v608 = vunpack.c.h.b16 %v47
  %v609 = vunpack.c.l.b16 %v48
  %v610 = vunpack.c.h.b16 %v48
  %v611 = vunpack.c.l.b16 %v49
  %v612 = vunpack.c.h.b16 %v49
  %v613 = vunpack.c.l.b16 %v50
  %v614 = vunpack.c.h.b16 %v50
  %v615 = vunpack.c.l.b16 %v51
  %v616 = vunpack.c.h.b16 %v51
  %v617 = vunpack.c.l.b16 %v52
  %v618 = vunpack.c.h.b16 %v52
  %v619 = vunpack.c.l.b16 %v53
  %v620 = vunpack.c.h.b16 %v53
  %v621 = vunpack.c.l.b16 %v54
  %v622 = vunpack.c.h.b16 %v54
  %v623 = vunpack.c.l.b16 %v55
  %v624 = vunpack.c.h.b16 %v55
  %v625 = vunpack.c.l.b16 %v56
  %v626 = vunpack.c.h.b16 %v56
  %v627 = vunpack.c.l.b16 %v57
  %v628 = vunpack.c.h.b16 %v57
  %v629 = vunpack.c.l.b16 %v58
  %v630 = vunpack.c.h.b16 %v58
  %v631 = vunpack.c.l.b16 %v59
  %v632 = vunpack.c.h.b16 %v59
  %v633 = vunpack.c.l.b16 %v60
  %v634 = vunpack.c.h.b16 %v60
  %v635 = vunpack.c.l.b16 %v61
  %v636 = vunpack.c.h.b16 %v61
  %v637 = vunpack.c.l.b16 %v62
  %v638 = vunpack.c.h.b16 %v62
  %v639 = vunpack.c.l.b16 %v63
  %v640 = vunpack.c.h.b16 %v63
  %v641 = vunpack.c.l.b16 %v64
  %v642 = vunpack.c.h.b16 %v64
  %v643 = vunpack.c.l.b16 %v65
  %v644 = vunpack.c.h.b16 %v65
  %v645 = vunpack.c.l.b16 %v66
  %v646 = vunpack.c.h.b16 %v66
  %v647 = vunpack.c.l.b16 %v67
  %v648 = vunpack.c.h.b16 %v67
  %v649 = vunpack.c.l.b16 %v68
  %v650 = vunpack.c.h.b16 %v68
  %v651 = vunpack.c.l.b16 %v69
  %v652 = vunpack.c.h.b16 %v69
  %v653 = vunpack.c.l.b16 %v70
  %v654 = vunpack.c.h.b16 %v70
  %v655 = vunpack.c.l.b16 %v71
  %v656 = vunpack.c.h.b16 %v71
  %v657 = vunpack.c.l.b16 %v72
  %v658 = vunpack.c.h.b16 %v72
  %v659 = vunpack.c.l.b16 %v73
  %v660 = vunpack.c.h.b16 %v73
  %v661 = vunpack.c.l.b16 %v74
  %v662 = vunpack.c.h.b16 %v74
  %v663 = vunpack.c.l.b16 %v75
  %v664 = vunpack.c.h.b16 %v75
  %v665 = vunpack.c.l.b16 %v76
  %v666 = vunpack.c.h.b16 %v76
  %v667 = vunpack.c.l.b16 %v77
  %v668 = vunpack.c.h.b16 %v77
  %v669 = vunpack.c.l.b16 %v78
  %v670 = vunpack.c.h.b16 %v78
  %v671 = vunpack.c.l.b16 %v79
  %v672 = vunpack.c.h.b16 %v79
  %v673 = vunpack.c.l.b16 %v80
  %v674 = vunpack.c.h.b16 %v80
  %v675 = vunpack.c.l.b16 %v81
  %v676 = vunpack.c.h.b16 %v81
  %v677 = vunpack.c.l.b16 %v82
  %v678 = vunpack.c.h.b16 %v82
  %v679 = vunpack.c.l.b16 %v83
  %v680 = vunpack.c.h.b16 %v83
  %v681 = vunpack.c.l.b16 %v84
  %v682 = vunpack.c.h.b16 %v84
  %v683 = vunpack.c.l.b16 %v85
  %v684 = vunpack.c.h.b16 %v85
  %v685 = vunpack.c.l.b16 %v86
  %v686 = vunpack.c.h.b16 %v86
  %v687 = vunpack.c.l.b16 %v87
  %v688 = vunpack.c.h.b16 %v87
  %v689 = vunpack.c.l.b16 %v88
  %v690 = vunpack.c.h.b16 %v88
  %v691 = vunpack.c.l.b16 %v89
  %v692 = vunpack.c.h.b16 %v89
  %v693 = vunpack.c.l.b16 %v90
  %v694 = vunpack.c.h.b16 %v90
  %v695 = vunpack.c.l.b16 %v91
  %v696 = vunpack.c.h.b16 %v91
  %v697 = vunpack.c.l.b16 %v92
  %v698 = vunpack.c.h.b16 %v92
  %v699 = vunpack.c.l.b16 %v93
  %v700 = vunpack.c.h.b16 %v93
  %v701 = vunpack.c.l.b16 %v94
  %v702 = vunpack.c.h.b16 %v94
  %v703 = vunpack.c.l.b16 %v95
  %v704 = vunpack.c.h.b16 %v95
  %v705 = vunpack.c.l.b16 %v96
  %v706 = vunpack.c.h.b16 %v96
  %v707 = vunpack.c.l.b16 %v97
  %v708 = vunpack.c.h.b16 %v97
  %v709 = vunpack.c.l.b16 %v98
  %v710 = vunpack.c.h.b16 %v98
  %v711 = vunpack.c.l.b16 %v99
  %v712 = vunpack.c.h.b16 %v99
  %v713 = vunpack.c.l.b16 %v100
  %v714 = vunpack.c.h.b16 %v100
  %v715 = vunpack.c.l.b16 %v101
  %v716 = vunpack.c.h.b16 %v101
  %v717 = vunpack.c.l.b16 %v102
  %v718 = vunpack.c.h.b16 %v102
  %v719 = vunpack.c.l.b16 %v103
  %v720 = vunpack.c.h.b16 %v103
  %v721 = vunpack.c.l.b16 %v104
  %v722 = vunpack.c.h.b16 %v104
  %v723 = vunpack.c.l.b16 %v105
  %v724 = vunpack.c.h.b16 %v105
  %v725 = vunpack.c.l.b16 %v106
  %v726 = vunpack.c.h.b16 %v106
  %v727 = vunpack.c.l.b16 %v107
  %v728 = vunpack.c.h.b16 %v107
  %v729 = vunpack.c.l.b16 %v108
  %v730 = vunpack.c.h.b16 %v108
  %v731 = vunpack.c.l.b16 %v109
  %v732 = vunpack.c.h.b16 %v109
  %v733 = vunpack.c.l.b16 %v110
  %v734 = vunpack.c.h.b16 %v110
  %v735 = vunpack.c.l.b16 %v111
  %v736 = vunpack.c.h.b16 %v111
  %v737 = vunpack.c.l.b16 %v112
  %v738 = vunpack.c.h.b16 %v112
  %v739 = vunpack.c.l.b16 %v113
  %v740 = vunpack.c.h.b16 %v113
  %v741 = vunpack.c.l.b16 %v114
  %v742 = vunpack.c.h.b16 %v114
  %v743 = vunpack.c.l.b16 %v115
  %v744 = vunpack.c.h.b16 %v115
  %v745 = vunpack.c.l.b16 %v116
  %v746 = vunpack.c.h.b16 %v116
  %v747 = vunpack.c.l.b16 %v117
  %v748 = vunpack.c.h.b16 %v117
  %v749 = vunpack.c.l.b16 %v118
  %v750 = vunpack.c.h.b16 %v118
  %v751 = vunpack.c.l.b16 %v119
  %v752 = vunpack.c.h.b16 %v119
  %v753 = vunpack.c.l.b16 %v120
  %v754 = vunpack.c.h.b16 %v120
  %v755 = vunpack.c.l.b16 %v121
  %v756 = vunpack.c.h.b16 %v121
  %v757 = vunpack.c.l.b16 %v122
  %v758 = vunpack.c.h.b16 %v122
  %v759 = vunpack.c.l.b16 %v123
  %v760 = vunpack.c.h.b16 %v123
  %v761 = vunpack.c.l.b16 %v124
  %v762 = vunpack.c.h.b16 %v124
  %v763 = vunpack.c.l.b16 %v125
  %v764 = vunpack.c.h.b16 %v125
  %v765 = vunpack.c.l.b16 %v126
  %v766 = vunpack.c.h.b16 %v126
  %v767 = vunpack.c.l.b16 %v127
  %v768 = vunpack.c.h.b16 %v127
  %v769 = vunpack.c.l.b16 %v128
  %v770 = vunpack.c.h.b16 %v128
  %v771 = vunpack.c.l.b16 %v129
  %v772 = vunpack.c.h.b16 %v129
  %v773 = vunpack.c.l.b16 %v130
  %v774 = vunpack.c.h.b16 %v130
  %v775 = vunpack.c.l.b16 %v131
  %v776 = vunpack.c.h.b16 %v131
  %v777 = vunpack.c.l.b16 %v132
  %v778 = vunpack.c.h.b16 %v132
  %v779 = vunpack.c.l.b16 %v133
  %v780 = vunpack.c.h.b16 %v133
  %v781 = vunpack.c.l.b16 %v134
  %v782 = vunpack.c.h.b16 %v134
  %v783 = vunpack.c.l.b16 %v135
  %v784 = vunpack.c.h.b16 %v135
  %v785 = vunpack.c.l.b16 %v136
  %v786 = vunpack.c.h.b16 %v136
  %v787 = vunpack.c.l.b16 %v137
  %v788 = vunpack.c.h.b16 %v137
  %v789 = vunpack.c.l.b16 %v138
  %v790 = vunpack.c.h.b16 %v138
  %v791 = vunpack.c.l.b16 %v139
  %v792 = vunpack.c.h.b16 %v139
  %v793 = vunpack.c.l.b16 %v140
  %v794 = vunpack.c.h.b16 %v140
  %v795 = vunpack.c.l.b16 %v141
  %v796 = vunpack.c.h.b16 %v141
  %v797 = vunpack.c.l.b16 %v142
  %v798 = vunpack.c.h.b16 %v142
  %v799 = vunpack.c.l.b16 %v143
  %v800 = vunpack.c.h.b16 %v143
  %v801 = vunpack.c.l.b16 %v144
  %v802 = vunpack.c.h.b16 %v144
  %v803 = vunpack.c.l.b16 %v145
  %v804 = vunpack.c.h.b16 %v145
  %v805 = vunpack.c.l.b16 %v146
  %v806 = vunpack.c.h.b16 %v146
  %v807 = vunpack.c.l.b16 %v147
  %v808 = vunpack.c.h.b16 %v147
  %v809 = vunpack.c.l.b16 %v148
  %v810 = vunpack.c.h.b16 %v148
  %v811 = vunpack.c.l.b16 %v149
  %v812 = vunpack.c.h.b16 %v149
  %v813 = vunpack.c.l.b16 %v150
  %v814 = vunpack.c.h.b16 %v150
  %v815 = vunpack.c.l.b16 %v151
  %v816 = vunpack.c.h.b16 %v151
  %v817 = vunpack.c.l.b16 %v152
  %v818 = vunpack.c.h.b16 %v152
  %v819 = vunpack.c.l.b16 %v153
  %v820 = vunpack.c.h.b16 %v153
  %v821 = vunpack.c.l.b16 %v154
  %v822 = vunpack.c.h.b16 %v154
  %v823 = vunpack.c.l.b16 %v155
  %v824 = vunpack.c.h.b16 %v155
  %v825 = vunpack.c.l.b16 %v156
  %v826 = vunpack.c.h.b16 %v156
  %v827 = vunpack.c.l.b16 %v157
  %v828 = vunpack.c.h.b16 %v157
  %v829 = vunpack.c.l.b16 %v158
  %v830 = vunpack.c.h.b16 %v158
  %v831 = vunpack.c.l.b16 %v159
  %v832 = vunpack.c.h.b16 %v159
  %v833 = vunpack.c.l.b16 %v160
  %v834 = vunpack.c.h.b16 %v160
  %v835 = vunpack.c.l.b16 %v161
  %v836 = vunpack.c.h.b16 %v161
  %v837 = vunpack.c.l.b16 %v162
  %v838 = vunpack.c.h.b16 %v162
  %v839 = vunpack.c.l.b16 %v163
  %v840 = vunpack.c.h.b16 %v163
  %v841 = vunpack.c.l.b16 %v164
  %v842 = vunpack.c.h.b16 %v164
  %v843 = vunpack.c.l.b16 %v165
  %v844 = vunpack.c.h.b16 %v165
  %v845 = vunpack.c.l.b16 %v166
  %v846 = vunpack.c.h.b16 %v166
  %v847 = vunpack.c.l.b16 %v167
  %v848 = vunpack.c.h.b16 %v167
  %v849 = vunpack.c.l.b16 %v168
  %v850 = vunpack.c.h.b16 %v168
  %v851 = vunpack.c.l.b16 %v169
  %v852 = vunpack.c.h.b16 %v169
  %v853 = vunpack.c.l.b16 %v170
  %v854 = vunpack.c.h.b16 %v170
  %v855 = vunpack.c.l.b16 %v171
  %v856 = vunpack.c.h.b16 %v171
  %v857 = vunpack.c.l.b16 %v172
  %v858 = vunpack.c.h.b16 %v172
  %v859 = vunpack.c.l.b16 %v173
  %v860 = vunpack.c.h.b16 %v173
  %v861 = vunpack.c.l.b16 %v174
  %v862 = vunpack.c.h.b16 %v174
  %v863 = vunpack.c.l.b16 %v175
  %v864 = vunpack.c.h.b16 %v175
  %v865 = vunpack.c.l.b16 %v176
  %v866 = vunpack.c.h.b16 %v176
  %v867 = vunpack.c.l.b16 %v177
  %v868 = vunpack.c.h.b16 %v177
  %v869 = vunpack.c.l.b16 %v178
  %v870 = vunpack.c.h.b16 %v178
  %v871 = vunpack.c.l.b16 %v179
  %v872 = vunpack.c.h.b16 %v179
  %v873 = vunpack.c.l.b16 %v180
  %v874 = vunpack.c.h.b16 %v180
  %v875 = vunpack.c.l.b16 %v181
  %v876 = vunpack.c.h.b16 %v181
  %v877 = vunpack.c.l.b16 %v182
  %v878 = vunpack.c.h.b16 %v182
  %v879 = vunpack.c.l.b16 %v183
  %v880 = vunpack.c.h.b16 %v183
  %v881 = vunpack.c.l.b16 %v184
  %v882 = vunpack.c.h.b16 %v184
  %v883 = vunpack.c.l.b16 %v185
  %v884 = vunpack.c.h.b16 %v185
  %v885 = vunpack.c.l.b16 %v186
  %v886 = vunpack.c.h.b16 %v186
  %v887 = vunpack.c.l.b16 %v187
  %v888 = vunpack.c.h.b16 %v187
  %v889 = vunpack.c.l.b16 %v188
  %v890 = vunpack.c.h.b16 %v188
  %v891 = vunpack.c.l.b16 %v189
  %v892 = vunpack.c.h.b16 %v189
  %v893 = vunpack.c.l.b16 %v190
  %v894 = vunpack.c.h.b16 %v190
  %v895 = vunpack.c.l.b16 %v191
  %v896 = vunpack.c.h.b16 %v191
  %v897 = vunpack.c.l.b16 %v192
  %v898 = vunpack.c.h.b16 %v192
  %v899 = vunpack.c.l.b16 %v193
  %v900 = vunpack.c.h.b16 %v193
  %v901 = vunpack.c.l.b16 %v194
  %v902 = vunpack.c.h.b16 %v194
  %v903 = vunpack.c.l.b16 %v195
  %v904 = vunpack.c.h.b16 %v195
  %v905 = vunpack.c.l.b16 %v196
  %v906 = vunpack.c.h.b16 %v196
  %v907 = vunpack.c.l.b16 %v197
  %v908 = vunpack.c.h.b16 %v197
  %v909 = vunpack.c.l.b16 %v198
  %v910 = vunpack.c.h.b16 %v198
  %v911 = vunpack.c.l.b16 %v199
  %v912 = vunpack.c.h.b16 %v199
  %v913 = vunpack.c.l.b16 %v200
  %v914 = vunpack.c.h.b16 %v200
  %v915 = vunpack.c.l.b16 %v201
  %v916 = vunpack.c.h.b16 %v201
  %v917 = vunpack.c.l.b16 %v202
  %v918 = vunpack.c.h.b16 %v202
  %v919 = vunpack.c.l.b16 %v203
  %v920 = vunpack.c.h.b16 %v203
  %v921 = vunpack.c.l.b16 %v204
  %v922 = vunpack.c.h.b16 %v204
  %v923 = vunpack.c.l.b16 %v205
  %v924 = vunpack.c.h.b16 %v205
  %v925 = vunpack.c.l.b16 %v206
  %v926 = vunpack.c.h.b16 %v206
  %v927 = vunpack.c.l.b16 %v207
  %v928 = vunpack.c.h.b16 %v207
  %v929 = vunpack.c.l.b16 %v208
  %v930 = vunpack.c.h.b16 %v208
  %v931 = vunpack.c.l.b16 %v209
  %v932 = vunpack.c.h.b16 %v209
  %v933 = vunpack.c.l.b16 %v210
  %v934 = vunpack.c.h.b16 %v210
  %v935 = vunpack.c.l.b16 %v211
  %v936 = vunpack.c.h.b16 %v211
  %v937 = vunpack.c.l.b16 %v212
  %v938 = vunpack.c.h.b16 %v212
  %v939 = vunpack.c.l.b16 %v213
  %v940 = vunpack.c.h.b16 %v213
  %v941 = vunpack.c.l.b16 %v214
  %v942 = vunpack.c.h.b16 %v214
  %v943 = vunpack.c.l.b16 %v215
  %v944 = vunpack.c.h.b16 %v215
  %v945 = vunpack.c.l.b16 %v216
  %v946 = vunpack.c.h.b16 %v216
  %v947 = vunpack.c.l.b16 %v217
  %v948 = vunpack.c.h.b16 %v217
  %v949 = vunpack.c.l.b16 %v218
  %v950 = vunpack.c.h.b16 %v218
  %v951 = vunpack.c.l.b16 %v219
  %v952 = vunpack.c.h.b16 %v219
  %v953 = vunpack.c.l.b16 %v220
  %v954 = vunpack.c.h.b16 %v220
  %v955 = vunpack.c.l.b16 %v221
  %v956 = vunpack.c.h.b16 %v221
  %v957 = vunpack.c.l.b16 %v222
  %v958 = vunpack.c.h.b16 %v222
  %v959 = vunpack.c.l.b16 %v223
  %v960 = vunpack.c.h.b16 %v223
  %v961 = vunpack.c.l.b16 %v224
  %v962 = vunpack.c.h.b16 %v224
  %v963 = vunpack.c.l.b16 %v225
  %v964 = vunpack.c.h.b16 %v225
  %v965 = vunpack.c.l.b16 %v226
  %v966 = vunpack.c.h.b16 %v226
  %v967 = vunpack.c.l.b16 %v227
  %v968 = vunpack.c.h.b16 %v227
  %v969 = vunpack.c.l.b16 %v228
  %v970 = vunpack.c.h.b16 %v228
  %v971 = vunpack.c.l.b16 %v229
  %v972 = vunpack.c.h.b16 %v229
  %v973 = vunpack.c.l.b16 %v230
  %v974 = vunpack.c.h.b16 %v230
  %v975 = vunpack.c.l.b16 %v231
  %v976 = vunpack.c.h.b16 %v231
  %v977 = vunpack.c.l.b16 %v232
  %v978 = vunpack.c.h.b16 %v232
  %v979 = vunpack.c.l.b16 %v233
  %v980 = vunpack.c.h.b16 %v233
  %v981 = vunpack.c.l.b16 %v234
  %v982 = vunpack.c.h.b16 %v234
  %v983 = vunpack.c.l.b16 %v235
  %v984 = vunpack.c.h.b16 %v235
  %v985 = vunpack.c.l.b16 %v236
  %v986 = vunpack.c.h.b16 %v236
  %v987 = vunpack.c.l.b16 %v237
  %v988 = vunpack.c.h.b16 %v237
  %v989 = vunpack.c.l.b16 %v238
  %v990 = vunpack.c.h.b16 %v238
  %v991 = vunpack.c.l.b16 %v239
  %v992 = vunpack.c.h.b16 %v239
  %v993 = vunpack.c.l.b16 %v240
  %v994 = vunpack.c.h.b16 %v240
  %v995 = vunpack.c.l.b16 %v241
  %v996 = vunpack.c.h.b16 %v241
  %v997 = vunpack.c.l.b16 %v242
  %v998 = vunpack.c.h.b16 %v242
  %v999 = vunpack.c.l.b16 %v243
  %v1000 = vunpack.c.h.b16 %v243
  %v1001 = vunpack.c.l.b16 %v244
  %v1002 = vunpack.c.h.b16 %v244
  %v1003 = vunpack.c.l.b16 %v245
  %v1004 = vunpack.c.h.b16 %v245
  %v1005 = vunpack.c.l.b16 %v246
  %v1006 = vunpack.c.h.b16 %v246
  %v1007 = vunpack.c.l.b16 %v247
  %v1008 = vunpack.c.h.b16 %v247
  %v1009 = vunpack.c.l.b16 %v248
  %v1010 = vunpack.c.h.b16 %v248
  %v1011 = vunpack.c.l.b16 %v249
  %v1012 = vunpack.c.h.b16 %v249
  %v1013 = vunpack.c.l.b16 %v250
  %v1014 = vunpack.c.h.b16 %v250
  %v1015 = vunpack.c.l.b16 %v251
  %v1016 = vunpack.c.h.b16 %v251
  %v1017 = vunpack.c.l.b16 %v252
  %v1018 = vunpack.c.h.b16 %v252
  %v1019 = vunpack.c.l.b16 %v253
  %v1020 = vunpack.c.h.b16 %v253
  %v1021 = vunpack.c.l.b16 %v254
  %v1022 = vunpack.c.h.b16 %v254
  %v1023 = vunpack.c.l.b16 %v255
  %v1024 = vunpack.c.h.b16 %v255
  %v1025 = vunpack.c.l.b16 %v256
  %v1026 = vunpack.c.h.b16 %v256
  %v1027 = vunpack.c.l.b16 %v257
  %v1028 = vunpack.c.h.b16 %v257
  %v1029 = vunpack.c.l.b16 %v258
  %v1030 = vunpack.c.h.b16 %v258
  %v1031 = vunpack.c.l.b16 %v259
  %v1032 = vunpack.c.h.b16 %v259
  %v1033 = vunpack.c.l.b16 %v260
  %v1034 = vunpack.c.h.b16 %v260
  %v1035 = vunpack.c.l.b16 %v261
  %v1036 = vunpack.c.h.b16 %v261
  %v1037 = vunpack.c.l.b16 %v262
  %v1038 = vunpack.c.h.b16 %v262
  %v1039 = vunpack.c.l.b16 %v263
  %v1040 = vunpack.c.h.b16 %v263
  %v1041 = vunpack.c.l.b16 %v264
  %v1042 = vunpack.c.h.b16 %v264
  %v1043 = vunpack.c.l.b16 %v265
  %v1044 = vunpack.c.h.b16 %v265
  %v1045 = vunpack.c.l.b16 %v266
  %v1046 = vunpack.c.h.b16 %v266
  %v1047 = vunpack.c.l.b16 %v267
  %v1048 = vunpack.c.h.b16 %v267
  %v1049 = vunpack.c.l.b16 %v268
  %v1050 = vunpack.c.h.b16 %v268
  %v1051 = vunpack.c.l.b16 %v269
  %v1052 = vunpack.c.h.b16 %v269
  %v1053 = vunpack.c.l.b16 %v270
  %v1054 = vunpack.c.h.b16 %v270
  %v1055 = vunpack.c.l.b16 %v271
  %v1056 = vunpack.c.h.b16 %v271
  %v1057 = vunpack.c.l.b16 %v272
  %v1058 = vunpack.c.h.b16 %v272
  %v1059 = vunpack.c.l.b16 %v273
  %v1060 = vunpack.c.h.b16 %v273
  %v1061 = vunpack.c.l.b16 %v274
  %v1062 = vunpack.c.h.b16 %v274
  %v1063 = vunpack.c.l.b16 %v275
  %v1064 = vunpack.c.h.b16 %v275
  %v1065 = vunpack.c.l.b16 %v276
  %v1066 = vunpack.c.h.b16 %v276
  %v1067 = vunpack.c.l.b16 %v277
  %v1068 = vunpack.c.h.b16 %v277
  %v1069 = vunpack.c.l.b16 %v278
  %v1070 = vunpack.c.h.b16 %v278
  %v1071 = vunpack.c.l.b16 %v279
  %v1072 = vunpack.c.h.b16 %v279
  %v1073 = vunpack.c.l.b16 %v280
  %v1074 = vunpack.c.h.b16 %v280
  %v1075 = vunpack.c.l.b16 %v281
  %v1076 = vunpack.c.h.b16 %v281
  %v1077 = vunpack.c.l.b16 %v282
  %v1078 = vunpack.c.h.b16 %v282
  %v1079 = vpack.c.b16 %v571, %v567
  %v1080 = vpack.c.b16 %v572, %v568
  %v1081 = vpack.c.b16 %v573, %v569
  %v1082 = vpack.c.b16 %v574, %v570
  %v1083 = vpack.c.b16 %v579, %v575
  %v1084 = vpack.c.b16 %v580, %v576
  %v1085 = vpack.c.b16 %v581, %v577
  %v1086 = vpack.c.b16 %v582, %v578
  %v1087 = vpack.c.b16 %v587, %v583
  %v1088 = vpack.c.b16 %v588, %v584
  %v1089 = vpack.c.b16 %v589, %v585
  %v1090 = vpack.c.b16 %v590, %v586
  %v1091 = vpack.c.b16 %v595, %v591
  %v1092 = vpack.c.b16 %v596, %v592
  %v1093 = vpack.c.b16 %v597, %v593
  %v1094 = vpack.c.b16 %v598, %v594
  %v1095 = vpack.c.b16 %v603, %v599
  %v1096 = vpack.c.b16 %v604, %v600
  %v1097 = vpack.c.b16 %v605, %v601
  %v1098 = vpack.c.b16 %v606, %v602
  %v1099 = vpack.c.b16 %v611, %v607
  %v1100 = vpack.c.b16 %v612, %v608
  %v1101 = vpack.c.b16 %v613, %v609
  %v1102 = vpack.c.b16 %v614, %v610
  %v1103 = vpack.c.b16 %v619, %v615
  %v1104 = vpack.c.b16 %v620, %v616
  %v1105 = vpack.c.b16 %v621, %v617
  %v1106 = vpack.c.b16 %v622, %v618
  %v1107 = vpack.c.b16 %v627, %v623
  %v1108 = vpack.c.b16 %v628, %v624
  %v1109 = vpack.c.b16 %v629, %v625
  %v1110 = vpack.c.b16 %v630, %v626
  %v1111 = vpack.c.b16 %v635, %v631
  %v1112 = vpack.c.b16 %v636, %v632
  %v1113 = vpack.c.b16 %v637, %v633
  %v1114 = vpack.c.b16 %v638, %v634
  %v1115 = vpack.c.b16 %v643, %v639
  %v1116 = vpack.c.b16 %v644, %v640
  %v1117 = vpack.c.b16 %v645, %v641
  %v1118 = vpack.c.b16 %v646, %v642
  %v1119 = vpack.c.b16 %v651, %v647
  %v1120 = vpack.c.b16 %v652, %v648
  %v1121 = vpack.c.b16 %v653, %v649
  %v1122 = vpack.c.b16 %v654, %v650
  %v1123 = vpack.c.b16 %v659, %v655
  %v1124 = vpack.c.b16 %v660, %v656
  %v1125 = vpack.c.b16 %v661, %v657
  %v1126 = vpack.c.b16 %v662, %v658
  %v1127 = vpack.c.b16 %v667, %v663
  %v1128 = vpack.c.b16 %v668, %v664
  %v1129 = vpack.c.b16 %v669, %v665
  %v1130 = vpack.c.b16 %v670, %v666
  %v1131 = vpack.c.b16 %v675, %v671
  %v1132 = vpack.c.b16 %v676, %v672
  %v1133 = vpack.c.b16 %v677, %v673
  %v1134 = vpack.c.b16 %v678, %v674
  %v1135 = vpack.c.b16 %v683, %v679
  %v1136 = vpack.c.b16 %v684, %v680
  %v1137 = vpack.c.b16 %v685, %v681
  %v1138 = vpack.c.b16 %v686, %v682
  %v1139 = vpack.c.b16 %v691, %v687
  %v1140 = vpack.c.b16 %v692, %v688
  %v1141 = vpack.c.b16 %v693, %v689
  %v1142 = vpack.c.b16 %v694, %v690
  %v1143 = vpack.c.b16 %v699, %v695
  %v1144 = vpack.c.b16 %v700, %v696
  %v1145 = vpack.c.b16 %v701, %v697
  %v1146 = vpack.c.b16 %v702, %v698
  %v1147 = vpack.c.b16 %v707, %v703
  %v1148 = vpack.c.b16 %v708, %v704
  %v1149 = vpack.c.b16 %v709, %v705
  %v1150 = vpack.c.b16 %v710, %v706
  %v1151 = vpack.c.b16 %v715, %v711
  %v1152 = vpack.c.b16 %v716, %v712
  %v1153 = vpack.c.b16 %v717, %v713
  %v1154 = vpack.c.b16 %v718, %v714
  %v1155 = vpack.c.b16 %v723, %v719
  %v1156 = vpack.c.b16 %v724, %v720
  %v1157 = vpack.c.b16 %v725, %v721
  %v1158 = vpack.c.b16 %v726, %v722
  %v1159 = vpack.c.b16 %v731, %v727
  %v1160 = vpack.c.b16 %v732, %v728
  %v1161 = vpack.c.b16 %v733, %v729
  %v1162 = vpack.c.b16 %v734, %v730
  %v1163 = vpack.c.b16 %v739, %v735
  %v1164 = vpack.c.b16 %v740, %v736
  %v1165 = vpack.c.b16 %v741, %v737
  %v1166 = vpack.c.b16 %v742, %v738
  %v1167 = vpack.c.b16 %v747, %v743
  %v1168 = vpack.c.b16 %v748, %v744
  %v1169 = vpack.c.b16 %v749, %v745
  %v1170 = vpack.c.b16 %v750, %v746
  %v1171 = vpack.c.b16 %v755, %v751
  %v1172 = vpack.c.b16 %v756, %v752
  %v1173 = vpack.c.b16 %v757, %v753
  %v1174 = vpack.c.b16 %v758, %v754
  %v1175 = vpack.c.b16 %v763, %v759
  %v1176 = vpack.c.b16 %v764, %v760
  %v1177 = vpack.c.b16 %v765, %v761
  %v1178 = vpack.c.b16 %v766, %v762
  %v1179 = vpack.c.b16 %v771, %v767
  %v1180 = vpack.c.b16 %v772, %v768
  %v1181 = vpack.c.b16 %v773, %v769
  %v1182 = vpack.c.b16 %v774, %v770
  %v1183 = vpack.c.b16 %v779, %v775
  %v1184 = vpack.c.b16 %v780, %v776
  %v1185 = vpack.c.b16 %v781, %v777
  %v1186 = vpack.c.b16 %v782, %v778
  %v1187 = vpack.c.b16 %v787, %v783
  %v1188 = vpack.c.b16 %v788, %v784
  %v1189 = vpack.c.b16 %v789, %v785
  %v1190 = vpack.c.b16 %v790, %v786
  %v1191 = vpack.c.b16 %v795, %v791
  %v1192 = vpack.c.b16 %v796, %v792
  %v1193 = vpack.c.b16 %v797, %v793
  %v1194 = vpack.c.b16 %v798, %v794
  %v1195 = vpack.c.b16 %v803, %v799
  %v1196 = vpack.c.b16 %v804, %v800
  %v1197 = vpack.c.b16 %v805, %v801
  %v1198 = vpack.c.b16 %v806, %v802
  %v1199 = vpack.c.b16 %v811, %v807
  %v1200 = vpack.c.b16 %v812, %v808
  %v1201 = vpack.c.b16 %v813, %v809
  %v1202 = vpack.c.b16 %v814, %v810
  %v1203 = vpack.c.b16 %v819, %v815
  %v1204 = vpack.c.b16 %v820, %v816
  %v1205 = vpack.c.b16 %v821, %v817
  %v1206 = vpack.c.b16 %v822, %v818
  %v1207 = vpack.c.b16 %v827, %v823
  %v1208 = vpack.c.b16 %v828, %v824
  %v1209 = vpack.c.b16 %v829, %v825
  %v1210 = vpack.c.b16 %v830, %v826
  %v1211 = vpack.c.b16 %v835, %v831
  %v1212 = vpack.c.b16 %v836, %v832
  %v1213 = vpack.c.b16 %v837, %v833
  %v1214 = vpack.c.b16 %v838, %v834
  %v1215 = vpack.c.b16 %v843, %v839
  %v1216 = vpack.c.b16 %v844, %v840
  %v1217 = vpack.c.b16 %v845, %v841
  %v1218 = vpack.c.b16 %v846, %v842
  %v1219 = vpack.c.b16 %v851, %v847
  %v1220 = vpack.c.b16 %v852, %v848
  %v1221 = vpack.c.b16 %v853, %v849
  %v1222 = vpack.c.b16 %v854, %v850
  %v1223 = vpack.c.b16 %v859, %v855
  %v1224 = vpack.c.b16 %v860, %v856
  %v1225 = vpack.c.b16 %v861, %v857
  %v1226 = vpack.c.b16 %v862, %v858
  %v1227 = vpack.c.b16 %v867, %v863
  %v1228 = vpack.c.b16 %v868, %v864
  %v1229 = vpack.c.b16 %v869, %v865
  %v1230 = vpack.c.b16 %v870, %v866
  %v1231 = vpack.c.b16 %v875, %v871
  %v1232 = vpack.c.b16 %v876, %v872
  %v1233 = vpack.c.b16 %v877, %v873
  %v1234 = vpack.c.b16 %v878, %v874
  %v1235 = vpack.c.b16 %v883, %v879
  %v1236 = vpack.c.b16 %v884, %v880
  %v1237 = vpack.c.b16 %v885, %v881
  %v1238 = vpack.c.b16 %v886, %v882
  %v1239 = vpack.c.b16 %v891, %v887
  %v1240 = vpack.c.b16 %v892, %v888
  %v1241 = vpack.c.b16 %v893, %v889
  %v1242 = vpack.c.b16 %v894, %v890
  %v1243 = vpack.c.b16 %v899, %v895
  %v1244 = vpack.c.b16 %v900, %v896
  %v1245 = vpack.c.b16 %v901, %v897
  %v1246 = vpack.c.b16 %v902, %v898
  %v1247 = vpack.c.b16 %v907, %v903
  %v1248 = vpack.c.b16 %v908, %v904
  %v1249 = vpack.c.b16 %v909, %v905
  %v1250 = vpack.c.b16 %v910, %v906
  %v1251 = vpack.c.b16 %v915, %v911
  %v1252 = vpack.c.b16 %v916, %v912
  %v1253 = vpack.c.b16 %v917, %v913
  %v1254 = vpack.c.b16 %v918, %v914
  %v1255 = vpack.c.b16 %v923, %v919
  %v1256 = vpack.c.b16 %v924, %v920
  %v1257 = vpack.c.b16 %v925, %v921
  %v1258 = vpack.c.b16 %v926, %v922
  %v1259 = vpack.c.b16 %v931, %v927
  %v1260 = vpack.c.b16 %v932, %v928
  %v1261 = vpack.c.b16 %v933, %v929
  %v1262 = vpack.c.b16 %v934, %v930
  %v1263 = vpack.c.b16 %v939, %v935
  %v1264 = vpack.c.b16 %v940, %v936
  %v1265 = vpack.c.b16 %v941, %v937
  %v1266 = vpack.c.b16 %v942, %v938
  %v1267 = vpack.c.b16 %v947, %v943
  %v1268 = vpack.c.b16 %v948, %v944
  %v1269 = vpack.c.b16 %v949, %v945
  %v1270 = vpack.c.b16 %v950, %v946
  %v1271 = vpack.c.b16 %v955, %v951
  %v1272 = vpack.c.b16 %v956, %v952
  %v1273 = vpack.c.b16 %v957, %v953
  %v1274 = vpack.c.b16 %v958, %v954
  %v1275 = vpack.c.b16 %v963, %v959
  %v1276 = vpack.c.b16 %v964, %v960
  %v1277 = vpack.c.b16 %v965, %v961
  %v1278 = vpack.c.b16 %v966, %v962
  %v1279 = vpack.c.b16 %v971, %v967
  %v1280 = vpack.c.b16 %v972, %v968
  %v1281 = vpack.c.b16 %v973, %v969
  %v1282 = vpack.c.b16 %v974, %v970
  %v1283 = vpack.c.b16 %v979, %v975
  %v1284 = vpack.c.b16 %v980, %v976
  %v1285 = vpack.c.b16 %v981, %v977
  %v1286 = vpack.c.b16 %v982, %v978
  %v1287 = vpack.c.b16 %v987, %v983
  %v1288 = vpack.c.b16 %v988, %v984
  %v1289 = vpack.c.b16 %v989, %v985
  %v1290 = vpack.c.b16 %v990, %v986
  %v1291 = vpack.c.b16 %v995, %v991
  %v1292 = vpack.c.b16 %v996, %v992
  %v1293 = vpack.c.b16 %v997, %v993
  %v1294 = vpack.c.b16 %v998, %v994
  %v1295 = vpack.c.b16 %v1003, %v999
  %v1296 = vpack.c.b16 %v1004, %v1000
  %v1297 = vpack.c.b16 %v1005, %v1001
  %v1298 = vpack.c.b16 %v1006, %v1002
  %v1299 = vpack.c.b16 %v1011, %v1007
  %v1300 = vpack.c.b16 %v1012, %v1008
  %v1301 = vpack.c.b16 %v1013, %v1009
  %v1302 = vpack.c.b16 %v1014, %v1010
  %v1303 = vpack.c.b16 %v1019, %v1015
  %v1304 = vpack.c.b16 %v1020, %v1016
  %v1305 = vpack.c.b16 %v1021, %v1017
  %v1306 = vpack.c.b16 %v1022, %v1018
  %v1307 = vpack.c.b16 %v1027, %v1023
  %v1308 = vpack.c.b16 %v1028, %v1024
  %v1309 = vpack.c.b16 %v1029, %v1025
  %v1310 = vpack.c.b16 %v1030, %v1026
  %v1311 = vpack.c.b16 %v1035, %v1031
  %v1312 = vpack.c.b16 %v1036, %v1032
  %v1313 = vpack.c.b16 %v1037, %v1033
  %v1314 = vpack.c.b16 %v1038, %v1034
  %v1315 = vpack.c.b16 %v1043, %v1039
  %v1316 = vpack.c.b16 %v1044, %v1040
  %v1317 = vpack.c.b16 %v1045, %v1041
  %v1318 = vpack.c.b16 %v1046, %v1042
  %v1319 = vpack.c.b16 %v1051, %v1047
  %v1320 = vpack.c.b16 %v1052, %v1048
  %v1321 = vpack.c.b16 %v1053, %v1049
  %v1322 = vpack.c.b16 %v1054, %v1050
  %v1323 = vpack.c.b16 %v1059, %v1055
  %v1324 = vpack.c.b16 %v1060, %v1056
  %v1325 = vpack.c.b16 %v1061, %v1057
  %v1326 = vpack.c.b16 %v1062, %v1058
  %v1327 = vpack.c.b16 %v1067, %v1063
  %v1328 = vpack.c.b16 %v1068, %v1064
  %v1329 = vpack.c.b16 %v1069, %v1065
  %v1330 = vpack.c.b16 %v1070, %v1066
  %v1331 = vpack.c.b16 %v1075, %v1071
  %v1332 = vpack.c.b16 %v1076, %v1072
  %v1333 = vpack.c.b16 %v1077, %v1073
  %v1334 = vpack.c.b16 %v1078, %v1074
  %1591 = vmatpush.bf16.msra.mxu0 %v1107
  %1592 = vmatpush.bf16.msra.mxu0 %v1103
  %1593 = vmatpush.bf16.msra.mxu0 %v1099
  %1594 = vmatpush.bf16.msra.mxu0 %v1095
  %1595 = vmatpush.bf16.msra.mxu0 %v1091
  %1596 = vmatpush.bf16.msra.mxu0 %v1087
  %1597 = vmatpush.bf16.msra.mxu0 %v1083
  %1598 = vmatpush.bf16.msra.mxu0 %v1079
  %1599 = vmatmul.bf16.gmra.mxu0 %v295
  %v1600 = vpop.f32.mrf.mxu0
  %v1601 = vadd.f32 %v285, %v1600
  %v1602 = vpop.f32.mrf.mxu0
  %1603 = vdwg.mxu0
  %1604 = vmatpush.bf16.msra.mxu0 %v1139
  %1605 = vmatpush.bf16.msra.mxu0 %v1135
  %1606 = vmatpush.bf16.msra.mxu0 %v1131
  %1607 = vmatpush.bf16.msra.mxu0 %v1127
  %1608 = vmatpush.bf16.msra.mxu0 %v1123
  %1609 = vmatpush.bf16.msra.mxu0 %v1119
  %1610 = vmatpush.bf16.msra.mxu0 %v1115
  %1611 = vmatpush.bf16.msra.mxu0 %v1111
  %1612 = vmatmul.bf16.gmra.mxu0 %v296
  %v1613 = vpop.f32.mrf.mxu0
  %v1614 = vadd.f32 %v1601, %v1613
  %v1615 = vpop.f32.mrf.mxu0
  %1616 = vdwg.mxu0
  %1617 = vmatpush.bf16.msra.mxu0 %v1171
  %1618 = vmatpush.bf16.msra.mxu0 %v1167
  %1619 = vmatpush.bf16.msra.mxu0 %v1163
  %1620 = vmatpush.bf16.msra.mxu0 %v1159
  %1621 = vmatpush.bf16.msra.mxu0 %v1155
  %1622 = vmatpush.bf16.msra.mxu0 %v1151
  %1623 = vmatpush.bf16.msra.mxu0 %v1147
  %1624 = vmatpush.bf16.msra.mxu0 %v1143
  %1625 = vmatmul.bf16.gmra.mxu0 %v297
  %v1626 = vpop.f32.mrf.mxu0
  %v1627 = vadd.f32 %v1614, %v1626
  %v1628 = vpop.f32.mrf.mxu0
  %1629 = vdwg.mxu0
  %1630 = vmatpush.bf16.msra.mxu0 %v1203
  %1631 = vmatpush.bf16.msra.mxu0 %v1199
  %1632 = vmatpush.bf16.msra.mxu0 %v1195
  %1633 = vmatpush.bf16.msra.mxu0 %v1191
  %1634 = vmatpush.bf16.msra.mxu0 %v1187
  %1635 = vmatpush.bf16.msra.mxu0 %v1183
  %1636 = vmatpush.bf16.msra.mxu0 %v1179
  %1637 = vmatpush.bf16.msra.mxu0 %v1175
  %1638 = vmatmul.bf16.gmra.mxu0 %v298
  %v1639 = vpop.f32.mrf.mxu0
  %v1640 = vadd.f32 %v1627, %v1639
  %v1641 = vpop.f32.mrf.mxu0
  %1642 = vdwg.mxu0
  %1643 = vmatpush.bf16.msra.mxu0 %v1235
  %1644 = vmatpush.bf16.msra.mxu0 %v1231
  %1645 = vmatpush.bf16.msra.mxu0 %v1227
  %1646 = vmatpush.bf16.msra.mxu0 %v1223
  %1647 = vmatpush.bf16.msra.mxu0 %v1219
  %1648 = vmatpush.bf16.msra.mxu0 %v1215
  %1649 = vmatpush.bf16.msra.mxu0 %v1211
  %1650 = vmatpush.bf16.msra.mxu0 %v1207
  %1651 = vmatmul.bf16.gmra.mxu0 %v299
  %v1652 = vpop.f32.mrf.mxu0
  %v1653 = vadd.f32 %v1640, %v1652
  %v1654 = vpop.f32.mrf.mxu0
  %1655 = vdwg.mxu0
  %1656 = vmatpush.bf16.msra.mxu0 %v1267
  %1657 = vmatpush.bf16.msra.mxu0 %v1263
  %1658 = vmatpush.bf16.msra.mxu0 %v1259
  %1659 = vmatpush.bf16.msra.mxu0 %v1255
  %1660 = vmatpush.bf16.msra.mxu0 %v1251
  %1661 = vmatpush.bf16.msra.mxu0 %v1247
  %1662 = vmatpush.bf16.msra.mxu0 %v1243
  %1663 = vmatpush.bf16.msra.mxu0 %v1239
  %1664 = vmatmul.bf16.gmra.mxu0 %v300
  %v1665 = vpop.f32.mrf.mxu0
  %v1666 = vadd.f32 %v1653, %v1665
  %v1667 = vpop.f32.mrf.mxu0
  %1668 = vdwg.mxu0
  %1669 = vmatpush.bf16.msra.mxu0 %v1299
  %1670 = vmatpush.bf16.msra.mxu0 %v1295
  %1671 = vmatpush.bf16.msra.mxu0 %v1291
  %1672 = vmatpush.bf16.msra.mxu0 %v1287
  %1673 = vmatpush.bf16.msra.mxu0 %v1283
  %1674 = vmatpush.bf16.msra.mxu0 %v1279
  %1675 = vmatpush.bf16.msra.mxu0 %v1275
  %1676 = vmatpush.bf16.msra.mxu0 %v1271
  %1677 = vmatmul.bf16.gmra.mxu0 %v301
  %v1678 = vpop.f32.mrf.mxu0
  %v1679 = vadd.f32 %v1666, %v1678
  %v1680 = vpop.f32.mrf.mxu0
  %1681 = vdwg.mxu0
  %1682 = vmatpush.bf16.msra.mxu0 %v1331
  %1683 = vmatpush.bf16.msra.mxu0 %v1327
  %1684 = vmatpush.bf16.msra.mxu0 %v1323
  %1685 = vmatpush.bf16.msra.mxu0 %v1319
  %1686 = vmatpush.bf16.msra.mxu0 %v1315
  %1687 = vmatpush.bf16.msra.mxu0 %v1311
  %1688 = vmatpush.bf16.msra.mxu0 %v1307
  %1689 = vmatpush.bf16.msra.mxu0 %v1303
  %1690 = vmatmul.bf16.gmra.mxu0 %v302
  %v1691 = vpop.f32.mrf.mxu0
  %v1692 = vadd.f32 %v1679, %v1691
  %v1693 = vpop.f32.mrf.mxu0
  %1694 = vdwg.mxu0
  %1695 = vmatpush.bf16.msra.mxu0 %v1108
  %1696 = vmatpush.bf16.msra.mxu0 %v1104
  %1697 = vmatpush.bf16.msra.mxu0 %v1100
  %1698 = vmatpush.bf16.msra.mxu0 %v1096
  %1699 = vmatpush.bf16.msra.mxu0 %v1092
  %1700 = vmatpush.bf16.msra.mxu0 %v1088
  %1701 = vmatpush.bf16.msra.mxu0 %v1084
  %1702 = vmatpush.bf16.msra.mxu0 %v1080
  %1703 = vmatmul.bf16.gmra.mxu0 %v295
  %v1704 = vpop.f32.mrf.mxu0
  %v1705 = vadd.f32 %v286, %v1704
  %v1706 = vpop.f32.mrf.mxu0
  %1707 = vdwg.mxu0
  %1708 = vmatpush.bf16.msra.mxu0 %v1140
  %1709 = vmatpush.bf16.msra.mxu0 %v1136
  %1710 = vmatpush.bf16.msra.mxu0 %v1132
  %1711 = vmatpush.bf16.msra.mxu0 %v1128
  %1712 = vmatpush.bf16.msra.mxu0 %v1124
  %1713 = vmatpush.bf16.msra.mxu0 %v1120
  %1714 = vmatpush.bf16.msra.mxu0 %v1116
  %1715 = vmatpush.bf16.msra.mxu0 %v1112
  %1716 = vmatmul.bf16.gmra.mxu0 %v296
  %v1717 = vpop.f32.mrf.mxu0
  %v1718 = vadd.f32 %v1705, %v1717
  %v1719 = vpop.f32.mrf.mxu0
  %1720 = vdwg.mxu0
  %1721 = vmatpush.bf16.msra.mxu0 %v1172
  %1722 = vmatpush.bf16.msra.mxu0 %v1168
  %1723 = vmatpush.bf16.msra.mxu0 %v1164
  %1724 = vmatpush.bf16.msra.mxu0 %v1160
  %1725 = vmatpush.bf16.msra.mxu0 %v1156
  %1726 = vmatpush.bf16.msra.mxu0 %v1152
  %1727 = vmatpush.bf16.msra.mxu0 %v1148
  %1728 = vmatpush.bf16.msra.mxu0 %v1144
  %1729 = vmatmul.bf16.gmra.mxu0 %v297
  %v1730 = vpop.f32.mrf.mxu0
  %v1731 = vadd.f32 %v1718, %v1730
  %v1732 = vpop.f32.mrf.mxu0
  %1733 = vdwg.mxu0
  %1734 = vmatpush.bf16.msra.mxu0 %v1204
  %1735 = vmatpush.bf16.msra.mxu0 %v1200
  %1736 = vmatpush.bf16.msra.mxu0 %v1196
  %1737 = vmatpush.bf16.msra.mxu0 %v1192
  %1738 = vmatpush.bf16.msra.mxu0 %v1188
  %1739 = vmatpush.bf16.msra.mxu0 %v1184
  %1740 = vmatpush.bf16.msra.mxu0 %v1180
  %1741 = vmatpush.bf16.msra.mxu0 %v1176
  %1742 = vmatmul.bf16.gmra.mxu0 %v298
  %v1743 = vpop.f32.mrf.mxu0
  %v1744 = vadd.f32 %v1731, %v1743
  %v1745 = vpop.f32.mrf.mxu0
  %1746 = vdwg.mxu0
  %1747 = vmatpush.bf16.msra.mxu0 %v1236
  %1748 = vmatpush.bf16.msra.mxu0 %v1232
  %1749 = vmatpush.bf16.msra.mxu0 %v1228
  %1750 = vmatpush.bf16.msra.mxu0 %v1224
  %1751 = vmatpush.bf16.msra.mxu0 %v1220
  %1752 = vmatpush.bf16.msra.mxu0 %v1216
  %1753 = vmatpush.bf16.msra.mxu0 %v1212
  %1754 = vmatpush.bf16.msra.mxu0 %v1208
  %1755 = vmatmul.bf16.gmra.mxu0 %v299
  %v1756 = vpop.f32.mrf.mxu0
  %v1757 = vadd.f32 %v1744, %v1756
  %v1758 = vpop.f32.mrf.mxu0
  %1759 = vdwg.mxu0
  %1760 = vmatpush.bf16.msra.mxu0 %v1268
  %1761 = vmatpush.bf16.msra.mxu0 %v1264
  %1762 = vmatpush.bf16.msra.mxu0 %v1260
  %1763 = vmatpush.bf16.msra.mxu0 %v1256
  %1764 = vmatpush.bf16.msra.mxu0 %v1252
  %1765 = vmatpush.bf16.msra.mxu0 %v1248
  %1766 = vmatpush.bf16.msra.mxu0 %v1244
  %1767 = vmatpush.bf16.msra.mxu0 %v1240
  %1768 = vmatmul.bf16.gmra.mxu0 %v300
  %v1769 = vpop.f32.mrf.mxu0
  %v1770 = vadd.f32 %v1757, %v1769
  %v1771 = vpop.f32.mrf.mxu0
  %1772 = vdwg.mxu0
  %1773 = vmatpush.bf16.msra.mxu0 %v1300
  %1774 = vmatpush.bf16.msra.mxu0 %v1296
  %1775 = vmatpush.bf16.msra.mxu0 %v1292
  %1776 = vmatpush.bf16.msra.mxu0 %v1288
  %1777 = vmatpush.bf16.msra.mxu0 %v1284
  %1778 = vmatpush.bf16.msra.mxu0 %v1280
  %1779 = vmatpush.bf16.msra.mxu0 %v1276
  %1780 = vmatpush.bf16.msra.mxu0 %v1272
  %1781 = vmatmul.bf16.gmra.mxu0 %v301
  %v1782 = vpop.f32.mrf.mxu0
  %v1783 = vadd.f32 %v1770, %v1782
  %v1784 = vpop.f32.mrf.mxu0
  %1785 = vdwg.mxu0
  %1786 = vmatpush.bf16.msra.mxu0 %v1332
  %1787 = vmatpush.bf16.msra.mxu0 %v1328
  %1788 = vmatpush.bf16.msra.mxu0 %v1324
  %1789 = vmatpush.bf16.msra.mxu0 %v1320
  %1790 = vmatpush.bf16.msra.mxu0 %v1316
  %1791 = vmatpush.bf16.msra.mxu0 %v1312
  %1792 = vmatpush.bf16.msra.mxu0 %v1308
  %1793 = vmatpush.bf16.msra.mxu0 %v1304
  %1794 = vmatmul.bf16.gmra.mxu0 %v302
  %v1795 = vpop.f32.mrf.mxu0
  %v1796 = vadd.f32 %v1783, %v1795
  %v1797 = vpop.f32.mrf.mxu0
  %1798 = vdwg.mxu0
  %1799 = vmatpush.bf16.msra.mxu0 %v1109
  %1800 = vmatpush.bf16.msra.mxu0 %v1105
  %1801 = vmatpush.bf16.msra.mxu0 %v1101
  %1802 = vmatpush.bf16.msra.mxu0 %v1097
  %1803 = vmatpush.bf16.msra.mxu0 %v1093
  %1804 = vmatpush.bf16.msra.mxu0 %v1089
  %1805 = vmatpush.bf16.msra.mxu0 %v1085
  %1806 = vmatpush.bf16.msra.mxu0 %v1081
  %1807 = vmatmul.bf16.gmra.mxu0 %v295
  %v1808 = vpop.f32.mrf.mxu0
  %v1809 = vadd.f32 %v287, %v1808
  %v1810 = vpop.f32.mrf.mxu0
  %1811 = vdwg.mxu0
  %1812 = vmatpush.bf16.msra.mxu0 %v1141
  %1813 = vmatpush.bf16.msra.mxu0 %v1137
  %1814 = vmatpush.bf16.msra.mxu0 %v1133
  %1815 = vmatpush.bf16.msra.mxu0 %v1129
  %1816 = vmatpush.bf16.msra.mxu0 %v1125
  %1817 = vmatpush.bf16.msra.mxu0 %v1121
  %1818 = vmatpush.bf16.msra.mxu0 %v1117
  %1819 = vmatpush.bf16.msra.mxu0 %v1113
  %1820 = vmatmul.bf16.gmra.mxu0 %v296
  %v1821 = vpop.f32.mrf.mxu0
  %v1822 = vadd.f32 %v1809, %v1821
  %v1823 = vpop.f32.mrf.mxu0
  %1824 = vdwg.mxu0
  %1825 = vmatpush.bf16.msra.mxu0 %v1173
  %1826 = vmatpush.bf16.msra.mxu0 %v1169
  %1827 = vmatpush.bf16.msra.mxu0 %v1165
  %1828 = vmatpush.bf16.msra.mxu0 %v1161
  %1829 = vmatpush.bf16.msra.mxu0 %v1157
  %1830 = vmatpush.bf16.msra.mxu0 %v1153
  %1831 = vmatpush.bf16.msra.mxu0 %v1149
  %1832 = vmatpush.bf16.msra.mxu0 %v1145
  %1833 = vmatmul.bf16.gmra.mxu0 %v297
  %v1834 = vpop.f32.mrf.mxu0
  %v1835 = vadd.f32 %v1822, %v1834
  %v1836 = vpop.f32.mrf.mxu0
  %1837 = vdwg.mxu0
  %1838 = vmatpush.bf16.msra.mxu0 %v1205
  %1839 = vmatpush.bf16.msra.mxu0 %v1201
  %1840 = vmatpush.bf16.msra.mxu0 %v1197
  %1841 = vmatpush.bf16.msra.mxu0 %v1193
  %1842 = vmatpush.bf16.msra.mxu0 %v1189
  %1843 = vmatpush.bf16.msra.mxu0 %v1185
  %1844 = vmatpush.bf16.msra.mxu0 %v1181
  %1845 = vmatpush.bf16.msra.mxu0 %v1177
  %1846 = vmatmul.bf16.gmra.mxu0 %v298
  %v1847 = vpop.f32.mrf.mxu0
  %v1848 = vadd.f32 %v1835, %v1847
  %v1849 = vpop.f32.mrf.mxu0
  %1850 = vdwg.mxu0
  %1851 = vmatpush.bf16.msra.mxu0 %v1237
  %1852 = vmatpush.bf16.msra.mxu0 %v1233
  %1853 = vmatpush.bf16.msra.mxu0 %v1229
  %1854 = vmatpush.bf16.msra.mxu0 %v1225
  %1855 = vmatpush.bf16.msra.mxu0 %v1221
  %1856 = vmatpush.bf16.msra.mxu0 %v1217
  %1857 = vmatpush.bf16.msra.mxu0 %v1213
  %1858 = vmatpush.bf16.msra.mxu0 %v1209
  %1859 = vmatmul.bf16.gmra.mxu0 %v299
  %v1860 = vpop.f32.mrf.mxu0
  %v1861 = vadd.f32 %v1848, %v1860
  %v1862 = vpop.f32.mrf.mxu0
  %1863 = vdwg.mxu0
  %1864 = vmatpush.bf16.msra.mxu0 %v1269
  %1865 = vmatpush.bf16.msra.mxu0 %v1265
  %1866 = vmatpush.bf16.msra.mxu0 %v1261
  %1867 = vmatpush.bf16.msra.mxu0 %v1257
  %1868 = vmatpush.bf16.msra.mxu0 %v1253
  %1869 = vmatpush.bf16.msra.mxu0 %v1249
  %1870 = vmatpush.bf16.msra.mxu0 %v1245
  %1871 = vmatpush.bf16.msra.mxu0 %v1241
  %1872 = vmatmul.bf16.gmra.mxu0 %v300
  %v1873 = vpop.f32.mrf.mxu0
  %v1874 = vadd.f32 %v1861, %v1873
  %v1875 = vpop.f32.mrf.mxu0
  %1876 = vdwg.mxu0
  %1877 = vmatpush.bf16.msra.mxu0 %v1301
  %1878 = vmatpush.bf16.msra.mxu0 %v1297
  %1879 = vmatpush.bf16.msra.mxu0 %v1293
  %1880 = vmatpush.bf16.msra.mxu0 %v1289
  %1881 = vmatpush.bf16.msra.mxu0 %v1285
  %1882 = vmatpush.bf16.msra.mxu0 %v1281
  %1883 = vmatpush.bf16.msra.mxu0 %v1277
  %1884 = vmatpush.bf16.msra.mxu0 %v1273
  %1885 = vmatmul.bf16.gmra.mxu0 %v301
  %v1886 = vpop.f32.mrf.mxu0
  %v1887 = vadd.f32 %v1874, %v1886
  %v1888 = vpop.f32.mrf.mxu0
  %1889 = vdwg.mxu0
  %1890 = vmatpush.bf16.msra.mxu0 %v1333
  %1891 = vmatpush.bf16.msra.mxu0 %v1329
  %1892 = vmatpush.bf16.msra.mxu0 %v1325
  %1893 = vmatpush.bf16.msra.mxu0 %v1321
  %1894 = vmatpush.bf16.msra.mxu0 %v1317
  %1895 = vmatpush.bf16.msra.mxu0 %v1313
  %1896 = vmatpush.bf16.msra.mxu0 %v1309
  %1897 = vmatpush.bf16.msra.mxu0 %v1305
  %1898 = vmatmul.bf16.gmra.mxu0 %v302
  %v1899 = vpop.f32.mrf.mxu0
  %v1900 = vadd.f32 %v1887, %v1899
  %v1901 = vpop.f32.mrf.mxu0
  %1902 = vdwg.mxu0
  %1903 = vmatpush.bf16.msra.mxu0 %v1110
  %1904 = vmatpush.bf16.msra.mxu0 %v1106
  %1905 = vmatpush.bf16.msra.mxu0 %v1102
  %1906 = vmatpush.bf16.msra.mxu0 %v1098
  %1907 = vmatpush.bf16.msra.mxu0 %v1094
  %1908 = vmatpush.bf16.msra.mxu0 %v1090
  %1909 = vmatpush.bf16.msra.mxu0 %v1086
  %1910 = vmatpush.bf16.msra.mxu0 %v1082
  %1911 = vmatmul.bf16.gmra.mxu0 %v295
  %v1912 = vpop.f32.mrf.mxu0
  %v1913 = vadd.f32 %v288, %v1912
  %v1914 = vpop.f32.mrf.mxu0
  %1915 = vdwg.mxu0
  %1916 = vmatpush.bf16.msra.mxu0 %v1142
  %1917 = vmatpush.bf16.msra.mxu0 %v1138
  %1918 = vmatpush.bf16.msra.mxu0 %v1134
  %1919 = vmatpush.bf16.msra.mxu0 %v1130
  %1920 = vmatpush.bf16.msra.mxu0 %v1126
  %1921 = vmatpush.bf16.msra.mxu0 %v1122
  %1922 = vmatpush.bf16.msra.mxu0 %v1118
  %1923 = vmatpush.bf16.msra.mxu0 %v1114
  %1924 = vmatmul.bf16.gmra.mxu0 %v296
  %v1925 = vpop.f32.mrf.mxu0
  %v1926 = vadd.f32 %v1913, %v1925
  %v1927 = vpop.f32.mrf.mxu0
  %1928 = vdwg.mxu0
  %1929 = vmatpush.bf16.msra.mxu0 %v1174
  %1930 = vmatpush.bf16.msra.mxu0 %v1170
  %1931 = vmatpush.bf16.msra.mxu0 %v1166
  %1932 = vmatpush.bf16.msra.mxu0 %v1162
  %1933 = vmatpush.bf16.msra.mxu0 %v1158
  %1934 = vmatpush.bf16.msra.mxu0 %v1154
  %1935 = vmatpush.bf16.msra.mxu0 %v1150
  %1936 = vmatpush.bf16.msra.mxu0 %v1146
  %1937 = vmatmul.bf16.gmra.mxu0 %v297
  %v1938 = vpop.f32.mrf.mxu0
  %v1939 = vadd.f32 %v1926, %v1938
  %v1940 = vpop.f32.mrf.mxu0
  %1941 = vdwg.mxu0
  %1942 = vmatpush.bf16.msra.mxu0 %v1206
  %1943 = vmatpush.bf16.msra.mxu0 %v1202
  %1944 = vmatpush.bf16.msra.mxu0 %v1198
  %1945 = vmatpush.bf16.msra.mxu0 %v1194
  %1946 = vmatpush.bf16.msra.mxu0 %v1190
  %1947 = vmatpush.bf16.msra.mxu0 %v1186
  %1948 = vmatpush.bf16.msra.mxu0 %v1182
  %1949 = vmatpush.bf16.msra.mxu0 %v1178
  %1950 = vmatmul.bf16.gmra.mxu0 %v298
  %v1951 = vpop.f32.mrf.mxu0
  %v1952 = vadd.f32 %v1939, %v1951
  %v1953 = vpop.f32.mrf.mxu0
  %1954 = vdwg.mxu0
  %1955 = vmatpush.bf16.msra.mxu0 %v1238
  %1956 = vmatpush.bf16.msra.mxu0 %v1234
  %1957 = vmatpush.bf16.msra.mxu0 %v1230
  %1958 = vmatpush.bf16.msra.mxu0 %v1226
  %1959 = vmatpush.bf16.msra.mxu0 %v1222
  %1960 = vmatpush.bf16.msra.mxu0 %v1218
  %1961 = vmatpush.bf16.msra.mxu0 %v1214
  %1962 = vmatpush.bf16.msra.mxu0 %v1210
  %1963 = vmatmul.bf16.gmra.mxu0 %v299
  %v1964 = vpop.f32.mrf.mxu0
  %v1965 = vadd.f32 %v1952, %v1964
  %v1966 = vpop.f32.mrf.mxu0
  %1967 = vdwg.mxu0
  %1968 = vmatpush.bf16.msra.mxu0 %v1270
  %1969 = vmatpush.bf16.msra.mxu0 %v1266
  %1970 = vmatpush.bf16.msra.mxu0 %v1262
  %1971 = vmatpush.bf16.msra.mxu0 %v1258
  %1972 = vmatpush.bf16.msra.mxu0 %v1254
  %1973 = vmatpush.bf16.msra.mxu0 %v1250
  %1974 = vmatpush.bf16.msra.mxu0 %v1246
  %1975 = vmatpush.bf16.msra.mxu0 %v1242
  %1976 = vmatmul.bf16.gmra.mxu0 %v300
  %v1977 = vpop.f32.mrf.mxu0
  %v1978 = vadd.f32 %v1965, %v1977
  %v1979 = vpop.f32.mrf.mxu0
  %1980 = vdwg.mxu0
  %1981 = vmatpush.bf16.msra.mxu0 %v1302
  %1982 = vmatpush.bf16.msra.mxu0 %v1298
  %1983 = vmatpush.bf16.msra.mxu0 %v1294
  %1984 = vmatpush.bf16.msra.mxu0 %v1290
  %1985 = vmatpush.bf16.msra.mxu0 %v1286
  %1986 = vmatpush.bf16.msra.mxu0 %v1282
  %1987 = vmatpush.bf16.msra.mxu0 %v1278
  %1988 = vmatpush.bf16.msra.mxu0 %v1274
  %1989 = vmatmul.bf16.gmra.mxu0 %v301
  %v1990 = vpop.f32.mrf.mxu0
  %v1991 = vadd.f32 %v1978, %v1990
  %v1992 = vpop.f32.mrf.mxu0
  %1993 = vdwg.mxu0
  %1994 = vmatpush.bf16.msra.mxu0 %v1334
  %1995 = vmatpush.bf16.msra.mxu0 %v1330
  %1996 = vmatpush.bf16.msra.mxu0 %v1326
  %1997 = vmatpush.bf16.msra.mxu0 %v1322
  %1998 = vmatpush.bf16.msra.mxu0 %v1318
  %1999 = vmatpush.bf16.msra.mxu0 %v1314
  %2000 = vmatpush.bf16.msra.mxu0 %v1310
  %2001 = vmatpush.bf16.msra.mxu0 %v1306
  %2002 = vmatmul.bf16.gmra.mxu0 %v302
  %v2003 = vpop.f32.mrf.mxu0
  %v2004 = vadd.f32 %v1991, %v2003
  %v2005 = vpop.f32.mrf.mxu0
  %2006 = vdwg.mxu0
  %vm2007 = vcmp.gt.f32.partialorder %v1692, 0.0
  %vm2008 = vcmp.gt.f32.partialorder %v1796, 0.0
  %vm2009 = vcmp.gt.f32.partialorder %v1900, 0.0
  %vm2010 = vcmp.gt.f32.partialorder %v2004, 0.0
  %v2011 = vmul.f32 %v1692, 0.2
  %v2012 = vmul.f32 %v1796, 0.2
  %v2013 = vmul.f32 %v1900, 0.2
  %v2014 = vmul.f32 %v2004, 0.2
  %v2015 = vsel %vm2007, %v1692, %v2011
  %v2016 = vsel %vm2008, %v1796, %v2012
  %v2017 = vsel %vm2009, %v1900, %v2013
  %v2018 = vsel %vm2010, %v2004, %v2014
  %v2019 = vpack.c.bf16 %v2015, %v2015
  %v2020 = vpack.c.bf16 %v2016, %v2016
  %v2021 = vpack.c.bf16 %v2017, %v2017
  %v2022 = vpack.c.bf16 %v2018, %v2018
  %v2023 = vld [vmem:[%s3] sm:$0xff]
  %v2024 = vld [vmem:[%s3 + $0x8] sm:$0xff]
  %v2025 = vld [vmem:[%s3 + $0x10] sm:$0xff]
  %v2026 = vld [vmem:[%s3 + $0x18] sm:$0xff]
  %v2027 = vld [vmem:[%s3 + $0x20] sm:$0xff]
  %v2028 = vld [vmem:[%s3 + $0x28] sm:$0xff]
  %v2029 = vld [vmem:[%s3 + $0x30] sm:$0xff]
  %v2030 = vld [vmem:[%s3 + $0x38] sm:$0xff]
  %v2031 = vld [vmem:[%s3 + $0x40] sm:$0xff]
  %v2032 = vld [vmem:[%s3 + $0x48] sm:$0xff]
  %v2033 = vld [vmem:[%s3 + $0x50] sm:$0xff]
  %v2034 = vld [vmem:[%s3 + $0x58] sm:$0xff]
  %v2035 = vld [vmem:[%s3 + $0x60] sm:$0xff]
  %v2036 = vld [vmem:[%s3 + $0x68] sm:$0xff]
  %v2037 = vld [vmem:[%s3 + $0x70] sm:$0xff]
  %v2038 = vld [vmem:[%s3 + $0x78] sm:$0xff]
  %v2039 = vld [vmem:[%s3 + $0x80] sm:$0xff]
  %v2040 = vld [vmem:[%s3 + $0x88] sm:$0xff]
  %v2041 = vld [vmem:[%s3 + $0x90] sm:$0xff]
  %v2042 = vld [vmem:[%s3 + $0x98] sm:$0xff]
  %v2043 = vld [vmem:[%s3 + $0xa0] sm:$0xff]
  %v2044 = vld [vmem:[%s3 + $0xa8] sm:$0xff]
  %v2045 = vld [vmem:[%s3 + $0xb0] sm:$0xff]
  %v2046 = vld [vmem:[%s3 + $0xb8] sm:$0xff]
  %v2047 = vld [vmem:[%s3 + $0xc0] sm:$0xff]
  %v2048 = vld [vmem:[%s3 + $0xc8] sm:$0xff]
  %v2049 = vld [vmem:[%s3 + $0xd0] sm:$0xff]
  %v2050 = vld [vmem:[%s3 + $0xd8] sm:$0xff]
  %v2051 = vld [vmem:[%s3 + $0xe0] sm:$0xff]
  %v2052 = vld [vmem:[%s3 + $0xe8] sm:$0xff]
  %v2053 = vld [vmem:[%s3 + $0xf0] sm:$0xff]
  %v2054 = vld [vmem:[%s3 + $0xf8] sm:$0xff]
  %v2055 = vld [vmem:[%s3 + $0x100] sm:$0xff]
  %v2056 = vld [vmem:[%s3 + $0x108] sm:$0xff]
  %v2057 = vld [vmem:[%s3 + $0x110] sm:$0xff]
  %v2058 = vld [vmem:[%s3 + $0x118] sm:$0xff]
  %v2059 = vld [vmem:[%s3 + $0x120] sm:$0xff]
  %v2060 = vld [vmem:[%s3 + $0x128] sm:$0xff]
  %v2061 = vld [vmem:[%s3 + $0x130] sm:$0xff]
  %v2062 = vld [vmem:[%s3 + $0x138] sm:$0xff]
  %v2063 = vld [vmem:[%s3 + $0x140] sm:$0xff]
  %v2064 = vld [vmem:[%s3 + $0x148] sm:$0xff]
  %v2065 = vld [vmem:[%s3 + $0x150] sm:$0xff]
  %v2066 = vld [vmem:[%s3 + $0x158] sm:$0xff]
  %v2067 = vld [vmem:[%s3 + $0x160] sm:$0xff]
  %v2068 = vld [vmem:[%s3 + $0x168] sm:$0xff]
  %v2069 = vld [vmem:[%s3 + $0x170] sm:$0xff]
  %v2070 = vld [vmem:[%s3 + $0x178] sm:$0xff]
  %v2071 = vld [vmem:[%s3 + $0x180] sm:$0xff]
  %v2072 = vld [vmem:[%s3 + $0x188] sm:$0xff]
  %v2073 = vld [vmem:[%s3 + $0x190] sm:$0xff]
  %v2074 = vld [vmem:[%s3 + $0x198] sm:$0xff]
  %v2075 = vld [vmem:[%s3 + $0x1a0] sm:$0xff]
  %v2076 = vld [vmem:[%s3 + $0x1a8] sm:$0xff]
  %v2077 = vld [vmem:[%s3 + $0x1b0] sm:$0xff]
  %v2078 = vld [vmem:[%s3 + $0x1b8] sm:$0xff]
  %v2079 = vld [vmem:[%s3 + $0x1c0] sm:$0xff]
  %v2080 = vld [vmem:[%s3 + $0x1c8] sm:$0xff]
  %v2081 = vld [vmem:[%s3 + $0x1d0] sm:$0xff]
  %v2082 = vld [vmem:[%s3 + $0x1d8] sm:$0xff]
  %v2083 = vld [vmem:[%s3 + $0x1e0] sm:$0xff]
  %v2084 = vld [vmem:[%s3 + $0x1e8] sm:$0xff]
  %v2085 = vld [vmem:[%s3 + $0x1f0] sm:$0xff]
  %v2086 = vld [vmem:[%s3 + $0x1f8] sm:$0xff]
  %v2087 = vld [vmem:[%s4] sm:$0x3]
  %v2089 = vperm.slane %v2087, 0
  %v2090 = vperm.slane %v2087, 1
  %v2157 = vunpack.c.l.b16 %v2023
  %v2158 = vunpack.c.h.b16 %v2023
  %v2159 = vunpack.c.l.b16 %v2024
  %v2160 = vunpack.c.h.b16 %v2024
  %v2161 = vunpack.c.l.b16 %v2025
  %v2162 = vunpack.c.h.b16 %v2025
  %v2163 = vunpack.c.l.b16 %v2026
  %v2164 = vunpack.c.h.b16 %v2026
  %v2165 = vunpack.c.l.b16 %v2027
  %v2166 = vunpack.c.h.b16 %v2027
  %v2167 = vunpack.c.l.b16 %v2028
  %v2168 = vunpack.c.h.b16 %v2028
  %v2169 = vunpack.c.l.b16 %v2029
  %v2170 = vunpack.c.h.b16 %v2029
  %v2171 = vunpack.c.l.b16 %v2030
  %v2172 = vunpack.c.h.b16 %v2030
  %v2173 = vunpack.c.l.b16 %v2031
  %v2174 = vunpack.c.h.b16 %v2031
  %v2175 = vunpack.c.l.b16 %v2032
  %v2176 = vunpack.c.h.b16 %v2032
  %v2177 = vunpack.c.l.b16 %v2033
  %v2178 = vunpack.c.h.b16 %v2033
  %v2179 = vunpack.c.l.b16 %v2034
  %v2180 = vunpack.c.h.b16 %v2034
  %v2181 = vunpack.c.l.b16 %v2035
  %v2182 = vunpack.c.h.b16 %v2035
  %v2183 = vunpack.c.l.b16 %v2036
  %v2184 = vunpack.c.h.b16 %v2036
  %v2185 = vunpack.c.l.b16 %v2037
  %v2186 = vunpack.c.h.b16 %v2037
  %v2187 = vunpack.c.l.b16 %v2038
  %v2188 = vunpack.c.h.b16 %v2038
  %v2189 = vunpack.c.l.b16 %v2039
  %v2190 = vunpack.c.h.b16 %v2039
  %v2191 = vunpack.c.l.b16 %v2040
  %v2192 = vunpack.c.h.b16 %v2040
  %v2193 = vunpack.c.l.b16 %v2041
  %v2194 = vunpack.c.h.b16 %v2041
  %v2195 = vunpack.c.l.b16 %v2042
  %v2196 = vunpack.c.h.b16 %v2042
  %v2197 = vunpack.c.l.b16 %v2043
  %v2198 = vunpack.c.h.b16 %v2043
  %v2199 = vunpack.c.l.b16 %v2044
  %v2200 = vunpack.c.h.b16 %v2044
  %v2201 = vunpack.c.l.b16 %v2045
  %v2202 = vunpack.c.h.b16 %v2045
  %v2203 = vunpack.c.l.b16 %v2046
  %v2204 = vunpack.c.h.b16 %v2046
  %v2205 = vunpack.c.l.b16 %v2047
  %v2206 = vunpack.c.h.b16 %v2047
  %v2207 = vunpack.c.l.b16 %v2048
  %v2208 = vunpack.c.h.b16 %v2048
  %v2209 = vunpack.c.l.b16 %v2049
  %v2210 = vunpack.c.h.b16 %v2049
  %v2211 = vunpack.c.l.b16 %v2050
  %v2212 = vunpack.c.h.b16 %v2050
  %v2213 = vunpack.c.l.b16 %v2051
  %v2214 = vunpack.c.h.b16 %v2051
  %v2215 = vunpack.c.l.b16 %v2052
  %v2216 = vunpack.c.h.b16 %v2052
  %v2217 = vunpack.c.l.b16 %v2053
  %v2218 = vunpack.c.h.b16 %v2053
  %v2219 = vunpack.c.l.b16 %v2054
  %v2220 = vunpack.c.h.b16 %v2054
  %v2221 = vunpack.c.l.b16 %v2055
  %v2222 = vunpack.c.h.b16 %v2055
  %v2223 = vunpack.c.l.b16 %v2056
  %v2224 = vunpack.c.h.b16 %v2056
  %v2225 = vunpack.c.l.b16 %v2057
  %v2226 = vunpack.c.h.b16 %v2057
  %v2227 = vunpack.c.l.b16 %v2058
  %v2228 = vunpack.c.h.b16 %v2058
  %v2229 = vunpack.c.l.b16 %v2059
  %v2230 = vunpack.c.h.b16 %v2059
  %v2231 = vunpack.c.l.b16 %v2060
  %v2232 = vunpack.c.h.b16 %v2060
  %v2233 = vunpack.c.l.b16 %v2061
  %v2234 = vunpack.c.h.b16 %v2061
  %v2235 = vunpack.c.l.b16 %v2062
  %v2236 = vunpack.c.h.b16 %v2062
  %v2237 = vunpack.c.l.b16 %v2063
  %v2238 = vunpack.c.h.b16 %v2063
  %v2239 = vunpack.c.l.b16 %v2064
  %v2240 = vunpack.c.h.b16 %v2064
  %v2241 = vunpack.c.l.b16 %v2065
  %v2242 = vunpack.c.h.b16 %v2065
  %v2243 = vunpack.c.l.b16 %v2066
  %v2244 = vunpack.c.h.b16 %v2066
  %v2245 = vunpack.c.l.b16 %v2067
  %v2246 = vunpack.c.h.b16 %v2067
  %v2247 = vunpack.c.l.b16 %v2068
  %v2248 = vunpack.c.h.b16 %v2068
  %v2249 = vunpack.c.l.b16 %v2069
  %v2250 = vunpack.c.h.b16 %v2069
  %v2251 = vunpack.c.l.b16 %v2070
  %v2252 = vunpack.c.h.b16 %v2070
  %v2253 = vunpack.c.l.b16 %v2071
  %v2254 = vunpack.c.h.b16 %v2071
  %v2255 = vunpack.c.l.b16 %v2072
  %v2256 = vunpack.c.h.b16 %v2072
  %v2257 = vunpack.c.l.b16 %v2073
  %v2258 = vunpack.c.h.b16 %v2073
  %v2259 = vunpack.c.l.b16 %v2074
  %v2260 = vunpack.c.h.b16 %v2074
  %v2261 = vunpack.c.l.b16 %v2075
  %v2262 = vunpack.c.h.b16 %v2075
  %v2263 = vunpack.c.l.b16 %v2076
  %v2264 = vunpack.c.h.b16 %v2076
  %v2265 = vunpack.c.l.b16 %v2077
  %v2266 = vunpack.c.h.b16 %v2077
  %v2267 = vunpack.c.l.b16 %v2078
  %v2268 = vunpack.c.h.b16 %v2078
  %v2269 = vunpack.c.l.b16 %v2079
  %v2270 = vunpack.c.h.b16 %v2079
  %v2271 = vunpack.c.l.b16 %v2080
  %v2272 = vunpack.c.h.b16 %v2080
  %v2273 = vunpack.c.l.b16 %v2081
  %v2274 = vunpack.c.h.b16 %v2081
  %v2275 = vunpack.c.l.b16 %v2082
  %v2276 = vunpack.c.h.b16 %v2082
  %v2277 = vunpack.c.l.b16 %v2083
  %v2278 = vunpack.c.h.b16 %v2083
  %v2279 = vunpack.c.l.b16 %v2084
  %v2280 = vunpack.c.h.b16 %v2084
  %v2281 = vunpack.c.l.b16 %v2085
  %v2282 = vunpack.c.h.b16 %v2085
  %v2283 = vunpack.c.l.b16 %v2086
  %v2284 = vunpack.c.h.b16 %v2086
  %v2285 = vpack.c.b16 %v2159, %v2157
  %v2286 = vpack.c.b16 %v2160, %v2158
  %v2287 = vpack.c.b16 %v2163, %v2161
  %v2288 = vpack.c.b16 %v2164, %v2162
  %v2289 = vpack.c.b16 %v2167, %v2165
  %v2290 = vpack.c.b16 %v2168, %v2166
  %v2291 = vpack.c.b16 %v2171, %v2169
  %v2292 = vpack.c.b16 %v2172, %v2170
  %v2293 = vpack.c.b16 %v2175, %v2173
  %v2294 = vpack.c.b16 %v2176, %v2174
  %v2295 = vpack.c.b16 %v2179, %v2177
  %v2296 = vpack.c.b16 %v2180, %v2178
  %v2297 = vpack.c.b16 %v2183, %v2181
  %v2298 = vpack.c.b16 %v2184, %v2182
  %v2299 = vpack.c.b16 %v2187, %v2185
  %v2300 = vpack.c.b16 %v2188, %v2186
  %v2301 = vpack.c.b16 %v2191, %v2189
  %v2302 = vpack.c.b16 %v2192, %v2190
  %v2303 = vpack.c.b16 %v2195, %v2193
  %v2304 = vpack.c.b16 %v2196, %v2194
  %v2305 = vpack.c.b16 %v2199, %v2197
  %v2306 = vpack.c.b16 %v2200, %v2198
  %v2307 = vpack.c.b16 %v2203, %v2201
  %v2308 = vpack.c.b16 %v2204, %v2202
  %v2309 = vpack.c.b16 %v2207, %v2205
  %v2310 = vpack.c.b16 %v2208, %v2206
  %v2311 = vpack.c.b16 %v2211, %v2209
  %v2312 = vpack.c.b16 %v2212, %v2210
  %v2313 = vpack.c.b16 %v2215, %v2213
  %v2314 = vpack.c.b16 %v2216, %v2214
  %v2315 = vpack.c.b16 %v2219, %v2217
  %v2316 = vpack.c.b16 %v2220, %v2218
  %v2317 = vpack.c.b16 %v2223, %v2221
  %v2318 = vpack.c.b16 %v2224, %v2222
  %v2319 = vpack.c.b16 %v2227, %v2225
  %v2320 = vpack.c.b16 %v2228, %v2226
  %v2321 = vpack.c.b16 %v2231, %v2229
  %v2322 = vpack.c.b16 %v2232, %v2230
  %v2323 = vpack.c.b16 %v2235, %v2233
  %v2324 = vpack.c.b16 %v2236, %v2234
  %v2325 = vpack.c.b16 %v2239, %v2237
  %v2326 = vpack.c.b16 %v2240, %v2238
  %v2327 = vpack.c.b16 %v2243, %v2241
  %v2328 = vpack.c.b16 %v2244, %v2242
  %v2329 = vpack.c.b16 %v2247, %v2245
  %v2330 = vpack.c.b16 %v2248, %v2246
  %v2331 = vpack.c.b16 %v2251, %v2249
  %v2332 = vpack.c.b16 %v2252, %v2250
  %v2333 = vpack.c.b16 %v2255, %v2253
  %v2334 = vpack.c.b16 %v2256, %v2254
  %v2335 = vpack.c.b16 %v2259, %v2257
  %v2336 = vpack.c.b16 %v2260, %v2258
  %v2337 = vpack.c.b16 %v2263, %v2261
  %v2338 = vpack.c.b16 %v2264, %v2262
  %v2339 = vpack.c.b16 %v2267, %v2265
  %v2340 = vpack.c.b16 %v2268, %v2266
  %v2341 = vpack.c.b16 %v2271, %v2269
  %v2342 = vpack.c.b16 %v2272, %v2270
  %v2343 = vpack.c.b16 %v2275, %v2273
  %v2344 = vpack.c.b16 %v2276, %v2274
  %v2345 = vpack.c.b16 %v2279, %v2277
  %v2346 = vpack.c.b16 %v2280, %v2278
  %v2347 = vpack.c.b16 %v2283, %v2281
  %v2348 = vpack.c.b16 %v2284, %v2282
  %2413 = vmatpush.bf16.msra.mxu0 %v2299
  %2414 = vmatpush.bf16.msra.mxu0 %v2297
  %2415 = vmatpush.bf16.msra.mxu0 %v2295
  %2416 = vmatpush.bf16.msra.mxu0 %v2293
  %2417 = vmatpush.bf16.msra.mxu0 %v2291
  %2418 = vmatpush.bf16.msra.mxu0 %v2289
  %2419 = vmatpush.bf16.msra.mxu0 %v2287
  %2420 = vmatpush.bf16.msra.mxu0 %v2285
  %2421 = vmatmul.bf16.gmra.mxu0 %v2019
  %v2422 = vpop.f32.mrf.mxu0
  %v2423 = vadd.f32 %v2089, %v2422
  %v2424 = vpop.f32.mrf.mxu0
  %2425 = vdwg.mxu0
  %2426 = vmatpush.bf16.msra.mxu0 %v2315
  %2427 = vmatpush.bf16.msra.mxu0 %v2313
  %2428 = vmatpush.bf16.msra.mxu0 %v2311
  %2429 = vmatpush.bf16.msra.mxu0 %v2309
  %2430 = vmatpush.bf16.msra.mxu0 %v2307
  %2431 = vmatpush.bf16.msra.mxu0 %v2305
  %2432 = vmatpush.bf16.msra.mxu0 %v2303
  %2433 = vmatpush.bf16.msra.mxu0 %v2301
  %2434 = vmatmul.bf16.gmra.mxu0 %v2020
  %v2435 = vpop.f32.mrf.mxu0
  %v2436 = vadd.f32 %v2423, %v2435
  %v2437 = vpop.f32.mrf.mxu0
  %2438 = vdwg.mxu0
  %2439 = vmatpush.bf16.msra.mxu0 %v2331
  %2440 = vmatpush.bf16.msra.mxu0 %v2329
  %2441 = vmatpush.bf16.msra.mxu0 %v2327
  %2442 = vmatpush.bf16.msra.mxu0 %v2325
  %2443 = vmatpush.bf16.msra.mxu0 %v2323
  %2444 = vmatpush.bf16.msra.mxu0 %v2321
  %2445 = vmatpush.bf16.msra.mxu0 %v2319
  %2446 = vmatpush.bf16.msra.mxu0 %v2317
  %2447 = vmatmul.bf16.gmra.mxu0 %v2021
  %v2448 = vpop.f32.mrf.mxu0
  %v2449 = vadd.f32 %v2436, %v2448
  %v2450 = vpop.f32.mrf.mxu0
  %2451 = vdwg.mxu0
  %2452 = vmatpush.bf16.msra.mxu0 %v2347
  %2453 = vmatpush.bf16.msra.mxu0 %v2345
  %2454 = vmatpush.bf16.msra.mxu0 %v2343
  %2455 = vmatpush.bf16.msra.mxu0 %v2341
  %2456 = vmatpush.bf16.msra.mxu0 %v2339
  %2457 = vmatpush.bf16.msra.mxu0 %v2337
  %2458 = vmatpush.bf16.msra.mxu0 %v2335
  %2459 = vmatpush.bf16.msra.mxu0 %v2333
  %2460 = vmatmul.bf16.gmra.mxu0 %v2022
  %v2461 = vpop.f32.mrf.mxu0
  %v2462 = vadd.f32 %v2449, %v2461
  %v2463 = vpop.f32.mrf.mxu0
  %2464 = vdwg.mxu0
  %2465 = vmatpush.bf16.msra.mxu0 %v2300
  %2466 = vmatpush.bf16.msra.mxu0 %v2298
  %2467 = vmatpush.bf16.msra.mxu0 %v2296
  %2468 = vmatpush.bf16.msra.mxu0 %v2294
  %2469 = vmatpush.bf16.msra.mxu0 %v2292
  %2470 = vmatpush.bf16.msra.mxu0 %v2290
  %2471 = vmatpush.bf16.msra.mxu0 %v2288
  %2472 = vmatpush.bf16.msra.mxu0 %v2286
  %2473 = vmatmul.bf16.gmra.mxu0 %v2019
  %v2474 = vpop.f32.mrf.mxu0
  %v2475 = vadd.f32 %v2090, %v2474
  %v2476 = vpop.f32.mrf.mxu0
  %2477 = vdwg.mxu0
  %2478 = vmatpush.bf16.msra.mxu0 %v2316
  %2479 = vmatpush.bf16.msra.mxu0 %v2314
  %2480 = vmatpush.bf16.msra.mxu0 %v2312
  %2481 = vmatpush.bf16.msra.mxu0 %v2310
  %2482 = vmatpush.bf16.msra.mxu0 %v2308
  %2483 = vmatpush.bf16.msra.mxu0 %v2306
  %2484 = vmatpush.bf16.msra.mxu0 %v2304
  %2485 = vmatpush.bf16.msra.mxu0 %v2302
  %2486 = vmatmul.bf16.gmra.mxu0 %v2020
  %v2487 = vpop.f32.mrf.mxu0
  %v2488 = vadd.f32 %v2475, %v2487
  %v2489 = vpop.f32.mrf.mxu0
  %2490 = vdwg.mxu0
  %2491 = vmatpush.bf16.msra.mxu0 %v2332
  %2492 = vmatpush.bf16.msra.mxu0 %v2330
  %2493 = vmatpush.bf16.msra.mxu0 %v2328
  %2494 = vmatpush.bf16.msra.mxu0 %v2326
  %2495 = vmatpush.bf16.msra.mxu0 %v2324
  %2496 = vmatpush.bf16.msra.mxu0 %v2322
  %2497 = vmatpush.bf16.msra.mxu0 %v2320
  %2498 = vmatpush.bf16.msra.mxu0 %v2318
  %2499 = vmatmul.bf16.gmra.mxu0 %v2021
  %v2500 = vpop.f32.mrf.mxu0
  %v2501 = vadd.f32 %v2488, %v2500
  %v2502 = vpop.f32.mrf.mxu0
  %2503 = vdwg.mxu0
  %2504 = vmatpush.bf16.msra.mxu0 %v2348
  %2505 = vmatpush.bf16.msra.mxu0 %v2346
  %2506 = vmatpush.bf16.msra.mxu0 %v2344
  %2507 = vmatpush.bf16.msra.mxu0 %v2342
  %2508 = vmatpush.bf16.msra.mxu0 %v2340
  %2509 = vmatpush.bf16.msra.mxu0 %v2338
  %2510 = vmatpush.bf16.msra.mxu0 %v2336
  %2511 = vmatpush.bf16.msra.mxu0 %v2334
  %2512 = vmatmul.bf16.gmra.mxu0 %v2022
  %v2513 = vpop.f32.mrf.mxu0
  %v2514 = vadd.f32 %v2501, %v2513
  %v2515 = vpop.f32.mrf.mxu0
  %2516 = vdwg.mxu0
  %vm2517 = vcmp.gt.f32.partialorder %v2462, 0.0
  %vm2518 = vcmp.gt.f32.partialorder %v2514, 0.0
  %v2519 = vmul.f32 %v2462, 0.2
  %v2520 = vmul.f32 %v2514, 0.2
  %v2521 = vsel %vm2517, %v2462, %v2519
  %v2522 = vsel %vm2518, %v2514, %v2520
  %v2523 = vpack.c.bf16 %v2521, %v2521
  %v2524 = vpack.c.bf16 %v2522, %v2522
  %v2525 = vld [vmem:[%s5] sm:$0xf]
  %v2526 = vld [vmem:[%s5 + $0x4] sm:$0xf]
  %v2527 = vld [vmem:[%s5 + $0x8] sm:$0xf]
  %v2528 = vld [vmem:[%s5 + $0xc] sm:$0xf]
  %v2529 = vld [vmem:[%s5 + $0x10] sm:$0xf]
  %v2530 = vld [vmem:[%s5 + $0x14] sm:$0xf]
  %v2531 = vld [vmem:[%s5 + $0x18] sm:$0xf]
  %v2532 = vld [vmem:[%s5 + $0x1c] sm:$0xf]
  %v2533 = vld [vmem:[%s5 + $0x20] sm:$0xf]
  %v2534 = vld [vmem:[%s5 + $0x24] sm:$0xf]
  %v2535 = vld [vmem:[%s5 + $0x28] sm:$0xf]
  %v2536 = vld [vmem:[%s5 + $0x2c] sm:$0xf]
  %v2537 = vld [vmem:[%s5 + $0x30] sm:$0xf]
  %v2538 = vld [vmem:[%s5 + $0x34] sm:$0xf]
  %v2539 = vld [vmem:[%s5 + $0x38] sm:$0xf]
  %v2540 = vld [vmem:[%s5 + $0x3c] sm:$0xf]
  %v2541 = vld [vmem:[%s5 + $0x40] sm:$0xf]
  %v2542 = vld [vmem:[%s5 + $0x44] sm:$0xf]
  %v2543 = vld [vmem:[%s5 + $0x48] sm:$0xf]
  %v2544 = vld [vmem:[%s5 + $0x4c] sm:$0xf]
  %v2545 = vld [vmem:[%s5 + $0x50] sm:$0xf]
  %v2546 = vld [vmem:[%s5 + $0x54] sm:$0xf]
  %v2547 = vld [vmem:[%s5 + $0x58] sm:$0xf]
  %v2548 = vld [vmem:[%s5 + $0x5c] sm:$0xf]
  %v2549 = vld [vmem:[%s5 + $0x60] sm:$0xf]
  %v2550 = vld [vmem:[%s5 + $0x64] sm:$0xf]
  %v2551 = vld [vmem:[%s5 + $0x68] sm:$0xf]
  %v2552 = vld [vmem:[%s5 + $0x6c] sm:$0xf]
  %v2553 = vld [vmem:[%s5 + $0x70] sm:$0xf]
  %v2554 = vld [vmem:[%s5 + $0x74] sm:$0xf]
  %v2555 = vld [vmem:[%s5 + $0x78] sm:$0xf]
  %v2556 = vld [vmem:[%s5 + $0x7c] sm:$0xf]
  %v2557 = vld [vmem:[%s6] sm:$0x1]
  %v2559 = vperm.slane %v2557, 0
  %v2593 = vunpack.c.l.b16 %v2525
  %v2594 = vunpack.c.l.b16 %v2526
  %v2595 = vunpack.c.l.b16 %v2527
  %v2596 = vunpack.c.l.b16 %v2528
  %v2597 = vunpack.c.l.b16 %v2529
  %v2598 = vunpack.c.l.b16 %v2530
  %v2599 = vunpack.c.l.b16 %v2531
  %v2600 = vunpack.c.l.b16 %v2532
  %v2601 = vunpack.c.l.b16 %v2533
  %v2602 = vunpack.c.l.b16 %v2534
  %v2603 = vunpack.c.l.b16 %v2535
  %v2604 = vunpack.c.l.b16 %v2536
  %v2605 = vunpack.c.l.b16 %v2537
  %v2606 = vunpack.c.l.b16 %v2538
  %v2607 = vunpack.c.l.b16 %v2539
  %v2608 = vunpack.c.l.b16 %v2540
  %v2609 = vunpack.c.l.b16 %v2541
  %v2610 = vunpack.c.l.b16 %v2542
  %v2611 = vunpack.c.l.b16 %v2543
  %v2612 = vunpack.c.l.b16 %v2544
  %v2613 = vunpack.c.l.b16 %v2545
  %v2614 = vunpack.c.l.b16 %v2546
  %v2615 = vunpack.c.l.b16 %v2547
  %v2616 = vunpack.c.l.b16 %v2548
  %v2617 = vunpack.c.l.b16 %v2549
  %v2618 = vunpack.c.l.b16 %v2550
  %v2619 = vunpack.c.l.b16 %v2551
  %v2620 = vunpack.c.l.b16 %v2552
  %v2621 = vunpack.c.l.b16 %v2553
  %v2622 = vunpack.c.l.b16 %v2554
  %v2623 = vunpack.c.l.b16 %v2555
  %v2624 = vunpack.c.l.b16 %v2556
  %v2625 = vpack.c.b16 %v2594, %v2593
  %v2626 = vpack.c.b16 %v2596, %v2595
  %v2627 = vpack.c.b16 %v2598, %v2597
  %v2628 = vpack.c.b16 %v2600, %v2599
  %v2629 = vpack.c.b16 %v2602, %v2601
  %v2630 = vpack.c.b16 %v2604, %v2603
  %v2631 = vpack.c.b16 %v2606, %v2605
  %v2632 = vpack.c.b16 %v2608, %v2607
  %v2633 = vpack.c.b16 %v2610, %v2609
  %v2634 = vpack.c.b16 %v2612, %v2611
  %v2635 = vpack.c.b16 %v2614, %v2613
  %v2636 = vpack.c.b16 %v2616, %v2615
  %v2637 = vpack.c.b16 %v2618, %v2617
  %v2638 = vpack.c.b16 %v2620, %v2619
  %v2639 = vpack.c.b16 %v2622, %v2621
  %v2640 = vpack.c.b16 %v2624, %v2623
  %2657 = vmatpush.bf16.msra.mxu0 %v2632
  %2658 = vmatpush.bf16.msra.mxu0 %v2631
  %2659 = vmatpush.bf16.msra.mxu0 %v2630
  %2660 = vmatpush.bf16.msra.mxu0 %v2629
  %2661 = vmatpush.bf16.msra.mxu0 %v2628
  %2662 = vmatpush.bf16.msra.mxu0 %v2627
  %2663 = vmatpush.bf16.msra.mxu0 %v2626
  %2664 = vmatpush.bf16.msra.mxu0 %v2625
  %2665 = vmatmul.bf16.gmra.mxu0 %v2523
  %v2666 = vpop.f32.mrf.mxu0
  %v2667 = vadd.f32 %v2559, %v2666
  %v2668 = vpop.f32.mrf.mxu0
  %2669 = vdwg.mxu0
  %2670 = vmatpush.bf16.msra.mxu0 %v2640
  %2671 = vmatpush.bf16.msra.mxu0 %v2639
  %2672 = vmatpush.bf16.msra.mxu0 %v2638
  %2673 = vmatpush.bf16.msra.mxu0 %v2637
  %2674 = vmatpush.bf16.msra.mxu0 %v2636
  %2675 = vmatpush.bf16.msra.mxu0 %v2635
  %2676 = vmatpush.bf16.msra.mxu0 %v2634
  %2677 = vmatpush.bf16.msra.mxu0 %v2633
  %2678 = vmatmul.bf16.gmra.mxu0 %v2524
  %v2679 = vpop.f32.mrf.mxu0
  %v2680 = vadd.f32 %v2667, %v2679
  %v2681 = vpop.f32.mrf.mxu0
  %2682 = vdwg.mxu0
  %2683 = vst [vmem:[%s7] sm:$0x3] %v2680
  // Predicated region
  $region30: #{transform_net_forward.3} parent=0 // pred_check
    _
  $region31: #{transform_net_forward.3} parent=0 // pred_check_branch
    %2685 = sbr.rel (0) target = $region33
  $region32: #{transform_net_forward.3} parent=0 // pred_region
    _
  $region33: #{transform_net_forward.3} parent=0 // pred_fallthru
    _
  // Predicated region
  $region34: #{transform_net_forward.3} parent=0 // pred_check
    _
  $region35: #{transform_net_forward.3} parent=0 // pred_check_branch
    %2687 = sbr.rel (0) target = $region37
  $region36: #{transform_net_forward.3} parent=0 // pred_region
    _
  $region37: #{transform_net_forward.3} parent=0 // pred_fallthru
    _

</llo_original>
